<compile_context>
chip_gen: v6e
topology: v6e:2x2x1
jax: 0.10.0
libtpu: 0.0.40
codegen_flags: <defaults>
</compile_context>

<pallas_src>
import functools

import jax
import jax.numpy as jnp
from jax import lax
from jax.experimental import pallas as pl
from jax.experimental.pallas import tpu as pltpu


def _matT(a, b):
    # a @ b.T without materialising a transpose: contract last dims of both.
    return lax.dot_general(a, b, (((1,), (1,)), ((), ())),
                           preferred_element_type=jnp.float32)


def _loss_kernel(tm,
                 s_full_ref, t_full_ref, p_full_ref, l_full_ref,
                 mob_ref, mobT_ref, psim_ref, lsim_ref,
                 out_ref):
    f32 = jnp.float32
    n = s_full_ref.shape[0]
    inv_n2 = 1.0 / float(n * n)

    s_full = s_full_ref[...].astype(f32)
    t_full = t_full_ref[...].astype(f32)
    p_full = p_full_ref[...].astype(f32)
    l_full = l_full_ref[...].astype(f32)

    if tm == n:
        # Single-tile fallback: LHS tiles are the resident arrays themselves.
        s_tile, t_tile, p_tile, l_tile = s_full, t_full, p_full, l_full
    else:
        row0 = pl.program_id(0) * tm
        if tm % 8 == 0:
            row0 = pl.multiple_of(row0, 8)   # sublane-aligned dynamic slice
        s_tile = s_full_ref[pl.ds(row0, tm), :].astype(f32)
        t_tile = t_full_ref[pl.ds(row0, tm), :].astype(f32)
        p_tile = p_full_ref[pl.ds(row0, tm), :].astype(f32)
        l_tile = l_full_ref[pl.ds(row0, tm), :].astype(f32)

    # -------- mobility loss: row-softmax cross-entropy, both directions -----
    def ce_partial(lhs_tile, rhs_full, target_tile):
        logits = _matT(lhs_tile, rhs_full)                          # (TM, N), MXU
        m = jnp.max(logits, axis=-1, keepdims=True)
        e = jnp.exp(logits - m)                                     # EUP
        inv_denom = pl.reciprocal(jnp.sum(e, axis=-1, keepdims=True),
                                  approx=True)                      # (TM, 1)
        phat = e * inv_denom
        return jnp.sum(-target_tile * jnp.log(phat + 1e-4))         # EUP

    loss = ce_partial(s_tile, t_full, mob_ref[...].astype(f32))
    loss = loss + ce_partial(t_tile, s_full, mobT_ref[...].astype(f32))

    # -------- cosine-similarity MSE terms (partial sums of squared diff) ----
    def cos_partial(emb_tile, emb_full, adj_tile):
        inv_nt = lax.rsqrt(jnp.maximum(
            jnp.sum(emb_tile * emb_tile, axis=-1, keepdims=True), 1e-16))
        inv_nf = lax.rsqrt(jnp.maximum(
            jnp.sum(emb_full * emb_full, axis=-1, keepdims=True), 1e-16))
        cos = _matT(emb_tile * inv_nt, emb_full * inv_nf)           # (TM, N)
        diff = cos - adj_tile
        return jnp.sum(diff * diff)

    loss = loss + inv_n2 * cos_partial(p_tile, p_full, psim_ref[...].astype(f32))
    loss = loss + inv_n2 * cos_partial(l_tile, l_full, lsim_ref[...].astype(f32))

    # Lane-dense (8, 128) per-tile partial block; final sum happens in JAX.
    out_ref[...] = jnp.broadcast_to(jnp.reshape(loss, (1, 1)), out_ref.shape)


def _vmem_bytes(n, d, tm):
    full_resident = 2 * 4 * n * d * 4          # 4 resident (N, D) inputs (dbl-buf bound)
    streamed = 2 * 4 * tm * n * 4              # 4 streamed (TM, N) tiles (dbl buffer)
    intermediates = (8 * tm * n + 4 * tm * d) * 4   # logits/exp/cos/diff + tile slices
    return full_resident + streamed + intermediates + (2 << 20)


def _choose_tm(n, d, budget_bytes=24 * 1024 * 1024, max_tm=256):
    # Largest TM that divides N, is sublane aligned (multiple of 8), keeps the
    # VMEM estimate under budget and yields >= 2 grid steps so DMA overlaps
    # compute.  Small / oddly shaped N falls back to a single full tile.
    if n <= 128:
        return n
    best = None
    for tm in range(8, min(n - 1, max_tm) + 1, 8):
        if n % tm:
            continue
        if _vmem_bytes(n, d, tm) <= budget_bytes:
            best = tm
    return best if best is not None else n


def model_loss(out_s, out_t, mob_adj, out_p, poi_sim, out_l, land_sim):
    n, d = out_s.shape
    mob_t = mob_adj.T          # glue: avoid an in-kernel 2-D transpose (XLU work)

    tm = _choose_tm(n, d)
    num_tiles = n // tm
    vmem_limit = int(min(64 * 1024 * 1024,
                         max(32 * 1024 * 1024, _vmem_bytes(n, d, tm))))

    full_nd = pl.BlockSpec((n, d), lambda i: (0, 0))   # resident RHS operands
    tile_nn = pl.BlockSpec((tm, n), lambda i: (i, 0))  # streamed adjacency tiles

    partials = pl.pallas_call(
        functools.partial(_loss_kernel, tm),
        out_shape=jax.ShapeDtypeStruct((num_tiles * 8, 128), jnp.float32),
        grid=(num_tiles,),
        in_specs=[full_nd, full_nd, full_nd, full_nd,
                  tile_nn, tile_nn, tile_nn, tile_nn],
        out_specs=pl.BlockSpec((8, 128), lambda i: (i, 0)),
        compiler_params=pltpu.CompilerParams(
            dimension_semantics=("parallel",),
            vmem_limit_bytes=vmem_limit),
    )(out_s, out_t, out_p, out_l,
      mob_adj, mob_t, poi_sim, land_sim)

    return jnp.sum(partials[0::8, 0])


# ---------------- pure-JAX reference (mirrors the PyTorch semantics) ----------------
def _ref_loss(out_s, out_t, mob, out_p, psim, out_l, lsim):
    def gen(emb, adj):
        nrm = jnp.sqrt(jnp.sum(emb * emb, axis=-1))
        cos = (emb @ emb.T) / jnp.maximum(nrm[:, None] * nrm[None, :], 1e-8)
        return jnp.mean((cos - adj) ** 2)

    def mobl(s, t, m):
        p1 = jax.nn.softmax(s @ t.T, axis=-1)
        l = jnp.sum(-m * jnp.log(p1 + 1e-4))
        p2 = jax.nn.softmax(t @ s.T, axis=-1)
        return l + jnp.sum(-m.T * jnp.log(p2 + 1e-4))

    return mobl(out_s, out_t, mob) + gen(out_p, psim) + gen(out_l, lsim)


if __name__ == "__main__":
    def make_inputs(key, n, d):
        k = jax.random.split(key, 7)
        return (jax.random.normal(k[0], (n, d), jnp.float32),
                jax.random.normal(k[1], (n, d), jnp.float32),
                jax.random.uniform(k[2], (n, n), jnp.float32),
                jax.random.normal(k[3], (n, d), jnp.float32),
                jax.random.uniform(k[4], (n, n), jnp.float32),
                jax.random.normal(k[5], (n, d), jnp.float32),
                jax.random.uniform(k[6], (n, n), jnp.float32))

    k_main, k_small = jax.random.split(jax.random.PRNGKey(0))

    # Tiled path: N=256, D=128 -> TM=128, 2 pipelined grid steps.
    args = make_inputs(k_main, 256, 128)
    loss = model_loss(*args)
    jax.block_until_ready(loss)
    ref = _ref_loss(*args)
    assert jnp.allclose(loss, ref, rtol=1e-3, atol=1e-2), (loss, ref)

    # Single-tile fallback path: small N.
    args_small = make_inputs(k_small, 40, 32)
    loss_s = model_loss(*args_small)
    jax.block_until_ready(loss_s)
    ref_s = _ref_loss(*args_small)
    assert jnp.allclose(loss_s, ref_s, rtol=1e-3, atol=1e-2), (loss_s, ref_s)

    print("KERNEL_OK")
</pallas_src>

<mosaic_0001>
module attributes {stable_mosaic.version = 11 : i64} {
  func.func @_loss_kernel(%arg0: i32, %arg1: memref<256x128xf32, #tpu.memory_space<vmem>>, %arg2: memref<256x128xf32, #tpu.memory_space<vmem>>, %arg3: memref<256x128xf32, #tpu.memory_space<vmem>>, %arg4: memref<256x128xf32, #tpu.memory_space<vmem>>, %arg5: memref<128x256xf32, #tpu.memory_space<vmem>>, %arg6: memref<128x256xf32, #tpu.memory_space<vmem>>, %arg7: memref<128x256xf32, #tpu.memory_space<vmem>>, %arg8: memref<128x256xf32, #tpu.memory_space<vmem>>, %arg9: memref<8x128xf32, #tpu.memory_space<vmem>>) attributes {dimension_semantics = [#tpu.dimension_semantics<parallel>], iteration_bounds = array<i64: 2>, scalar_prefetch = 0 : i64, scratch_operands = 0 : i64, tpu.core_type = #tpu.core_type<tc>, window_params = [{pipeline_mode = #tpu.pipeline_mode<synchronous>, transform_indices = @transform_0, window_bounds = array<i64: 256, 128>}, {pipeline_mode = #tpu.pipeline_mode<synchronous>, transform_indices = @transform_1, window_bounds = array<i64: 256, 128>}, {pipeline_mode = #tpu.pipeline_mode<synchronous>, transform_indices = @transform_2, window_bounds = array<i64: 256, 128>}, {pipeline_mode = #tpu.pipeline_mode<synchronous>, transform_indices = @transform_3, window_bounds = array<i64: 256, 128>}, {transform_indices = @transform_4, window_bounds = array<i64: 128, 256>}, {transform_indices = @transform_5, window_bounds = array<i64: 128, 256>}, {transform_indices = @transform_6, window_bounds = array<i64: 128, 256>}, {transform_indices = @transform_7, window_bounds = array<i64: 128, 256>}, {transform_indices = @transform_8, window_bounds = array<i64: 8, 128>}]} {
    %c0 = arith.constant 0 : index
    %c0_0 = arith.constant 0 : index
    %0 = vector.load %arg1[%c0, %c0_0] : memref<256x128xf32, #tpu.memory_space<vmem>>, vector<256x128xf32>
    %c0_1 = arith.constant 0 : index
    %c0_2 = arith.constant 0 : index
    %1 = vector.load %arg2[%c0_1, %c0_2] : memref<256x128xf32, #tpu.memory_space<vmem>>, vector<256x128xf32>
    %c0_3 = arith.constant 0 : index
    %c0_4 = arith.constant 0 : index
    %2 = vector.load %arg3[%c0_3, %c0_4] : memref<256x128xf32, #tpu.memory_space<vmem>>, vector<256x128xf32>
    %c0_5 = arith.constant 0 : index
    %c0_6 = arith.constant 0 : index
    %3 = vector.load %arg4[%c0_5, %c0_6] : memref<256x128xf32, #tpu.memory_space<vmem>>, vector<256x128xf32>
    %c128_i32 = arith.constant 128 : i32
    %4 = arith.muli %arg0, %c128_i32 : i32
    %5 = tpu.assume_multiple %4, 8 : i32
    %6 = arith.index_cast %5 : i32 to index
    %c0_7 = arith.constant 0 : index
    %7 = vector.load %arg1[%6, %c0_7] : memref<256x128xf32, #tpu.memory_space<vmem>>, vector<128x128xf32>
    %8 = arith.index_cast %5 : i32 to index
    %c0_8 = arith.constant 0 : index
    %9 = vector.load %arg2[%8, %c0_8] : memref<256x128xf32, #tpu.memory_space<vmem>>, vector<128x128xf32>
    %10 = arith.index_cast %5 : i32 to index
    %c0_9 = arith.constant 0 : index
    %11 = vector.load %arg3[%10, %c0_9] : memref<256x128xf32, #tpu.memory_space<vmem>>, vector<128x128xf32>
    %12 = arith.index_cast %5 : i32 to index
    %c0_10 = arith.constant 0 : index
    %13 = vector.load %arg4[%12, %c0_10] : memref<256x128xf32, #tpu.memory_space<vmem>>, vector<128x128xf32>
    %c0_11 = arith.constant 0 : index
    %c0_12 = arith.constant 0 : index
    %14 = vector.load %arg5[%c0_11, %c0_12] : memref<128x256xf32, #tpu.memory_space<vmem>>, vector<128x256xf32>
    %cst = arith.constant dense<0.000000e+00> : vector<128x256xf32>
    %15 = tpu.matmul %7, %1, %cst {dimension_numbers = #tpu.dot_dimension_numbers<[1], [1], [0], [0], [0, 0, 1, 0], [], []>} : vector<128x128xf32>, vector<256x128xf32>, vector<128x256xf32> -> vector<128x256xf32>
    %cst_13 = arith.constant dense<0xFF800000> : vector<128xf32>
    %16 = vector.multi_reduction <maximumf>, %15, %cst_13 [1] : vector<128x256xf32> to vector<128xf32>
    %17 = vector.shape_cast %16 : vector<128xf32> to vector<128x1xf32>
    %18 = vector.broadcast %17 : vector<128x1xf32> to vector<128x256xf32>
    %19 = arith.subf %15, %18 : vector<128x256xf32>
    %20 = math.exp %19 : vector<128x256xf32>
    %cst_14 = arith.constant dense<0.000000e+00> : vector<128xf32>
    %21 = vector.multi_reduction <add>, %20, %cst_14 [1] : vector<128x256xf32> to vector<128xf32>
    %22 = vector.shape_cast %21 : vector<128xf32> to vector<128x1xf32>
    %23 = tpu.reciprocal %22 {approx = true} : vector<128x1xf32> -> vector<128x1xf32>
    %24 = vector.broadcast %23 : vector<128x1xf32> to vector<128x256xf32>
    %25 = arith.mulf %20, %24 : vector<128x256xf32>
    %cst_15 = arith.constant 0.000000e+00 : f32
    %26 = vector.broadcast %cst_15 : f32 to vector<128x256xf32>
    %27 = arith.subf %26, %14 : vector<128x256xf32>
    %cst_16 = arith.constant 9.99999974E-5 : f32
    %28 = vector.broadcast %cst_16 : f32 to vector<128x256xf32>
    %29 = arith.addf %25, %28 : vector<128x256xf32>
    %30 = math.log %29 : vector<128x256xf32>
    %31 = arith.mulf %27, %30 : vector<128x256xf32>
    %32 = vector.shape_cast %31 : vector<128x256xf32> to vector<1x128x256xf32>
    %cst_17 = arith.constant dense<0.000000e+00> : vector<1xf32>
    %33 = vector.multi_reduction <add>, %32, %cst_17 [1, 2] : vector<1x128x256xf32> to vector<1xf32>
    %34 = vector.shape_cast %33 : vector<1xf32> to vector<1x1x1xf32>
    %35 = vector.extract %34[0, 0, 0] : f32 from vector<1x1x1xf32>
    %c0_18 = arith.constant 0 : index
    %c0_19 = arith.constant 0 : index
    %36 = vector.load %arg6[%c0_18, %c0_19] : memref<128x256xf32, #tpu.memory_space<vmem>>, vector<128x256xf32>
    %cst_20 = arith.constant dense<0.000000e+00> : vector<128x256xf32>
    %37 = tpu.matmul %9, %0, %cst_20 {dimension_numbers = #tpu.dot_dimension_numbers<[1], [1], [0], [0], [0, 0, 1, 0], [], []>} : vector<128x128xf32>, vector<256x128xf32>, vector<128x256xf32> -> vector<128x256xf32>
    %cst_21 = arith.constant dense<0xFF800000> : vector<128xf32>
    %38 = vector.multi_reduction <maximumf>, %37, %cst_21 [1] : vector<128x256xf32> to vector<128xf32>
    %39 = vector.shape_cast %38 : vector<128xf32> to vector<128x1xf32>
    %40 = vector.broadcast %39 : vector<128x1xf32> to vector<128x256xf32>
    %41 = arith.subf %37, %40 : vector<128x256xf32>
    %42 = math.exp %41 : vector<128x256xf32>
    %cst_22 = arith.constant dense<0.000000e+00> : vector<128xf32>
    %43 = vector.multi_reduction <add>, %42, %cst_22 [1] : vector<128x256xf32> to vector<128xf32>
    %44 = vector.shape_cast %43 : vector<128xf32> to vector<128x1xf32>
    %45 = tpu.reciprocal %44 {approx = true} : vector<128x1xf32> -> vector<128x1xf32>
    %46 = vector.broadcast %45 : vector<128x1xf32> to vector<128x256xf32>
    %47 = arith.mulf %42, %46 : vector<128x256xf32>
    %cst_23 = arith.constant 0.000000e+00 : f32
    %48 = vector.broadcast %cst_23 : f32 to vector<128x256xf32>
    %49 = arith.subf %48, %36 : vector<128x256xf32>
    %cst_24 = arith.constant 9.99999974E-5 : f32
    %50 = vector.broadcast %cst_24 : f32 to vector<128x256xf32>
    %51 = arith.addf %47, %50 : vector<128x256xf32>
    %52 = math.log %51 : vector<128x256xf32>
    %53 = arith.mulf %49, %52 : vector<128x256xf32>
    %54 = vector.shape_cast %53 : vector<128x256xf32> to vector<1x128x256xf32>
    %cst_25 = arith.constant dense<0.000000e+00> : vector<1xf32>
    %55 = vector.multi_reduction <add>, %54, %cst_25 [1, 2] : vector<1x128x256xf32> to vector<1xf32>
    %56 = vector.shape_cast %55 : vector<1xf32> to vector<1x1x1xf32>
    %57 = vector.extract %56[0, 0, 0] : f32 from vector<1x1x1xf32>
    %58 = arith.addf %35, %57 : f32
    %c0_26 = arith.constant 0 : index
    %c0_27 = arith.constant 0 : index
    %59 = vector.load %arg7[%c0_26, %c0_27] : memref<128x256xf32, #tpu.memory_space<vmem>>, vector<128x256xf32>
    %60 = arith.mulf %11, %11 : vector<128x128xf32>
    %cst_28 = arith.constant dense<0.000000e+00> : vector<128xf32>
    %61 = vector.multi_reduction <add>, %60, %cst_28 [1] : vector<128x128xf32> to vector<128xf32>
    %62 = vector.shape_cast %61 : vector<128xf32> to vector<128x1xf32>
    %cst_29 = arith.constant 1.000000e-16 : f32
    %63 = vector.broadcast %cst_29 : f32 to vector<128x1xf32>
    %64 = arith.maximumf %62, %63 : vector<128x1xf32>
    %65 = math.rsqrt %64 : vector<128x1xf32>
    %66 = arith.mulf %2, %2 : vector<256x128xf32>
    %cst_30 = arith.constant dense<0.000000e+00> : vector<256xf32>
    %67 = vector.multi_reduction <add>, %66, %cst_30 [1] : vector<256x128xf32> to vector<256xf32>
    %68 = vector.shape_cast %67 : vector<256xf32> to vector<256x1xf32>
    %cst_31 = arith.constant 1.000000e-16 : f32
    %69 = vector.broadcast %cst_31 : f32 to vector<256x1xf32>
    %70 = arith.maximumf %68, %69 : vector<256x1xf32>
    %71 = math.rsqrt %70 : vector<256x1xf32>
    %72 = vector.broadcast %65 : vector<128x1xf32> to vector<128x128xf32>
    %73 = arith.mulf %11, %72 : vector<128x128xf32>
    %74 = vector.broadcast %71 : vector<256x1xf32> to vector<256x128xf32>
    %75 = arith.mulf %2, %74 : vector<256x128xf32>
    %cst_32 = arith.constant dense<0.000000e+00> : vector<128x256xf32>
    %76 = tpu.matmul %73, %75, %cst_32 {dimension_numbers = #tpu.dot_dimension_numbers<[1], [1], [0], [0], [0, 0, 1, 0], [], []>} : vector<128x128xf32>, vector<256x128xf32>, vector<128x256xf32> -> vector<128x256xf32>
    %77 = arith.subf %76, %59 : vector<128x256xf32>
    %78 = arith.mulf %77, %77 : vector<128x256xf32>
    %79 = vector.shape_cast %78 : vector<128x256xf32> to vector<1x128x256xf32>
    %cst_33 = arith.constant dense<0.000000e+00> : vector<1xf32>
    %80 = vector.multi_reduction <add>, %79, %cst_33 [1, 2] : vector<1x128x256xf32> to vector<1xf32>
    %81 = vector.shape_cast %80 : vector<1xf32> to vector<1x1x1xf32>
    %82 = vector.extract %81[0, 0, 0] : f32 from vector<1x1x1xf32>
    %cst_34 = arith.constant 1.52587891E-5 : f32
    %83 = arith.mulf %cst_34, %82 : f32
    %84 = arith.addf %58, %83 : f32
    %c0_35 = arith.constant 0 : index
    %c0_36 = arith.constant 0 : index
    %85 = vector.load %arg8[%c0_35, %c0_36] : memref<128x256xf32, #tpu.memory_space<vmem>>, vector<128x256xf32>
    %86 = arith.mulf %13, %13 : vector<128x128xf32>
    %cst_37 = arith.constant dense<0.000000e+00> : vector<128xf32>
    %87 = vector.multi_reduction <add>, %86, %cst_37 [1] : vector<128x128xf32> to vector<128xf32>
    %88 = vector.shape_cast %87 : vector<128xf32> to vector<128x1xf32>
    %cst_38 = arith.constant 1.000000e-16 : f32
    %89 = vector.broadcast %cst_38 : f32 to vector<128x1xf32>
    %90 = arith.maximumf %88, %89 : vector<128x1xf32>
    %91 = math.rsqrt %90 : vector<128x1xf32>
    %92 = arith.mulf %3, %3 : vector<256x128xf32>
    %cst_39 = arith.constant dense<0.000000e+00> : vector<256xf32>
    %93 = vector.multi_reduction <add>, %92, %cst_39 [1] : vector<256x128xf32> to vector<256xf32>
    %94 = vector.shape_cast %93 : vector<256xf32> to vector<256x1xf32>
    %cst_40 = arith.constant 1.000000e-16 : f32
    %95 = vector.broadcast %cst_40 : f32 to vector<256x1xf32>
    %96 = arith.maximumf %94, %95 : vector<256x1xf32>
    %97 = math.rsqrt %96 : vector<256x1xf32>
    %98 = vector.broadcast %91 : vector<128x1xf32> to vector<128x128xf32>
    %99 = arith.mulf %13, %98 : vector<128x128xf32>
    %100 = vector.broadcast %97 : vector<256x1xf32> to vector<256x128xf32>
    %101 = arith.mulf %3, %100 : vector<256x128xf32>
    %cst_41 = arith.constant dense<0.000000e+00> : vector<128x256xf32>
    %102 = tpu.matmul %99, %101, %cst_41 {dimension_numbers = #tpu.dot_dimension_numbers<[1], [1], [0], [0], [0, 0, 1, 0], [], []>} : vector<128x128xf32>, vector<256x128xf32>, vector<128x256xf32> -> vector<128x256xf32>
    %103 = arith.subf %102, %85 : vector<128x256xf32>
    %104 = arith.mulf %103, %103 : vector<128x256xf32>
    %105 = vector.shape_cast %104 : vector<128x256xf32> to vector<1x128x256xf32>
    %cst_42 = arith.constant dense<0.000000e+00> : vector<1xf32>
    %106 = vector.multi_reduction <add>, %105, %cst_42 [1, 2] : vector<1x128x256xf32> to vector<1xf32>
    %107 = vector.shape_cast %106 : vector<1xf32> to vector<1x1x1xf32>
    %108 = vector.extract %107[0, 0, 0] : f32 from vector<1x1x1xf32>
    %cst_43 = arith.constant 1.52587891E-5 : f32
    %109 = arith.mulf %cst_43, %108 : f32
    %110 = arith.addf %84, %109 : f32
    %111 = vector.broadcast %110 : f32 to vector<1x1xf32>
    %112 = vector.shape_cast %111 : vector<1x1xf32> to vector<1x1xf32>
    %113 = vector.broadcast %112 : vector<1x1xf32> to vector<8x128xf32>
    %c0_44 = arith.constant 0 : index
    %c0_45 = arith.constant 0 : index
    %114 = vector.load %arg9[%c0_44, %c0_45] : memref<8x128xf32, #tpu.memory_space<vmem>>, vector<8x128xf32>
    tpu.vector_store %arg9[%c0_44, %c0_45], %113 {strides = array<i32>} : memref<8x128xf32, #tpu.memory_space<vmem>>, vector<8x128xf32>,
    return
  }
  func.func @transform_0(%arg0: i32) -> (i32, i32) {
    %c0_i32 = arith.constant 0 : i32
    %c0_i32_0 = arith.constant 0 : i32
    %c0_i32_1 = arith.constant 0 : i32
    return %c0_i32, %c0_i32_0 : i32, i32
  }
  func.func @transform_1(%arg0: i32) -> (i32, i32) {
    %c0_i32 = arith.constant 0 : i32
    %c0_i32_0 = arith.constant 0 : i32
    %c0_i32_1 = arith.constant 0 : i32
    return %c0_i32, %c0_i32_0 : i32, i32
  }
  func.func @transform_2(%arg0: i32) -> (i32, i32) {
    %c0_i32 = arith.constant 0 : i32
    %c0_i32_0 = arith.constant 0 : i32
    %c0_i32_1 = arith.constant 0 : i32
    return %c0_i32, %c0_i32_0 : i32, i32
  }
  func.func @transform_3(%arg0: i32) -> (i32, i32) {
    %c0_i32 = arith.constant 0 : i32
    %c0_i32_0 = arith.constant 0 : i32
    %c0_i32_1 = arith.constant 0 : i32
    return %c0_i32, %c0_i32_0 : i32, i32
  }
  func.func @transform_4(%arg0: i32) -> (i32, i32) {
    %c0_i32 = arith.constant 0 : i32
    %c0_i32_0 = arith.constant 0 : i32
    return %arg0, %c0_i32 : i32, i32
  }
  func.func @transform_5(%arg0: i32) -> (i32, i32) {
    %c0_i32 = arith.constant 0 : i32
    %c0_i32_0 = arith.constant 0 : i32
    return %arg0, %c0_i32 : i32, i32
  }
  func.func @transform_6(%arg0: i32) -> (i32, i32) {
    %c0_i32 = arith.constant 0 : i32
    %c0_i32_0 = arith.constant 0 : i32
    return %arg0, %c0_i32 : i32, i32
  }
  func.func @transform_7(%arg0: i32) -> (i32, i32) {
    %c0_i32 = arith.constant 0 : i32
    %c0_i32_0 = arith.constant 0 : i32
    return %arg0, %c0_i32 : i32, i32
  }
  func.func @transform_8(%arg0: i32) -> (i32, i32) {
    %c0_i32 = arith.constant 0 : i32
    %c0_i32_0 = arith.constant 0 : i32
    return %arg0, %c0_i32 : i32, i32
  }
}

</mosaic_0001>

<llo_original>
// kernel: tpu_custom_call.1
$region0: #{tpu_custom_call.1}
  #allocation0 [shape = 'u32[]', space=smem, size = 0x4, offset = 0x4, fixed_abs, tag = 'smem constant byte address 0x4 - core index']
  #allocation1 [shape = 'u32[144,128]{1,0:T(1,128)}', space=vmem, size = 0x12000, scoped, tag = 'internal scratch']
  %s0 = inlined_call_operand.hbm [shape: f32[256,128], index: 0, kind: input, shape index: {}]
  %s1 = inlined_call_operand.hbm [shape: f32[256,128], index: 1, kind: input, shape index: {}]
  %s2 = inlined_call_operand.hbm [shape: f32[256,128], index: 2, kind: input, shape index: {}]
  %s3 = inlined_call_operand.hbm [shape: f32[256,128], index: 3, kind: input, shape index: {}]
  %s4 = inlined_call_operand.hbm [shape: f32[256,256], index: 4, kind: input, shape index: {}]
  %s5 = inlined_call_operand.hbm [shape: f32[256,256], index: 5, kind: input, shape index: {}]
  %s6 = inlined_call_operand.hbm [shape: f32[256,256], index: 6, kind: input, shape index: {}]
  %s7 = inlined_call_operand.hbm [shape: f32[256,256], index: 7, kind: input, shape index: {}]
  %s8 = inlined_call_operand.hbm [shape: f32[16,128], index: 8, kind: output, shape index: {}]
  %s9 = sld [smem:[#allocation0]]
  $region97: #{tpu_custom_call.1} parent=0
    _
  %s11 = ssub.s32 1, %s9
  %s12 = scalar_select 0, %s11, %s9
  $region1: #{tpu_custom_call.1} parent=0
    #allocation2 [shape = 'u8[131072]{0}', space=vmem, size = 0x20000, scoped, tag = 'input window, operand 0, single buffered']
    #allocation3 [shape = 's32[2]{0}', space=sflag, size = 0x8, scoped, tag = 'scoped memory for tpu_custom_call.1']
    #allocation4 [shape = 's32[2]{0}', space=sflag, size = 0x8, scoped, tag = 'scoped memory for tpu_custom_call.1']
    #allocation5 [shape = 'u8[131072]{0}', space=vmem, size = 0x20000, scoped, tag = 'input window, operand 1, single buffered']
    #allocation6 [shape = 's32[1]{0}', space=sflag, size = 0x4, scoped, tag = 'scoped memory for tpu_custom_call.1']
    #allocation7 [shape = 'u8[131072]{0}', space=vmem, size = 0x20000, scoped, tag = 'input window, operand 2, single buffered']
    #allocation8 [shape = 'u8[131072]{0}', space=vmem, size = 0x20000, scoped, tag = 'input window, operand 3, single buffered']
    #allocation9 [shape = 's32[1]{0}', space=sflag, size = 0x4, scoped, tag = 'scoped memory for tpu_custom_call.1']
    #allocation10 [shape = 'u8[262144]{0}', space=vmem, size = 0x40000, scoped, tag = 'input window, operand 4']
    #allocation11 [shape = 'u8[262144]{0}', space=vmem, size = 0x40000, scoped, tag = 'input window, operand 5']
    #allocation12 [shape = 'u8[262144]{0}', space=vmem, size = 0x40000, scoped, tag = 'input window, operand 6']
    #allocation13 [shape = 'u8[262144]{0}', space=vmem, size = 0x40000, scoped, tag = 'input window, operand 7']
    #allocation14 [shape = 'u8[8192]{0}', space=vmem, size = 0x2000, scoped, tag = 'output window, operand 0']
    %13 = vsyncpa [#allocation3], 0
    %14 = vsyncpa [#allocation6], 0
    %15 = vsyncpa [#allocation9], 0
    %16 = vsyncpa [#allocation4], 0
    %s17 = scalar_lea.sflag [#allocation4], 1
    %18 = vsyncpa %s17, 0
    loop: start=0, step=1, limit=4
    $region2: #{tpu_custom_call.1} parent=1 // loop_pre_header
      _
    $region3: #{tpu_custom_call.1} parent=1 // loop_header
      %s20 = sphi 0, %s24
      %p21 = scmp.ge.s32.totalorder %s20, 4
      %s28 = sphi 0, %s28
      %s30 = sphi 0, %s28
      %s31 = sphi 0, %s30
      %s45 = sphi 0, %s31
      %s49 = sphi 0, %s49
      %s51 = sphi 0, %s49
      %s52 = sphi 0, %s51
      %s66 = sphi 0, %s52
      %s70 = sphi 0, %s70
      %s72 = sphi 0, %s70
      %s73 = sphi 0, %s72
      %s87 = sphi 0, %s73
      %s91 = sphi 0, %s91
      %s93 = sphi 0, %s91
      %s94 = sphi 0, %s93
      %s108 = sphi 0, %s94
      %s114 = sphi 0, %s116
      %s117 = sphi 0, %s114
      %s118 = sphi 0, %s117
      %s134 = sphi 0, %s118
      %s140 = sphi 0, %s142
      %s143 = sphi 0, %s140
      %s144 = sphi 0, %s143
      %s160 = sphi 0, %s144
      %s166 = sphi 0, %s168
      %s169 = sphi 0, %s166
      %s170 = sphi 0, %s169
      %s186 = sphi 0, %s170
      %s192 = sphi 0, %s194
      %s195 = sphi 0, %s192
      %s196 = sphi 0, %s195
      %s212 = sphi 0, %s196
      %s218 = sphi 0, %s220
      %s221 = sphi 0, %s218
      %s222 = sphi 0, %s221
      %s238 = sphi 0, %s222
    $region4: #{tpu_custom_call.1} parent=1 // loop_header_branch
      %23 = sbr.rel (%p21) target = $region8
    $region5: #{tpu_custom_call.1} parent=1 // loop_body
      %s25 = ssub.s32 %s20, 1
      %s26 = ssub.s32 %s20, 2
      %s27 = sadd.s32 %s20, 1
      %s29 = sadd.s32 %s28, 1
      %p32 = scmp.eq.s32.totalorder %s20, 1
      %p33 = scmp.ne.s32.totalorder %s28, %s30
      %p34 = scmp.eq.s32.totalorder %s20, 0
      %p35 = por %p33, %p34
      %p36 = scmp.ne.s32.totalorder %s28, %s30
      %p37 = scmp.eq.s32.totalorder %s25, 1
      %p38 = por %p36, %p37
      %p39 = scmp.ne.s32.totalorder %s30, %s31
      %p40 = scmp.eq.s32.totalorder %s25, 0
      %p41 = por %p39, %p40
      %p42 = scmp.ne.s32.totalorder %s30, %s31
      %p43 = scmp.eq.s32.totalorder %s26, 1
      %p44 = por %p42, %p43
      %p46 = scmp.ne.s32.totalorder %s31, %s45
      %p47 = scmp.eq.s32.totalorder %s26, 0
      %p48 = por %p46, %p47
      %s50 = sadd.s32 %s49, 1
      %p53 = scmp.eq.s32.totalorder %s20, 1
      %p54 = scmp.ne.s32.totalorder %s49, %s51
      %p55 = scmp.eq.s32.totalorder %s20, 0
      %p56 = por %p54, %p55
      %p57 = scmp.ne.s32.totalorder %s49, %s51
      %p58 = scmp.eq.s32.totalorder %s25, 1
      %p59 = por %p57, %p58
      %p60 = scmp.ne.s32.totalorder %s51, %s52
      %p61 = scmp.eq.s32.totalorder %s25, 0
      %p62 = por %p60, %p61
      %p63 = scmp.ne.s32.totalorder %s51, %s52
      %p64 = scmp.eq.s32.totalorder %s26, 1
      %p65 = por %p63, %p64
      %p67 = scmp.ne.s32.totalorder %s52, %s66
      %p68 = scmp.eq.s32.totalorder %s26, 0
      %p69 = por %p67, %p68
      %s71 = sadd.s32 %s70, 1
      %p74 = scmp.eq.s32.totalorder %s20, 1
      %p75 = scmp.ne.s32.totalorder %s70, %s72
      %p76 = scmp.eq.s32.totalorder %s20, 0
      %p77 = por %p75, %p76
      %p78 = scmp.ne.s32.totalorder %s70, %s72
      %p79 = scmp.eq.s32.totalorder %s25, 1
      %p80 = por %p78, %p79
      %p81 = scmp.ne.s32.totalorder %s72, %s73
      %p82 = scmp.eq.s32.totalorder %s25, 0
      %p83 = por %p81, %p82
      %p84 = scmp.ne.s32.totalorder %s72, %s73
      %p85 = scmp.eq.s32.totalorder %s26, 1
      %p86 = por %p84, %p85
      %p88 = scmp.ne.s32.totalorder %s73, %s87
      %p89 = scmp.eq.s32.totalorder %s26, 0
      %p90 = por %p88, %p89
      %s92 = sadd.s32 %s91, 1
      %p95 = scmp.eq.s32.totalorder %s20, 1
      %p96 = scmp.ne.s32.totalorder %s91, %s93
      %p97 = scmp.eq.s32.totalorder %s20, 0
      %p98 = por %p96, %p97
      %p99 = scmp.ne.s32.totalorder %s91, %s93
      %p100 = scmp.eq.s32.totalorder %s25, 1
      %p101 = por %p99, %p100
      %p102 = scmp.ne.s32.totalorder %s93, %s94
      %p103 = scmp.eq.s32.totalorder %s25, 0
      %p104 = por %p102, %p103
      %p105 = scmp.ne.s32.totalorder %s93, %s94
      %p106 = scmp.eq.s32.totalorder %s26, 1
      %p107 = por %p105, %p106
      %p109 = scmp.ne.s32.totalorder %s94, %s108
      %p110 = scmp.eq.s32.totalorder %s26, 0
      %p111 = por %p109, %p110
      %s112 = ssub.s32 %s20, %s27
      %p113 = scmp.eq.s32.totalorder %s112, 0
      %s115 = sadd.s32 %s114, 1
      %s116 = scalar_select %p113, %s114, %s115
      %p119 = pneg %p113
      %p120 = scmp.eq.s32.totalorder %s20, 1
      %p121 = por %p119, %p120
      %p122 = scmp.ne.s32.totalorder %s114, %s117
      %p123 = scmp.eq.s32.totalorder %s20, 0
      %p124 = por %p122, %p123
      %p125 = scmp.ne.s32.totalorder %s114, %s117
      %p126 = scmp.eq.s32.totalorder %s25, 1
      %p127 = por %p125, %p126
      %p128 = scmp.ne.s32.totalorder %s117, %s118
      %p129 = scmp.eq.s32.totalorder %s25, 0
      %p130 = por %p128, %p129
      %p131 = scmp.ne.s32.totalorder %s117, %s118
      %p132 = scmp.eq.s32.totalorder %s26, 1
      %p133 = por %p131, %p132
      %p135 = scmp.ne.s32.totalorder %s118, %s134
      %p136 = scmp.eq.s32.totalorder %s26, 0
      %p137 = por %p135, %p136
      %s138 = ssub.s32 %s20, %s27
      %p139 = scmp.eq.s32.totalorder %s138, 0
      %s141 = sadd.s32 %s140, 1
      %s142 = scalar_select %p139, %s140, %s141
      %p145 = pneg %p139
      %p146 = scmp.eq.s32.totalorder %s20, 1
      %p147 = por %p145, %p146
      %p148 = scmp.ne.s32.totalorder %s140, %s143
      %p149 = scmp.eq.s32.totalorder %s20, 0
      %p150 = por %p148, %p149
      %p151 = scmp.ne.s32.totalorder %s140, %s143
      %p152 = scmp.eq.s32.totalorder %s25, 1
      %p153 = por %p151, %p152
      %p154 = scmp.ne.s32.totalorder %s143, %s144
      %p155 = scmp.eq.s32.totalorder %s25, 0
      %p156 = por %p154, %p155
      %p157 = scmp.ne.s32.totalorder %s143, %s144
      %p158 = scmp.eq.s32.totalorder %s26, 1
      %p159 = por %p157, %p158
      %p161 = scmp.ne.s32.totalorder %s144, %s160
      %p162 = scmp.eq.s32.totalorder %s26, 0
      %p163 = por %p161, %p162
      %s164 = ssub.s32 %s20, %s27
      %p165 = scmp.eq.s32.totalorder %s164, 0
      %s167 = sadd.s32 %s166, 1
      %s168 = scalar_select %p165, %s166, %s167
      %p171 = pneg %p165
      %p172 = scmp.eq.s32.totalorder %s20, 1
      %p173 = por %p171, %p172
      %p174 = scmp.ne.s32.totalorder %s166, %s169
      %p175 = scmp.eq.s32.totalorder %s20, 0
      %p176 = por %p174, %p175
      %p177 = scmp.ne.s32.totalorder %s166, %s169
      %p178 = scmp.eq.s32.totalorder %s25, 1
      %p179 = por %p177, %p178
      %p180 = scmp.ne.s32.totalorder %s169, %s170
      %p181 = scmp.eq.s32.totalorder %s25, 0
      %p182 = por %p180, %p181
      %p183 = scmp.ne.s32.totalorder %s169, %s170
      %p184 = scmp.eq.s32.totalorder %s26, 1
      %p185 = por %p183, %p184
      %p187 = scmp.ne.s32.totalorder %s170, %s186
      %p188 = scmp.eq.s32.totalorder %s26, 0
      %p189 = por %p187, %p188
      %s190 = ssub.s32 %s20, %s27
      %p191 = scmp.eq.s32.totalorder %s190, 0
      %s193 = sadd.s32 %s192, 1
      %s194 = scalar_select %p191, %s192, %s193
      %p197 = pneg %p191
      %p198 = scmp.eq.s32.totalorder %s20, 1
      %p199 = por %p197, %p198
      %p200 = scmp.ne.s32.totalorder %s192, %s195
      %p201 = scmp.eq.s32.totalorder %s20, 0
      %p202 = por %p200, %p201
      %p203 = scmp.ne.s32.totalorder %s192, %s195
      %p204 = scmp.eq.s32.totalorder %s25, 1
      %p205 = por %p203, %p204
      %p206 = scmp.ne.s32.totalorder %s195, %s196
      %p207 = scmp.eq.s32.totalorder %s25, 0
      %p208 = por %p206, %p207
      %p209 = scmp.ne.s32.totalorder %s195, %s196
      %p210 = scmp.eq.s32.totalorder %s26, 1
      %p211 = por %p209, %p210
      %p213 = scmp.ne.s32.totalorder %s196, %s212
      %p214 = scmp.eq.s32.totalorder %s26, 0
      %p215 = por %p213, %p214
      %s216 = ssub.s32 %s20, %s27
      %p217 = scmp.eq.s32.totalorder %s216, 0
      %s219 = sadd.s32 %s218, 1
      %s220 = scalar_select %p217, %s218, %s219
      %p223 = pneg %p217
      %p224 = scmp.eq.s32.totalorder %s20, 1
      %p225 = por %p223, %p224
      %p226 = scmp.ne.s32.totalorder %s218, %s221
      %p227 = scmp.eq.s32.totalorder %s20, 0
      %p228 = por %p226, %p227
      %p229 = scmp.ne.s32.totalorder %s218, %s221
      %p230 = scmp.eq.s32.totalorder %s25, 1
      %p231 = por %p229, %p230
      %p232 = scmp.ne.s32.totalorder %s221, %s222
      %p233 = scmp.eq.s32.totalorder %s25, 0
      %p234 = por %p232, %p233
      %p235 = scmp.ne.s32.totalorder %s221, %s222
      %p236 = scmp.eq.s32.totalorder %s26, 1
      %p237 = por %p235, %p236
      %p239 = scmp.ne.s32.totalorder %s222, %s238
      %p240 = scmp.eq.s32.totalorder %s26, 0
      %p241 = por %p239, %p240
      %p242 = scmp.le.s32.totalorder 1, %s20
      %p243 = scmp.lt.s32.totalorder %s20, 3
      %p244 = pnand %p242, %p243
      %p245 = pneg %p244
      // Predicated region
      $region9: #{tpu_custom_call.1} parent=5 // pred_check
        _
      $region10: #{tpu_custom_call.1} parent=5 // pred_check_branch
        %247 = sbr.rel (%p244) target = $region12
      $region11: #{tpu_custom_call.1} parent=5 // pred_region
        %s248 = ssub.s32 %s20, 1
        // Predicated region
        $region13: #{tpu_custom_call.1} parent=11 // pred_check
          %p249 = pneg %p41
        $region14: #{tpu_custom_call.1} parent=11 // pred_check_branch
          %251 = sbr.rel (%p249) target = $region16
        $region15: #{tpu_custom_call.1} parent=11 // pred_region
          %s253 = ssub.s32 4096, 4096
          %254 = vsyncadd [#allocation3], %s253
          %s255 = sshll.u32 [#allocation2], 4
          %s256 = int_to_ptr.vmem [resolvable:$true] %s255
          %261 = dma.hbm_to_vmem [thread:$0]  %s0, 4096, %s256, [#allocation3], 128, 128, 8
        $region16: #{tpu_custom_call.1} parent=11 // pred_fallthru
          _
        // Predicated region
        $region17: #{tpu_custom_call.1} parent=11 // pred_check
          %p262 = pneg %p62
        $region18: #{tpu_custom_call.1} parent=11 // pred_check_branch
          %264 = sbr.rel (%p262) target = $region20
        $region19: #{tpu_custom_call.1} parent=11 // pred_region
          %s266 = ssub.s32 4096, 4096
          %267 = vsyncadd [#allocation6], %s266
          %s268 = sshll.u32 [#allocation5], 4
          %s269 = int_to_ptr.vmem [resolvable:$true] %s268
          %274 = dma.hbm_to_vmem [thread:$0]  %s1, 4096, %s269, [#allocation6], 128, 128, 8
        $region20: #{tpu_custom_call.1} parent=11 // pred_fallthru
          _
        // Predicated region
        $region21: #{tpu_custom_call.1} parent=11 // pred_check
          %p275 = pneg %p83
        $region22: #{tpu_custom_call.1} parent=11 // pred_check_branch
          %277 = sbr.rel (%p275) target = $region24
        $region23: #{tpu_custom_call.1} parent=11 // pred_region
          %s279 = ssub.s32 4096, 4096
          %280 = vsyncadd [#allocation6], %s279
          %s281 = sshll.u32 [#allocation7], 4
          %s282 = int_to_ptr.vmem [resolvable:$true] %s281
          %287 = dma.hbm_to_vmem [thread:$0]  %s2, 4096, %s282, [#allocation6], 128, 128, 8
        $region24: #{tpu_custom_call.1} parent=11 // pred_fallthru
          _
        // Predicated region
        $region25: #{tpu_custom_call.1} parent=11 // pred_check
          %p288 = pneg %p104
        $region26: #{tpu_custom_call.1} parent=11 // pred_check_branch
          %290 = sbr.rel (%p288) target = $region28
        $region27: #{tpu_custom_call.1} parent=11 // pred_region
          %s292 = ssub.s32 4096, 4096
          %293 = vsyncadd [#allocation9], %s292
          %s294 = sshll.u32 [#allocation8], 4
          %s295 = int_to_ptr.vmem [resolvable:$true] %s294
          %300 = dma.hbm_to_vmem [thread:$0]  %s3, 4096, %s295, [#allocation9], 128, 128, 8
        $region28: #{tpu_custom_call.1} parent=11 // pred_fallthru
          _
      $region12: #{tpu_custom_call.1} parent=5 // pred_fallthru
        _
      %p301 = scmp.lt.s32.totalorder %s20, 2
      // Predicated region
      $region29: #{tpu_custom_call.1} parent=5 // pred_check
        %p302 = pneg %p301
      $region30: #{tpu_custom_call.1} parent=5 // pred_check_branch
        %304 = sbr.rel (%p302) target = $region32
      $region31: #{tpu_custom_call.1} parent=5 // pred_region
        // Predicated region
        $region33: #{tpu_custom_call.1} parent=31 // pred_check
          %p305 = pneg %p124
        $region34: #{tpu_custom_call.1} parent=31 // pred_check_branch
          %307 = sbr.rel (%p305) target = $region36
        $region35: #{tpu_custom_call.1} parent=31 // pred_region
          %s308 = sand.u32 %s20, 1
          %s309 = scalar_lea.sflag [#allocation3], %s308
          %s310 = sand.u32 %s114, 1
          %s311 = smul.addr %s310, 256
          %s312 = scalar_lea.vmem [#allocation10], %s311
          %s313 = smul.u32 16, %s20
          %s315 = ssub.s32 4096, 4096
          %316 = vsyncadd %s309, %s315
          %s317 = smul.addr %s313, 2
          %s318 = smul.addr %s317, 128
          %s319 = scalar_lea.hbm %s4, %s318
          %s320 = sshll.u32 %s312, 4
          %s321 = int_to_ptr.vmem [resolvable:$true] %s320
          %326 = dma.hbm_to_vmem [thread:$0]  %s319, 4096, %s321, %s309, 256, 256, 16
        $region36: #{tpu_custom_call.1} parent=31 // pred_fallthru
          _
        // Predicated region
        $region37: #{tpu_custom_call.1} parent=31 // pred_check
          %p327 = pneg %p150
        $region38: #{tpu_custom_call.1} parent=31 // pred_check_branch
          %329 = sbr.rel (%p327) target = $region40
        $region39: #{tpu_custom_call.1} parent=31 // pred_region
          %s330 = sand.u32 %s20, 1
          %s331 = scalar_lea.sflag [#allocation3], %s330
          %s332 = sand.u32 %s140, 1
          %s333 = smul.addr %s332, 256
          %s334 = scalar_lea.vmem [#allocation11], %s333
          %s335 = smul.u32 16, %s20
          %s337 = ssub.s32 4096, 4096
          %338 = vsyncadd %s331, %s337
          %s339 = smul.addr %s335, 2
          %s340 = smul.addr %s339, 128
          %s341 = scalar_lea.hbm %s5, %s340
          %s342 = sshll.u32 %s334, 4
          %s343 = int_to_ptr.vmem [resolvable:$true] %s342
          %348 = dma.hbm_to_vmem [thread:$0]  %s341, 4096, %s343, %s331, 256, 256, 16
        $region40: #{tpu_custom_call.1} parent=31 // pred_fallthru
          _
        // Predicated region
        $region41: #{tpu_custom_call.1} parent=31 // pred_check
          %p349 = pneg %p176
        $region42: #{tpu_custom_call.1} parent=31 // pred_check_branch
          %351 = sbr.rel (%p349) target = $region44
        $region43: #{tpu_custom_call.1} parent=31 // pred_region
          %s352 = sand.u32 %s20, 1
          %s353 = scalar_lea.sflag [#allocation3], %s352
          %s354 = sand.u32 %s166, 1
          %s355 = smul.addr %s354, 256
          %s356 = scalar_lea.vmem [#allocation12], %s355
          %s357 = smul.u32 16, %s20
          %s359 = ssub.s32 4096, 4096
          %360 = vsyncadd %s353, %s359
          %s361 = smul.addr %s357, 2
          %s362 = smul.addr %s361, 128
          %s363 = scalar_lea.hbm %s6, %s362
          %s364 = sshll.u32 %s356, 4
          %s365 = int_to_ptr.vmem [resolvable:$true] %s364
          %370 = dma.hbm_to_vmem [thread:$0]  %s363, 4096, %s365, %s353, 256, 256, 16
        $region44: #{tpu_custom_call.1} parent=31 // pred_fallthru
          _
        // Predicated region
        $region45: #{tpu_custom_call.1} parent=31 // pred_check
          %p371 = pneg %p202
        $region46: #{tpu_custom_call.1} parent=31 // pred_check_branch
          %373 = sbr.rel (%p371) target = $region48
        $region47: #{tpu_custom_call.1} parent=31 // pred_region
          %s374 = sand.u32 %s20, 1
          %s375 = scalar_lea.sflag [#allocation3], %s374
          %s376 = sand.u32 %s192, 1
          %s377 = smul.addr %s376, 256
          %s378 = scalar_lea.vmem [#allocation13], %s377
          %s379 = smul.u32 16, %s20
          %s381 = ssub.s32 4096, 4096
          %382 = vsyncadd %s375, %s381
          %s383 = smul.addr %s379, 2
          %s384 = smul.addr %s383, 128
          %s385 = scalar_lea.hbm %s7, %s384
          %s386 = sshll.u32 %s378, 4
          %s387 = int_to_ptr.vmem [resolvable:$true] %s386
          %392 = dma.hbm_to_vmem [thread:$0]  %s385, 4096, %s387, %s375, 256, 256, 16
        $region48: #{tpu_custom_call.1} parent=31 // pred_fallthru
          _
      $region32: #{tpu_custom_call.1} parent=5 // pred_fallthru
        _
      %p393 = scmp.le.s32.totalorder 1, %s20
      %p394 = scmp.lt.s32.totalorder %s20, 3
      %p395 = pnand %p393, %p394
      %p396 = pneg %p395
      // Predicated region
      $region49: #{tpu_custom_call.1} parent=5 // pred_check
        _
      $region50: #{tpu_custom_call.1} parent=5 // pred_check_branch
        %398 = sbr.rel (%p395) target = $region52
      $region51: #{tpu_custom_call.1} parent=5 // pred_region
        %s399 = ssub.s32 %s20, 1
        // Predicated region
        $region53: #{tpu_custom_call.1} parent=51 // pred_check
          %p400 = pneg %p41
        $region54: #{tpu_custom_call.1} parent=51 // pred_check_branch
          %402 = sbr.rel (%p400) target = $region56
        $region55: #{tpu_custom_call.1} parent=51 // pred_region
          %403 = dma.done [#allocation3], 4096
        $region56: #{tpu_custom_call.1} parent=51 // pred_fallthru
          _
        // Predicated region
        $region57: #{tpu_custom_call.1} parent=51 // pred_check
          %p404 = pneg %p62
        $region58: #{tpu_custom_call.1} parent=51 // pred_check_branch
          %406 = sbr.rel (%p404) target = $region60
        $region59: #{tpu_custom_call.1} parent=51 // pred_region
          %407 = dma.done [#allocation6], 4096
        $region60: #{tpu_custom_call.1} parent=51 // pred_fallthru
          _
        // Predicated region
        $region61: #{tpu_custom_call.1} parent=51 // pred_check
          %p408 = pneg %p83
        $region62: #{tpu_custom_call.1} parent=51 // pred_check_branch
          %410 = sbr.rel (%p408) target = $region64
        $region63: #{tpu_custom_call.1} parent=51 // pred_region
          %411 = dma.done [#allocation6], 4096
        $region64: #{tpu_custom_call.1} parent=51 // pred_fallthru
          _
        // Predicated region
        $region65: #{tpu_custom_call.1} parent=51 // pred_check
          %p412 = pneg %p104
        $region66: #{tpu_custom_call.1} parent=51 // pred_check_branch
          %414 = sbr.rel (%p412) target = $region68
        $region67: #{tpu_custom_call.1} parent=51 // pred_region
          %415 = dma.done [#allocation9], 4096
        $region68: #{tpu_custom_call.1} parent=51 // pred_fallthru
          _
        %s416 = sand.u32 %s25, 1
        %s417 = scalar_lea.sflag [#allocation3], %s416
        %s418 = sand.u32 %s117, 1
        %s419 = smul.addr %s418, 256
        %s420 = scalar_lea.vmem [#allocation10], %s419
        // Predicated region
        $region69: #{tpu_custom_call.1} parent=51 // pred_check
          %p421 = pneg %p130
        $region70: #{tpu_custom_call.1} parent=51 // pred_check_branch
          %423 = sbr.rel (%p421) target = $region72
        $region71: #{tpu_custom_call.1} parent=51 // pred_region
          %424 = dma.done %s417, 4096
        $region72: #{tpu_custom_call.1} parent=51 // pred_fallthru
          _
        %s425 = sand.u32 %s25, 1
        %s426 = scalar_lea.sflag [#allocation3], %s425
        %s427 = sand.u32 %s143, 1
        %s428 = smul.addr %s427, 256
        %s429 = scalar_lea.vmem [#allocation11], %s428
        // Predicated region
        $region73: #{tpu_custom_call.1} parent=51 // pred_check
          %p430 = pneg %p156
        $region74: #{tpu_custom_call.1} parent=51 // pred_check_branch
          %432 = sbr.rel (%p430) target = $region76
        $region75: #{tpu_custom_call.1} parent=51 // pred_region
          %433 = dma.done %s426, 4096
        $region76: #{tpu_custom_call.1} parent=51 // pred_fallthru
          _
        %s434 = sand.u32 %s25, 1
        %s435 = scalar_lea.sflag [#allocation3], %s434
        %s436 = sand.u32 %s169, 1
        %s437 = smul.addr %s436, 256
        %s438 = scalar_lea.vmem [#allocation12], %s437
        // Predicated region
        $region77: #{tpu_custom_call.1} parent=51 // pred_check
          %p439 = pneg %p182
        $region78: #{tpu_custom_call.1} parent=51 // pred_check_branch
          %441 = sbr.rel (%p439) target = $region80
        $region79: #{tpu_custom_call.1} parent=51 // pred_region
          %442 = dma.done %s435, 4096
        $region80: #{tpu_custom_call.1} parent=51 // pred_fallthru
          _
        %s443 = sand.u32 %s25, 1
        %s444 = scalar_lea.sflag [#allocation3], %s443
        %s445 = sand.u32 %s195, 1
        %s446 = smul.addr %s445, 256
        %s447 = scalar_lea.vmem [#allocation13], %s446
        // Predicated region
        $region81: #{tpu_custom_call.1} parent=51 // pred_check
          %p448 = pneg %p208
        $region82: #{tpu_custom_call.1} parent=51 // pred_check_branch
          %450 = sbr.rel (%p448) target = $region84
        $region83: #{tpu_custom_call.1} parent=51 // pred_region
          %451 = dma.done %s444, 4096
        $region84: #{tpu_custom_call.1} parent=51 // pred_fallthru
          _
        %p452 = pneg %p41
        %p453 = pneg %p38
        %p454 = pneg %p62
        %p455 = pneg %p59
        %p456 = pneg %p83
        %p457 = pneg %p80
        %p458 = pneg %p104
        %p459 = pneg %p101
        %s460 = sand.u32 %s25, 1
        %s461 = scalar_lea.sflag [#allocation3], %s460
        %s462 = sand.u32 %s117, 1
        %s463 = smul.addr %s462, 256
        %s464 = scalar_lea.vmem [#allocation10], %s463
        %p465 = pneg %p130
        %p466 = pneg %p127
        %s467 = sand.u32 %s25, 1
        %s468 = scalar_lea.sflag [#allocation3], %s467
        %s469 = sand.u32 %s143, 1
        %s470 = smul.addr %s469, 256
        %s471 = scalar_lea.vmem [#allocation11], %s470
        %p472 = pneg %p156
        %p473 = pneg %p153
        %s474 = sand.u32 %s25, 1
        %s475 = scalar_lea.sflag [#allocation3], %s474
        %s476 = sand.u32 %s169, 1
        %s477 = smul.addr %s476, 256
        %s478 = scalar_lea.vmem [#allocation12], %s477
        %p479 = pneg %p182
        %p480 = pneg %p179
        %s481 = sand.u32 %s25, 1
        %s482 = scalar_lea.sflag [#allocation3], %s481
        %s483 = sand.u32 %s195, 1
        %s484 = smul.addr %s483, 256
        %s485 = scalar_lea.vmem [#allocation13], %s484
        %p486 = pneg %p208
        %p487 = pneg %p205
        %p488 = pneg %p234
        %p489 = pneg %p231
        %s490 = sand.u32 %s221, 1
        %s491 = scalar_lea.sflag [#allocation4], %s490
        %s492 = sand.u32 %s221, 1
        %s493 = smul.addr %s492, 8
        %s494 = scalar_lea.vmem [#allocation14], %s493
        %s495 = smul.u32 16, %s25
        %s496 = smul.u32 16, %s25
        %s497 = smul.u32 16, %s25
        %s498 = smul.u32 16, %s25
        %v499 = vld [vmem:[#allocation2] sm:$0xff]
        %v500 = vld [vmem:[#allocation2 + $0x8] sm:$0xff]
        %v501 = vld [vmem:[#allocation2 + $0x10] sm:$0xff]
        %v502 = vld [vmem:[#allocation2 + $0x18] sm:$0xff]
        %v503 = vld [vmem:[#allocation2 + $0x20] sm:$0xff]
        %v504 = vld [vmem:[#allocation2 + $0x28] sm:$0xff]
        %v505 = vld [vmem:[#allocation2 + $0x30] sm:$0xff]
        %v506 = vld [vmem:[#allocation2 + $0x38] sm:$0xff]
        %v507 = vld [vmem:[#allocation2 + $0x40] sm:$0xff]
        %v508 = vld [vmem:[#allocation2 + $0x48] sm:$0xff]
        %v509 = vld [vmem:[#allocation2 + $0x50] sm:$0xff]
        %v510 = vld [vmem:[#allocation2 + $0x58] sm:$0xff]
        %v511 = vld [vmem:[#allocation2 + $0x60] sm:$0xff]
        %v512 = vld [vmem:[#allocation2 + $0x68] sm:$0xff]
        %v513 = vld [vmem:[#allocation2 + $0x70] sm:$0xff]
        %v514 = vld [vmem:[#allocation2 + $0x78] sm:$0xff]
        %v515 = vld [vmem:[#allocation2 + $0x80] sm:$0xff]
        %v516 = vld [vmem:[#allocation2 + $0x88] sm:$0xff]
        %v517 = vld [vmem:[#allocation2 + $0x90] sm:$0xff]
        %v518 = vld [vmem:[#allocation2 + $0x98] sm:$0xff]
        %v519 = vld [vmem:[#allocation2 + $0xa0] sm:$0xff]
        %v520 = vld [vmem:[#allocation2 + $0xa8] sm:$0xff]
        %v521 = vld [vmem:[#allocation2 + $0xb0] sm:$0xff]
        %v522 = vld [vmem:[#allocation2 + $0xb8] sm:$0xff]
        %v523 = vld [vmem:[#allocation2 + $0xc0] sm:$0xff]
        %v524 = vld [vmem:[#allocation2 + $0xc8] sm:$0xff]
        %v525 = vld [vmem:[#allocation2 + $0xd0] sm:$0xff]
        %v526 = vld [vmem:[#allocation2 + $0xd8] sm:$0xff]
        %v527 = vld [vmem:[#allocation2 + $0xe0] sm:$0xff]
        %v528 = vld [vmem:[#allocation2 + $0xe8] sm:$0xff]
        %v529 = vld [vmem:[#allocation2 + $0xf0] sm:$0xff]
        %v530 = vld [vmem:[#allocation2 + $0xf8] sm:$0xff]
        %v531 = vld [vmem:[#allocation5] sm:$0xff]
        %v532 = vld [vmem:[#allocation5 + $0x8] sm:$0xff]
        %v533 = vld [vmem:[#allocation5 + $0x10] sm:$0xff]
        %v534 = vld [vmem:[#allocation5 + $0x18] sm:$0xff]
        %v535 = vld [vmem:[#allocation5 + $0x20] sm:$0xff]
        %v536 = vld [vmem:[#allocation5 + $0x28] sm:$0xff]
        %v537 = vld [vmem:[#allocation5 + $0x30] sm:$0xff]
        %v538 = vld [vmem:[#allocation5 + $0x38] sm:$0xff]
        %v539 = vld [vmem:[#allocation5 + $0x40] sm:$0xff]
        %v540 = vld [vmem:[#allocation5 + $0x48] sm:$0xff]
        %v541 = vld [vmem:[#allocation5 + $0x50] sm:$0xff]
        %v542 = vld [vmem:[#allocation5 + $0x58] sm:$0xff]
        %v543 = vld [vmem:[#allocation5 + $0x60] sm:$0xff]
        %v544 = vld [vmem:[#allocation5 + $0x68] sm:$0xff]
        %v545 = vld [vmem:[#allocation5 + $0x70] sm:$0xff]
        %v546 = vld [vmem:[#allocation5 + $0x78] sm:$0xff]
        %v547 = vld [vmem:[#allocation5 + $0x80] sm:$0xff]
        %v548 = vld [vmem:[#allocation5 + $0x88] sm:$0xff]
        %v549 = vld [vmem:[#allocation5 + $0x90] sm:$0xff]
        %v550 = vld [vmem:[#allocation5 + $0x98] sm:$0xff]
        %v551 = vld [vmem:[#allocation5 + $0xa0] sm:$0xff]
        %v552 = vld [vmem:[#allocation5 + $0xa8] sm:$0xff]
        %v553 = vld [vmem:[#allocation5 + $0xb0] sm:$0xff]
        %v554 = vld [vmem:[#allocation5 + $0xb8] sm:$0xff]
        %v555 = vld [vmem:[#allocation5 + $0xc0] sm:$0xff]
        %v556 = vld [vmem:[#allocation5 + $0xc8] sm:$0xff]
        %v557 = vld [vmem:[#allocation5 + $0xd0] sm:$0xff]
        %v558 = vld [vmem:[#allocation5 + $0xd8] sm:$0xff]
        %v559 = vld [vmem:[#allocation5 + $0xe0] sm:$0xff]
        %v560 = vld [vmem:[#allocation5 + $0xe8] sm:$0xff]
        %v561 = vld [vmem:[#allocation5 + $0xf0] sm:$0xff]
        %v562 = vld [vmem:[#allocation5 + $0xf8] sm:$0xff]
        %v563 = vld [vmem:[#allocation7] sm:$0xff]
        %v564 = vld [vmem:[#allocation7 + $0x8] sm:$0xff]
        %v565 = vld [vmem:[#allocation7 + $0x10] sm:$0xff]
        %v566 = vld [vmem:[#allocation7 + $0x18] sm:$0xff]
        %v567 = vld [vmem:[#allocation7 + $0x20] sm:$0xff]
        %v568 = vld [vmem:[#allocation7 + $0x28] sm:$0xff]
        %v569 = vld [vmem:[#allocation7 + $0x30] sm:$0xff]
        %v570 = vld [vmem:[#allocation7 + $0x38] sm:$0xff]
        %v571 = vld [vmem:[#allocation7 + $0x40] sm:$0xff]
        %v572 = vld [vmem:[#allocation7 + $0x48] sm:$0xff]
        %v573 = vld [vmem:[#allocation7 + $0x50] sm:$0xff]
        %v574 = vld [vmem:[#allocation7 + $0x58] sm:$0xff]
        %v575 = vld [vmem:[#allocation7 + $0x60] sm:$0xff]
        %v576 = vld [vmem:[#allocation7 + $0x68] sm:$0xff]
        %v577 = vld [vmem:[#allocation7 + $0x70] sm:$0xff]
        %v578 = vld [vmem:[#allocation7 + $0x78] sm:$0xff]
        %v579 = vld [vmem:[#allocation7 + $0x80] sm:$0xff]
        %v580 = vld [vmem:[#allocation7 + $0x88] sm:$0xff]
        %v581 = vld [vmem:[#allocation7 + $0x90] sm:$0xff]
        %v582 = vld [vmem:[#allocation7 + $0x98] sm:$0xff]
        %v583 = vld [vmem:[#allocation7 + $0xa0] sm:$0xff]
        %v584 = vld [vmem:[#allocation7 + $0xa8] sm:$0xff]
        %v585 = vld [vmem:[#allocation7 + $0xb0] sm:$0xff]
        %v586 = vld [vmem:[#allocation7 + $0xb8] sm:$0xff]
        %v587 = vld [vmem:[#allocation7 + $0xc0] sm:$0xff]
        %v588 = vld [vmem:[#allocation7 + $0xc8] sm:$0xff]
        %v589 = vld [vmem:[#allocation7 + $0xd0] sm:$0xff]
        %v590 = vld [vmem:[#allocation7 + $0xd8] sm:$0xff]
        %v591 = vld [vmem:[#allocation7 + $0xe0] sm:$0xff]
        %v592 = vld [vmem:[#allocation7 + $0xe8] sm:$0xff]
        %v593 = vld [vmem:[#allocation7 + $0xf0] sm:$0xff]
        %v594 = vld [vmem:[#allocation7 + $0xf8] sm:$0xff]
        %v595 = vld [vmem:[#allocation8] sm:$0xff]
        %v596 = vld [vmem:[#allocation8 + $0x8] sm:$0xff]
        %v597 = vld [vmem:[#allocation8 + $0x10] sm:$0xff]
        %v598 = vld [vmem:[#allocation8 + $0x18] sm:$0xff]
        %v599 = vld [vmem:[#allocation8 + $0x20] sm:$0xff]
        %v600 = vld [vmem:[#allocation8 + $0x28] sm:$0xff]
        %v601 = vld [vmem:[#allocation8 + $0x30] sm:$0xff]
        %v602 = vld [vmem:[#allocation8 + $0x38] sm:$0xff]
        %v603 = vld [vmem:[#allocation8 + $0x40] sm:$0xff]
        %v604 = vld [vmem:[#allocation8 + $0x48] sm:$0xff]
        %v605 = vld [vmem:[#allocation8 + $0x50] sm:$0xff]
        %v606 = vld [vmem:[#allocation8 + $0x58] sm:$0xff]
        %v607 = vld [vmem:[#allocation8 + $0x60] sm:$0xff]
        %v608 = vld [vmem:[#allocation8 + $0x68] sm:$0xff]
        %v609 = vld [vmem:[#allocation8 + $0x70] sm:$0xff]
        %v610 = vld [vmem:[#allocation8 + $0x78] sm:$0xff]
        %v611 = vld [vmem:[#allocation8 + $0x80] sm:$0xff]
        %v612 = vld [vmem:[#allocation8 + $0x88] sm:$0xff]
        %v613 = vld [vmem:[#allocation8 + $0x90] sm:$0xff]
        %v614 = vld [vmem:[#allocation8 + $0x98] sm:$0xff]
        %v615 = vld [vmem:[#allocation8 + $0xa0] sm:$0xff]
        %v616 = vld [vmem:[#allocation8 + $0xa8] sm:$0xff]
        %v617 = vld [vmem:[#allocation8 + $0xb0] sm:$0xff]
        %v618 = vld [vmem:[#allocation8 + $0xb8] sm:$0xff]
        %v619 = vld [vmem:[#allocation8 + $0xc0] sm:$0xff]
        %v620 = vld [vmem:[#allocation8 + $0xc8] sm:$0xff]
        %v621 = vld [vmem:[#allocation8 + $0xd0] sm:$0xff]
        %v622 = vld [vmem:[#allocation8 + $0xd8] sm:$0xff]
        %v623 = vld [vmem:[#allocation8 + $0xe0] sm:$0xff]
        %v624 = vld [vmem:[#allocation8 + $0xe8] sm:$0xff]
        %v625 = vld [vmem:[#allocation8 + $0xf0] sm:$0xff]
        %v626 = vld [vmem:[#allocation8 + $0xf8] sm:$0xff]
        %s627 = smul.u32 %s25, 128
        %s628 = scalar_lea.vmem [#allocation2], %s627
        %v629 = vld [vmem:[%s628] sm:$0xff]
        %v630 = vld [vmem:[%s628 + $0x8] sm:$0xff]
        %v631 = vld [vmem:[%s628 + $0x10] sm:$0xff]
        %v632 = vld [vmem:[%s628 + $0x18] sm:$0xff]
        %v633 = vld [vmem:[%s628 + $0x20] sm:$0xff]
        %v634 = vld [vmem:[%s628 + $0x28] sm:$0xff]
        %v635 = vld [vmem:[%s628 + $0x30] sm:$0xff]
        %v636 = vld [vmem:[%s628 + $0x38] sm:$0xff]
        %v637 = vld [vmem:[%s628 + $0x40] sm:$0xff]
        %v638 = vld [vmem:[%s628 + $0x48] sm:$0xff]
        %v639 = vld [vmem:[%s628 + $0x50] sm:$0xff]
        %v640 = vld [vmem:[%s628 + $0x58] sm:$0xff]
        %v641 = vld [vmem:[%s628 + $0x60] sm:$0xff]
        %v642 = vld [vmem:[%s628 + $0x68] sm:$0xff]
        %v643 = vld [vmem:[%s628 + $0x70] sm:$0xff]
        %v644 = vld [vmem:[%s628 + $0x78] sm:$0xff]
        %s645 = scalar_lea.vmem [#allocation5], %s627
        %v646 = vld [vmem:[%s645] sm:$0xff]
        %v647 = vld [vmem:[%s645 + $0x8] sm:$0xff]
        %v648 = vld [vmem:[%s645 + $0x10] sm:$0xff]
        %v649 = vld [vmem:[%s645 + $0x18] sm:$0xff]
        %v650 = vld [vmem:[%s645 + $0x20] sm:$0xff]
        %v651 = vld [vmem:[%s645 + $0x28] sm:$0xff]
        %v652 = vld [vmem:[%s645 + $0x30] sm:$0xff]
        %v653 = vld [vmem:[%s645 + $0x38] sm:$0xff]
        %v654 = vld [vmem:[%s645 + $0x40] sm:$0xff]
        %v655 = vld [vmem:[%s645 + $0x48] sm:$0xff]
        %v656 = vld [vmem:[%s645 + $0x50] sm:$0xff]
        %v657 = vld [vmem:[%s645 + $0x58] sm:$0xff]
        %v658 = vld [vmem:[%s645 + $0x60] sm:$0xff]
        %v659 = vld [vmem:[%s645 + $0x68] sm:$0xff]
        %v660 = vld [vmem:[%s645 + $0x70] sm:$0xff]
        %v661 = vld [vmem:[%s645 + $0x78] sm:$0xff]
        %s662 = scalar_lea.vmem [#allocation7], %s627
        %v663 = vld [vmem:[%s662] sm:$0xff]
        %v664 = vld [vmem:[%s662 + $0x8] sm:$0xff]
        %v665 = vld [vmem:[%s662 + $0x10] sm:$0xff]
        %v666 = vld [vmem:[%s662 + $0x18] sm:$0xff]
        %v667 = vld [vmem:[%s662 + $0x20] sm:$0xff]
        %v668 = vld [vmem:[%s662 + $0x28] sm:$0xff]
        %v669 = vld [vmem:[%s662 + $0x30] sm:$0xff]
        %v670 = vld [vmem:[%s662 + $0x38] sm:$0xff]
        %v671 = vld [vmem:[%s662 + $0x40] sm:$0xff]
        %v672 = vld [vmem:[%s662 + $0x48] sm:$0xff]
        %v673 = vld [vmem:[%s662 + $0x50] sm:$0xff]
        %v674 = vld [vmem:[%s662 + $0x58] sm:$0xff]
        %v675 = vld [vmem:[%s662 + $0x60] sm:$0xff]
        %v676 = vld [vmem:[%s662 + $0x68] sm:$0xff]
        %v677 = vld [vmem:[%s662 + $0x70] sm:$0xff]
        %v678 = vld [vmem:[%s662 + $0x78] sm:$0xff]
        %s679 = scalar_lea.vmem [#allocation8], %s627
        %v680 = vld [vmem:[%s679] sm:$0xff]
        %v681 = vld [vmem:[%s679 + $0x8] sm:$0xff]
        %v682 = vld [vmem:[%s679 + $0x10] sm:$0xff]
        %v683 = vld [vmem:[%s679 + $0x18] sm:$0xff]
        %v684 = vld [vmem:[%s679 + $0x20] sm:$0xff]
        %v685 = vld [vmem:[%s679 + $0x28] sm:$0xff]
        %v686 = vld [vmem:[%s679 + $0x30] sm:$0xff]
        %v687 = vld [vmem:[%s679 + $0x38] sm:$0xff]
        %v688 = vld [vmem:[%s679 + $0x40] sm:$0xff]
        %v689 = vld [vmem:[%s679 + $0x48] sm:$0xff]
        %v690 = vld [vmem:[%s679 + $0x50] sm:$0xff]
        %v691 = vld [vmem:[%s679 + $0x58] sm:$0xff]
        %v692 = vld [vmem:[%s679 + $0x60] sm:$0xff]
        %v693 = vld [vmem:[%s679 + $0x68] sm:$0xff]
        %v694 = vld [vmem:[%s679 + $0x70] sm:$0xff]
        %v695 = vld [vmem:[%s679 + $0x78] sm:$0xff]
        %v696 = vld [vmem:[%s420] sm:$0xff]
        %v697 = vld [vmem:[%s420 + $0x8] sm:$0xff]
        %v698 = vld [vmem:[%s420 + $0x10] sm:$0xff]
        %v699 = vld [vmem:[%s420 + $0x18] sm:$0xff]
        %v700 = vld [vmem:[%s420 + $0x20] sm:$0xff]
        %v701 = vld [vmem:[%s420 + $0x28] sm:$0xff]
        %v702 = vld [vmem:[%s420 + $0x30] sm:$0xff]
        %v703 = vld [vmem:[%s420 + $0x38] sm:$0xff]
        %v704 = vld [vmem:[%s420 + $0x40] sm:$0xff]
        %v705 = vld [vmem:[%s420 + $0x48] sm:$0xff]
        %v706 = vld [vmem:[%s420 + $0x50] sm:$0xff]
        %v707 = vld [vmem:[%s420 + $0x58] sm:$0xff]
        %v708 = vld [vmem:[%s420 + $0x60] sm:$0xff]
        %v709 = vld [vmem:[%s420 + $0x68] sm:$0xff]
        %v710 = vld [vmem:[%s420 + $0x70] sm:$0xff]
        %v711 = vld [vmem:[%s420 + $0x78] sm:$0xff]
        %v712 = vld [vmem:[%s420 + $0x80] sm:$0xff]
        %v713 = vld [vmem:[%s420 + $0x88] sm:$0xff]
        %v714 = vld [vmem:[%s420 + $0x90] sm:$0xff]
        %v715 = vld [vmem:[%s420 + $0x98] sm:$0xff]
        %v716 = vld [vmem:[%s420 + $0xa0] sm:$0xff]
        %v717 = vld [vmem:[%s420 + $0xa8] sm:$0xff]
        %v718 = vld [vmem:[%s420 + $0xb0] sm:$0xff]
        %v719 = vld [vmem:[%s420 + $0xb8] sm:$0xff]
        %v720 = vld [vmem:[%s420 + $0xc0] sm:$0xff]
        %v721 = vld [vmem:[%s420 + $0xc8] sm:$0xff]
        %v722 = vld [vmem:[%s420 + $0xd0] sm:$0xff]
        %v723 = vld [vmem:[%s420 + $0xd8] sm:$0xff]
        %v724 = vld [vmem:[%s420 + $0xe0] sm:$0xff]
        %v725 = vld [vmem:[%s420 + $0xe8] sm:$0xff]
        %v726 = vld [vmem:[%s420 + $0xf0] sm:$0xff]
        %v727 = vld [vmem:[%s420 + $0xf8] sm:$0xff]
        %728 = vmatprep.subr.mxu0 0.0
        %729 = vmatpush1.xpose.msra.mxu0 %v546
        %730 = vmatprep.subr.mxu0 0.0
        %731 = vmatpush1.xpose.msra.mxu0 %v545
        %732 = vmatprep.subr.mxu0 0.0
        %733 = vmatpush1.xpose.msra.mxu0 %v544
        %734 = vmatprep.subr.mxu0 0.0
        %735 = vmatpush1.xpose.msra.mxu0 %v543
        %736 = vmatprep.subr.mxu0 0.0
        %737 = vmatpush1.xpose.msra.mxu0 %v542
        %738 = vmatprep.subr.mxu0 0.0
        %739 = vmatpush1.xpose.msra.mxu0 %v541
        %740 = vmatprep.subr.mxu0 0.0
        %741 = vmatpush1.xpose.msra.mxu0 %v540
        %742 = vmatprep.subr.mxu0 0.0
        %743 = vmatpush1.xpose.msra.mxu0 %v539
        %744 = vmatprep.subr.mxu0 0.0
        %745 = vmatpush1.xpose.msra.mxu0 %v538
        %746 = vmatprep.subr.mxu0 0.0
        %747 = vmatpush1.xpose.msra.mxu0 %v537
        %748 = vmatprep.subr.mxu0 0.0
        %749 = vmatpush1.xpose.msra.mxu0 %v536
        %750 = vmatprep.subr.mxu0 0.0
        %751 = vmatpush1.xpose.msra.mxu0 %v535
        %752 = vmatprep.subr.mxu0 0.0
        %753 = vmatpush1.xpose.msra.mxu0 %v534
        %754 = vmatprep.subr.mxu0 0.0
        %755 = vmatpush1.xpose.msra.mxu0 %v533
        %756 = vmatprep.subr.mxu0 0.0
        %757 = vmatpush1.xpose.msra.mxu0 %v532
        %758 = vmatprep.subr.mxu0 0.0
        %759 = vmatpush1.xpose.msra.mxu0 %v531
        %760 = vmatprep.subr.mxu0 0.0
        %761 = vmatpush2.xpose.msra.mxu0 %v562
        %762 = vmatprep.subr.mxu0 0.0
        %763 = vmatpush2.xpose.msra.mxu0 %v561
        %764 = vmatprep.subr.mxu0 0.0
        %765 = vmatpush2.xpose.msra.mxu0 %v560
        %766 = vmatprep.subr.mxu0 0.0
        %767 = vmatpush2.xpose.msra.mxu0 %v559
        %768 = vmatprep.subr.mxu0 0.0
        %769 = vmatpush2.xpose.msra.mxu0 %v558
        %770 = vmatprep.subr.mxu0 0.0
        %771 = vmatpush2.xpose.msra.mxu0 %v557
        %772 = vmatprep.subr.mxu0 0.0
        %773 = vmatpush2.xpose.msra.mxu0 %v556
        %774 = vmatprep.subr.mxu0 0.0
        %775 = vmatpush2.xpose.msra.mxu0 %v555
        %776 = vmatprep.subr.mxu0 0.0
        %777 = vmatpush2.xpose.msra.mxu0 %v554
        %778 = vmatprep.subr.mxu0 0.0
        %779 = vmatpush2.xpose.msra.mxu0 %v553
        %780 = vmatprep.subr.mxu0 0.0
        %781 = vmatpush2.xpose.msra.mxu0 %v552
        %782 = vmatprep.subr.mxu0 0.0
        %783 = vmatpush2.xpose.msra.mxu0 %v551
        %784 = vmatprep.subr.mxu0 0.0
        %785 = vmatpush2.xpose.msra.mxu0 %v550
        %786 = vmatprep.subr.mxu0 0.0
        %787 = vmatpush2.xpose.msra.mxu0 %v549
        %788 = vmatprep.subr.mxu0 0.0
        %789 = vmatpush2.xpose.msra.mxu0 %v548
        %790 = vmatprep.subr.mxu0 0.0
        %791 = vmatpush2.xpose.msra.mxu0 %v547
        %792 = vmatprep.mubr.f32.mxu0 0.0
        %793 = vmatmul.mubr.f32.gmra.mxu0 %v629
        %v794 = vpop.f32.mrf.mxu0
        %v795 = vadd.f32 0.0, %v794
        %v796 = vpop.f32.mrf.mxu0
        %v797 = vadd.f32 0.0, %v796
        %798 = vmatprep.mubr.f32.mxu0 0.0
        %799 = vmatmul.mubr.f32.gmra.mxu0 %v630
        %v800 = vpop.f32.mrf.mxu0
        %v801 = vadd.f32 0.0, %v800
        %v802 = vpop.f32.mrf.mxu0
        %v803 = vadd.f32 0.0, %v802
        %804 = vmatprep.mubr.f32.mxu0 0.0
        %805 = vmatmul.mubr.f32.gmra.mxu0 %v631
        %v806 = vpop.f32.mrf.mxu0
        %v807 = vadd.f32 0.0, %v806
        %v808 = vpop.f32.mrf.mxu0
        %v809 = vadd.f32 0.0, %v808
        %810 = vmatprep.mubr.f32.mxu0 0.0
        %811 = vmatmul.mubr.f32.gmra.mxu0 %v632
        %v812 = vpop.f32.mrf.mxu0
        %v813 = vadd.f32 0.0, %v812
        %v814 = vpop.f32.mrf.mxu0
        %v815 = vadd.f32 0.0, %v814
        %816 = vmatprep.mubr.f32.mxu0 0.0
        %817 = vmatmul.mubr.f32.gmra.mxu0 %v633
        %v818 = vpop.f32.mrf.mxu0
        %v819 = vadd.f32 0.0, %v818
        %v820 = vpop.f32.mrf.mxu0
        %v821 = vadd.f32 0.0, %v820
        %822 = vmatprep.mubr.f32.mxu0 0.0
        %823 = vmatmul.mubr.f32.gmra.mxu0 %v634
        %v824 = vpop.f32.mrf.mxu0
        %v825 = vadd.f32 0.0, %v824
        %v826 = vpop.f32.mrf.mxu0
        %v827 = vadd.f32 0.0, %v826
        %828 = vmatprep.mubr.f32.mxu0 0.0
        %829 = vmatmul.mubr.f32.gmra.mxu0 %v635
        %v830 = vpop.f32.mrf.mxu0
        %v831 = vadd.f32 0.0, %v830
        %v832 = vpop.f32.mrf.mxu0
        %v833 = vadd.f32 0.0, %v832
        %834 = vmatprep.mubr.f32.mxu0 0.0
        %835 = vmatmul.mubr.f32.gmra.mxu0 %v636
        %v836 = vpop.f32.mrf.mxu0
        %v837 = vadd.f32 0.0, %v836
        %v838 = vpop.f32.mrf.mxu0
        %v839 = vadd.f32 0.0, %v838
        %840 = vmatprep.mubr.f32.mxu0 0.0
        %841 = vmatmul.mubr.f32.gmra.mxu0 %v637
        %v842 = vpop.f32.mrf.mxu0
        %v843 = vadd.f32 0.0, %v842
        %v844 = vpop.f32.mrf.mxu0
        %v845 = vadd.f32 0.0, %v844
        %846 = vmatprep.mubr.f32.mxu0 0.0
        %847 = vmatmul.mubr.f32.gmra.mxu0 %v638
        %v848 = vpop.f32.mrf.mxu0
        %v849 = vadd.f32 0.0, %v848
        %v850 = vpop.f32.mrf.mxu0
        %v851 = vadd.f32 0.0, %v850
        %852 = vmatprep.mubr.f32.mxu0 0.0
        %853 = vmatmul.mubr.f32.gmra.mxu0 %v639
        %v854 = vpop.f32.mrf.mxu0
        %v855 = vadd.f32 0.0, %v854
        %v856 = vpop.f32.mrf.mxu0
        %v857 = vadd.f32 0.0, %v856
        %858 = vmatprep.mubr.f32.mxu0 0.0
        %859 = vmatmul.mubr.f32.gmra.mxu0 %v640
        %v860 = vpop.f32.mrf.mxu0
        %v861 = vadd.f32 0.0, %v860
        %v862 = vpop.f32.mrf.mxu0
        %v863 = vadd.f32 0.0, %v862
        %864 = vmatprep.mubr.f32.mxu0 0.0
        %865 = vmatmul.mubr.f32.gmra.mxu0 %v641
        %v866 = vpop.f32.mrf.mxu0
        %v867 = vadd.f32 0.0, %v866
        %v868 = vpop.f32.mrf.mxu0
        %v869 = vadd.f32 0.0, %v868
        %870 = vmatprep.mubr.f32.mxu0 0.0
        %871 = vmatmul.mubr.f32.gmra.mxu0 %v642
        %v872 = vpop.f32.mrf.mxu0
        %v873 = vadd.f32 0.0, %v872
        %v874 = vpop.f32.mrf.mxu0
        %v875 = vadd.f32 0.0, %v874
        %876 = vmatprep.mubr.f32.mxu0 0.0
        %877 = vmatmul.mubr.f32.gmra.mxu0 %v643
        %v878 = vpop.f32.mrf.mxu0
        %v879 = vadd.f32 0.0, %v878
        %v880 = vpop.f32.mrf.mxu0
        %v881 = vadd.f32 0.0, %v880
        %882 = vmatprep.mubr.f32.mxu0 0.0
        %883 = vmatmul.mubr.f32.gmra.mxu0 %v644
        %v884 = vpop.f32.mrf.mxu0
        %v885 = vadd.f32 0.0, %v884
        %v886 = vpop.f32.mrf.mxu0
        %v887 = vadd.f32 0.0, %v886
        %888 = vdwg.mxu0
        %v889 = vmax.f32 %v795, %v797
        %890 = vmax.xlane.f32.xlu0 %v889
        %v891 = vpop.xlane.xlu0 %890
        %v892 = vmax.f32 %v801, %v803
        %893 = vmax.xlane.f32.xlu0 %v892
        %v894 = vpop.xlane.xlu0 %893
        %v895 = vmax.f32 %v807, %v809
        %896 = vmax.xlane.f32.xlu0 %v895
        %v897 = vpop.xlane.xlu0 %896
        %v898 = vmax.f32 %v813, %v815
        %899 = vmax.xlane.f32.xlu0 %v898
        %v900 = vpop.xlane.xlu0 %899
        %v901 = vmax.f32 %v819, %v821
        %902 = vmax.xlane.f32.xlu0 %v901
        %v903 = vpop.xlane.xlu0 %902
        %v904 = vmax.f32 %v825, %v827
        %905 = vmax.xlane.f32.xlu0 %v904
        %v906 = vpop.xlane.xlu0 %905
        %v907 = vmax.f32 %v831, %v833
        %908 = vmax.xlane.f32.xlu0 %v907
        %v909 = vpop.xlane.xlu0 %908
        %v910 = vmax.f32 %v837, %v839
        %911 = vmax.xlane.f32.xlu0 %v910
        %v912 = vpop.xlane.xlu0 %911
        %v913 = vmax.f32 %v843, %v845
        %914 = vmax.xlane.f32.xlu0 %v913
        %v915 = vpop.xlane.xlu0 %914
        %v916 = vmax.f32 %v849, %v851
        %917 = vmax.xlane.f32.xlu0 %v916
        %v918 = vpop.xlane.xlu0 %917
        %v919 = vmax.f32 %v855, %v857
        %920 = vmax.xlane.f32.xlu0 %v919
        %v921 = vpop.xlane.xlu0 %920
        %v922 = vmax.f32 %v861, %v863
        %923 = vmax.xlane.f32.xlu0 %v922
        %v924 = vpop.xlane.xlu0 %923
        %v925 = vmax.f32 %v867, %v869
        %926 = vmax.xlane.f32.xlu0 %v925
        %v927 = vpop.xlane.xlu0 %926
        %v928 = vmax.f32 %v873, %v875
        %929 = vmax.xlane.f32.xlu0 %v928
        %v930 = vpop.xlane.xlu0 %929
        %v931 = vmax.f32 %v879, %v881
        %932 = vmax.xlane.f32.xlu0 %v931
        %v933 = vpop.xlane.xlu0 %932
        %v934 = vmax.f32 %v885, %v887
        %935 = vmax.xlane.f32.xlu0 %v934
        %v936 = vpop.xlane.xlu0 %935
        %v937 = vsub.f32 %v795, %v891
        %v938 = vsub.f32 %v797, %v891
        %v939 = vsub.f32 %v801, %v894
        %v940 = vsub.f32 %v803, %v894
        %v941 = vsub.f32 %v807, %v897
        %v942 = vsub.f32 %v809, %v897
        %v943 = vsub.f32 %v813, %v900
        %v944 = vsub.f32 %v815, %v900
        %v945 = vsub.f32 %v819, %v903
        %v946 = vsub.f32 %v821, %v903
        %v947 = vsub.f32 %v825, %v906
        %v948 = vsub.f32 %v827, %v906
        %v949 = vsub.f32 %v831, %v909
        %v950 = vsub.f32 %v833, %v909
        %v951 = vsub.f32 %v837, %v912
        %v952 = vsub.f32 %v839, %v912
        %v953 = vsub.f32 %v843, %v915
        %v954 = vsub.f32 %v845, %v915
        %v955 = vsub.f32 %v849, %v918
        %v956 = vsub.f32 %v851, %v918
        %v957 = vsub.f32 %v855, %v921
        %v958 = vsub.f32 %v857, %v921
        %v959 = vsub.f32 %v861, %v924
        %v960 = vsub.f32 %v863, %v924
        %v961 = vsub.f32 %v867, %v927
        %v962 = vsub.f32 %v869, %v927
        %v963 = vsub.f32 %v873, %v930
        %v964 = vsub.f32 %v875, %v930
        %v965 = vsub.f32 %v879, %v933
        %v966 = vsub.f32 %v881, %v933
        %v967 = vsub.f32 %v885, %v936
        %v968 = vsub.f32 %v887, %v936
        %v969 = vmul.f32 %v937, 1.442695
        %v970 = vpow.pop %v969
        %v971 = vmul.f32 %v938, 1.442695
        %v972 = vpow.pop %v971
        %v973 = vmul.f32 %v939, 1.442695
        %v974 = vpow.pop %v973
        %v975 = vmul.f32 %v940, 1.442695
        %v976 = vpow.pop %v975
        %v977 = vmul.f32 %v941, 1.442695
        %v978 = vpow.pop %v977
        %v979 = vmul.f32 %v942, 1.442695
        %v980 = vpow.pop %v979
        %v981 = vmul.f32 %v943, 1.442695
        %v982 = vpow.pop %v981
        %v983 = vmul.f32 %v944, 1.442695
        %v984 = vpow.pop %v983
        %v985 = vmul.f32 %v945, 1.442695
        %v986 = vpow.pop %v985
        %v987 = vmul.f32 %v946, 1.442695
        %v988 = vpow.pop %v987
        %v989 = vmul.f32 %v947, 1.442695
        %v990 = vpow.pop %v989
        %v991 = vmul.f32 %v948, 1.442695
        %v992 = vpow.pop %v991
        %v993 = vmul.f32 %v949, 1.442695
        %v994 = vpow.pop %v993
        %v995 = vmul.f32 %v950, 1.442695
        %v996 = vpow.pop %v995
        %v997 = vmul.f32 %v951, 1.442695
        %v998 = vpow.pop %v997
        %v999 = vmul.f32 %v952, 1.442695
        %v1000 = vpow.pop %v999
        %v1001 = vmul.f32 %v953, 1.442695
        %v1002 = vpow.pop %v1001
        %v1003 = vmul.f32 %v954, 1.442695
        %v1004 = vpow.pop %v1003
        %v1005 = vmul.f32 %v955, 1.442695
        %v1006 = vpow.pop %v1005
        %v1007 = vmul.f32 %v956, 1.442695
        %v1008 = vpow.pop %v1007
        %v1009 = vmul.f32 %v957, 1.442695
        %v1010 = vpow.pop %v1009
        %v1011 = vmul.f32 %v958, 1.442695
        %v1012 = vpow.pop %v1011
        %v1013 = vmul.f32 %v959, 1.442695
        %v1014 = vpow.pop %v1013
        %v1015 = vmul.f32 %v960, 1.442695
        %v1016 = vpow.pop %v1015
        %v1017 = vmul.f32 %v961, 1.442695
        %v1018 = vpow.pop %v1017
        %v1019 = vmul.f32 %v962, 1.442695
        %v1020 = vpow.pop %v1019
        %v1021 = vmul.f32 %v963, 1.442695
        %v1022 = vpow.pop %v1021
        %v1023 = vmul.f32 %v964, 1.442695
        %v1024 = vpow.pop %v1023
        %v1025 = vmul.f32 %v965, 1.442695
        %v1026 = vpow.pop %v1025
        %v1027 = vmul.f32 %v966, 1.442695
        %v1028 = vpow.pop %v1027
        %v1029 = vmul.f32 %v967, 1.442695
        %v1030 = vpow.pop %v1029
        %v1031 = vmul.f32 %v968, 1.442695
        %v1032 = vpow.pop %v1031
        %v1033 = vadd.f32 %v970, %v972
        %1034 = vadd.xlane.f32.xlu0 %v1033
        %v1035 = vpop.xlane.xlu0 %1034
        %v1036 = vadd.f32 %v974, %v976
        %1037 = vadd.xlane.f32.xlu0 %v1036
        %v1038 = vpop.xlane.xlu0 %1037
        %v1039 = vadd.f32 %v978, %v980
        %1040 = vadd.xlane.f32.xlu0 %v1039
        %v1041 = vpop.xlane.xlu0 %1040
        %v1042 = vadd.f32 %v982, %v984
        %1043 = vadd.xlane.f32.xlu0 %v1042
        %v1044 = vpop.xlane.xlu0 %1043
        %v1045 = vadd.f32 %v986, %v988
        %1046 = vadd.xlane.f32.xlu0 %v1045
        %v1047 = vpop.xlane.xlu0 %1046
        %v1048 = vadd.f32 %v990, %v992
        %1049 = vadd.xlane.f32.xlu0 %v1048
        %v1050 = vpop.xlane.xlu0 %1049
        %v1051 = vadd.f32 %v994, %v996
        %1052 = vadd.xlane.f32.xlu0 %v1051
        %v1053 = vpop.xlane.xlu0 %1052
        %v1054 = vadd.f32 %v998, %v1000
        %1055 = vadd.xlane.f32.xlu0 %v1054
        %v1056 = vpop.xlane.xlu0 %1055
        %v1057 = vadd.f32 %v1002, %v1004
        %1058 = vadd.xlane.f32.xlu0 %v1057
        %v1059 = vpop.xlane.xlu0 %1058
        %v1060 = vadd.f32 %v1006, %v1008
        %1061 = vadd.xlane.f32.xlu0 %v1060
        %v1062 = vpop.xlane.xlu0 %1061
        %v1063 = vadd.f32 %v1010, %v1012
        %1064 = vadd.xlane.f32.xlu0 %v1063
        %v1065 = vpop.xlane.xlu0 %1064
        %v1066 = vadd.f32 %v1014, %v1016
        %1067 = vadd.xlane.f32.xlu0 %v1066
        %v1068 = vpop.xlane.xlu0 %1067
        %v1069 = vadd.f32 %v1018, %v1020
        %1070 = vadd.xlane.f32.xlu0 %v1069
        %v1071 = vpop.xlane.xlu0 %1070
        %v1072 = vadd.f32 %v1022, %v1024
        %1073 = vadd.xlane.f32.xlu0 %v1072
        %v1074 = vpop.xlane.xlu0 %1073
        %v1075 = vadd.f32 %v1026, %v1028
        %1076 = vadd.xlane.f32.xlu0 %v1075
        %v1077 = vpop.xlane.xlu0 %1076
        %v1078 = vadd.f32 %v1030, %v1032
        %1079 = vadd.xlane.f32.xlu0 %v1078
        %v1080 = vpop.xlane.xlu0 %1079
        %v1081 = vrcp.pop %v1035
        %v1082 = vrcp.pop %v1038
        %v1083 = vrcp.pop %v1041
        %v1084 = vrcp.pop %v1044
        %v1085 = vrcp.pop %v1047
        %v1086 = vrcp.pop %v1050
        %v1087 = vrcp.pop %v1053
        %v1088 = vrcp.pop %v1056
        %v1089 = vrcp.pop %v1059
        %v1090 = vrcp.pop %v1062
        %v1091 = vrcp.pop %v1065
        %v1092 = vrcp.pop %v1068
        %v1093 = vrcp.pop %v1071
        %v1094 = vrcp.pop %v1074
        %v1095 = vrcp.pop %v1077
        %v1096 = vrcp.pop %v1080
        %v1097 = vmul.f32 %v970, %v1081
        %v1098 = vmul.f32 %v972, %v1081
        %v1099 = vmul.f32 %v974, %v1082
        %v1100 = vmul.f32 %v976, %v1082
        %v1101 = vmul.f32 %v978, %v1083
        %v1102 = vmul.f32 %v980, %v1083
        %v1103 = vmul.f32 %v982, %v1084
        %v1104 = vmul.f32 %v984, %v1084
        %v1105 = vmul.f32 %v986, %v1085
        %v1106 = vmul.f32 %v988, %v1085
        %v1107 = vmul.f32 %v990, %v1086
        %v1108 = vmul.f32 %v992, %v1086
        %v1109 = vmul.f32 %v994, %v1087
        %v1110 = vmul.f32 %v996, %v1087
        %v1111 = vmul.f32 %v998, %v1088
        %v1112 = vmul.f32 %v1000, %v1088
        %v1113 = vmul.f32 %v1002, %v1089
        %v1114 = vmul.f32 %v1004, %v1089
        %v1115 = vmul.f32 %v1006, %v1090
        %v1116 = vmul.f32 %v1008, %v1090
        %v1117 = vmul.f32 %v1010, %v1091
        %v1118 = vmul.f32 %v1012, %v1091
        %v1119 = vmul.f32 %v1014, %v1092
        %v1120 = vmul.f32 %v1016, %v1092
        %v1121 = vmul.f32 %v1018, %v1093
        %v1122 = vmul.f32 %v1020, %v1093
        %v1123 = vmul.f32 %v1022, %v1094
        %v1124 = vmul.f32 %v1024, %v1094
        %v1125 = vmul.f32 %v1026, %v1095
        %v1126 = vmul.f32 %v1028, %v1095
        %v1127 = vmul.f32 %v1030, %v1096
        %v1128 = vmul.f32 %v1032, %v1096
        %v1129 = vsub.f32 0.0, %v696
        %v1130 = vsub.f32 0.0, %v697
        %v1131 = vsub.f32 0.0, %v698
        %v1132 = vsub.f32 0.0, %v699
        %v1133 = vsub.f32 0.0, %v700
        %v1134 = vsub.f32 0.0, %v701
        %v1135 = vsub.f32 0.0, %v702
        %v1136 = vsub.f32 0.0, %v703
        %v1137 = vsub.f32 0.0, %v704
        %v1138 = vsub.f32 0.0, %v705
        %v1139 = vsub.f32 0.0, %v706
        %v1140 = vsub.f32 0.0, %v707
        %v1141 = vsub.f32 0.0, %v708
        %v1142 = vsub.f32 0.0, %v709
        %v1143 = vsub.f32 0.0, %v710
        %v1144 = vsub.f32 0.0, %v711
        %v1145 = vsub.f32 0.0, %v712
        %v1146 = vsub.f32 0.0, %v713
        %v1147 = vsub.f32 0.0, %v714
        %v1148 = vsub.f32 0.0, %v715
        %v1149 = vsub.f32 0.0, %v716
        %v1150 = vsub.f32 0.0, %v717
        %v1151 = vsub.f32 0.0, %v718
        %v1152 = vsub.f32 0.0, %v719
        %v1153 = vsub.f32 0.0, %v720
        %v1154 = vsub.f32 0.0, %v721
        %v1155 = vsub.f32 0.0, %v722
        %v1156 = vsub.f32 0.0, %v723
        %v1157 = vsub.f32 0.0, %v724
        %v1158 = vsub.f32 0.0, %v725
        %v1159 = vsub.f32 0.0, %v726
        %v1160 = vsub.f32 0.0, %v727
        %v1161 = vadd.f32 %v1097, 0.0001
        %v1162 = vadd.f32 %v1098, 0.0001
        %v1163 = vadd.f32 %v1099, 0.0001
        %v1164 = vadd.f32 %v1100, 0.0001
        %v1165 = vadd.f32 %v1101, 0.0001
        %v1166 = vadd.f32 %v1102, 0.0001
        %v1167 = vadd.f32 %v1103, 0.0001
        %v1168 = vadd.f32 %v1104, 0.0001
        %v1169 = vadd.f32 %v1105, 0.0001
        %v1170 = vadd.f32 %v1106, 0.0001
        %v1171 = vadd.f32 %v1107, 0.0001
        %v1172 = vadd.f32 %v1108, 0.0001
        %v1173 = vadd.f32 %v1109, 0.0001
        %v1174 = vadd.f32 %v1110, 0.0001
        %v1175 = vadd.f32 %v1111, 0.0001
        %v1176 = vadd.f32 %v1112, 0.0001
        %v1177 = vadd.f32 %v1113, 0.0001
        %v1178 = vadd.f32 %v1114, 0.0001
        %v1179 = vadd.f32 %v1115, 0.0001
        %v1180 = vadd.f32 %v1116, 0.0001
        %v1181 = vadd.f32 %v1117, 0.0001
        %v1182 = vadd.f32 %v1118, 0.0001
        %v1183 = vadd.f32 %v1119, 0.0001
        %v1184 = vadd.f32 %v1120, 0.0001
        %v1185 = vadd.f32 %v1121, 0.0001
        %v1186 = vadd.f32 %v1122, 0.0001
        %v1187 = vadd.f32 %v1123, 0.0001
        %v1188 = vadd.f32 %v1124, 0.0001
        %v1189 = vadd.f32 %v1125, 0.0001
        %v1190 = vadd.f32 %v1126, 0.0001
        %v1191 = vadd.f32 %v1127, 0.0001
        %v1192 = vadd.f32 %v1128, 0.0001
        %v1193 = vlog2.pop %v1161
        %v1194 = vmul.f32 %v1193, 0.6931472
        %v1195 = vlog2.pop %v1162
        %v1196 = vmul.f32 %v1195, 0.6931472
        %v1197 = vlog2.pop %v1163
        %v1198 = vmul.f32 %v1197, 0.6931472
        %v1199 = vlog2.pop %v1164
        %v1200 = vmul.f32 %v1199, 0.6931472
        %v1201 = vlog2.pop %v1165
        %v1202 = vmul.f32 %v1201, 0.6931472
        %v1203 = vlog2.pop %v1166
        %v1204 = vmul.f32 %v1203, 0.6931472
        %v1205 = vlog2.pop %v1167
        %v1206 = vmul.f32 %v1205, 0.6931472
        %v1207 = vlog2.pop %v1168
        %v1208 = vmul.f32 %v1207, 0.6931472
        %v1209 = vlog2.pop %v1169
        %v1210 = vmul.f32 %v1209, 0.6931472
        %v1211 = vlog2.pop %v1170
        %v1212 = vmul.f32 %v1211, 0.6931472
        %v1213 = vlog2.pop %v1171
        %v1214 = vmul.f32 %v1213, 0.6931472
        %v1215 = vlog2.pop %v1172
        %v1216 = vmul.f32 %v1215, 0.6931472
        %v1217 = vlog2.pop %v1173
        %v1218 = vmul.f32 %v1217, 0.6931472
        %v1219 = vlog2.pop %v1174
        %v1220 = vmul.f32 %v1219, 0.6931472
        %v1221 = vlog2.pop %v1175
        %v1222 = vmul.f32 %v1221, 0.6931472
        %v1223 = vlog2.pop %v1176
        %v1224 = vmul.f32 %v1223, 0.6931472
        %v1225 = vlog2.pop %v1177
        %v1226 = vmul.f32 %v1225, 0.6931472
        %v1227 = vlog2.pop %v1178
        %v1228 = vmul.f32 %v1227, 0.6931472
        %v1229 = vlog2.pop %v1179
        %v1230 = vmul.f32 %v1229, 0.6931472
        %v1231 = vlog2.pop %v1180
        %v1232 = vmul.f32 %v1231, 0.6931472
        %v1233 = vlog2.pop %v1181
        %v1234 = vmul.f32 %v1233, 0.6931472
        %v1235 = vlog2.pop %v1182
        %v1236 = vmul.f32 %v1235, 0.6931472
        %v1237 = vlog2.pop %v1183
        %v1238 = vmul.f32 %v1237, 0.6931472
        %v1239 = vlog2.pop %v1184
        %v1240 = vmul.f32 %v1239, 0.6931472
        %v1241 = vlog2.pop %v1185
        %v1242 = vmul.f32 %v1241, 0.6931472
        %v1243 = vlog2.pop %v1186
        %v1244 = vmul.f32 %v1243, 0.6931472
        %v1245 = vlog2.pop %v1187
        %v1246 = vmul.f32 %v1245, 0.6931472
        %v1247 = vlog2.pop %v1188
        %v1248 = vmul.f32 %v1247, 0.6931472
        %v1249 = vlog2.pop %v1189
        %v1250 = vmul.f32 %v1249, 0.6931472
        %v1251 = vlog2.pop %v1190
        %v1252 = vmul.f32 %v1251, 0.6931472
        %v1253 = vlog2.pop %v1191
        %v1254 = vmul.f32 %v1253, 0.6931472
        %v1255 = vlog2.pop %v1192
        %v1256 = vmul.f32 %v1255, 0.6931472
        %v1257 = vmul.f32 %v1129, %v1194
        %v1258 = vmul.f32 %v1130, %v1196
        %v1259 = vmul.f32 %v1131, %v1198
        %v1260 = vmul.f32 %v1132, %v1200
        %v1261 = vmul.f32 %v1133, %v1202
        %v1262 = vmul.f32 %v1134, %v1204
        %v1263 = vmul.f32 %v1135, %v1206
        %v1264 = vmul.f32 %v1136, %v1208
        %v1265 = vmul.f32 %v1137, %v1210
        %v1266 = vmul.f32 %v1138, %v1212
        %v1267 = vmul.f32 %v1139, %v1214
        %v1268 = vmul.f32 %v1140, %v1216
        %v1269 = vmul.f32 %v1141, %v1218
        %v1270 = vmul.f32 %v1142, %v1220
        %v1271 = vmul.f32 %v1143, %v1222
        %v1272 = vmul.f32 %v1144, %v1224
        %v1273 = vmul.f32 %v1145, %v1226
        %v1274 = vmul.f32 %v1146, %v1228
        %v1275 = vmul.f32 %v1147, %v1230
        %v1276 = vmul.f32 %v1148, %v1232
        %v1277 = vmul.f32 %v1149, %v1234
        %v1278 = vmul.f32 %v1150, %v1236
        %v1279 = vmul.f32 %v1151, %v1238
        %v1280 = vmul.f32 %v1152, %v1240
        %v1281 = vmul.f32 %v1153, %v1242
        %v1282 = vmul.f32 %v1154, %v1244
        %v1283 = vmul.f32 %v1155, %v1246
        %v1284 = vmul.f32 %v1156, %v1248
        %v1285 = vmul.f32 %v1157, %v1250
        %v1286 = vmul.f32 %v1158, %v1252
        %v1287 = vmul.f32 %v1159, %v1254
        %v1288 = vmul.f32 %v1160, %v1256
        %v1289 = vadd.f32 %v1257, %v1258
        %v1290 = vadd.f32 %v1289, %v1259
        %v1291 = vadd.f32 %v1290, %v1260
        %v1292 = vadd.f32 %v1291, %v1261
        %v1293 = vadd.f32 %v1292, %v1262
        %v1294 = vadd.f32 %v1293, %v1263
        %v1295 = vadd.f32 %v1294, %v1264
        %v1296 = vadd.f32 %v1295, %v1265
        %v1297 = vadd.f32 %v1296, %v1266
        %v1298 = vadd.f32 %v1297, %v1267
        %v1299 = vadd.f32 %v1298, %v1268
        %v1300 = vadd.f32 %v1299, %v1269
        %v1301 = vadd.f32 %v1300, %v1270
        %v1302 = vadd.f32 %v1301, %v1271
        %v1303 = vadd.f32 %v1302, %v1272
        %v1304 = vadd.f32 %v1303, %v1273
        %v1305 = vadd.f32 %v1304, %v1274
        %v1306 = vadd.f32 %v1305, %v1275
        %v1307 = vadd.f32 %v1306, %v1276
        %v1308 = vadd.f32 %v1307, %v1277
        %v1309 = vadd.f32 %v1308, %v1278
        %v1310 = vadd.f32 %v1309, %v1279
        %v1311 = vadd.f32 %v1310, %v1280
        %v1312 = vadd.f32 %v1311, %v1281
        %v1313 = vadd.f32 %v1312, %v1282
        %v1314 = vadd.f32 %v1313, %v1283
        %v1315 = vadd.f32 %v1314, %v1284
        %v1316 = vadd.f32 %v1315, %v1285
        %v1317 = vadd.f32 %v1316, %v1286
        %v1318 = vadd.f32 %v1317, %v1287
        %v1319 = vadd.f32 %v1318, %v1288
        %1320 = vadd.xlane.f32.xlu0 %v1319
        %v1321 = vpop.xlane.xlu0 %1320
        %v1322 = vrot.slane %v1321, 4
        %v1323 = vadd.f32 %v1321, %v1322
        %v1324 = vrot.slane %v1323, 2
        %v1325 = vadd.f32 %v1323, %v1324
        %v1326 = vrot.slane %v1325, 1
        %v1327 = vadd.f32 %v1325, %v1326
        %s1328 = vtos %v1327
        %v1329 = vld [vmem:[%s429] sm:$0xff]
        %v1330 = vld [vmem:[%s429 + $0x8] sm:$0xff]
        %v1331 = vld [vmem:[%s429 + $0x10] sm:$0xff]
        %v1332 = vld [vmem:[%s429 + $0x18] sm:$0xff]
        %v1333 = vld [vmem:[%s429 + $0x20] sm:$0xff]
        %v1334 = vld [vmem:[%s429 + $0x28] sm:$0xff]
        %v1335 = vld [vmem:[%s429 + $0x30] sm:$0xff]
        %v1336 = vld [vmem:[%s429 + $0x38] sm:$0xff]
        %v1337 = vld [vmem:[%s429 + $0x40] sm:$0xff]
        %v1338 = vld [vmem:[%s429 + $0x48] sm:$0xff]
        %v1339 = vld [vmem:[%s429 + $0x50] sm:$0xff]
        %v1340 = vld [vmem:[%s429 + $0x58] sm:$0xff]
        %v1341 = vld [vmem:[%s429 + $0x60] sm:$0xff]
        %v1342 = vld [vmem:[%s429 + $0x68] sm:$0xff]
        %v1343 = vld [vmem:[%s429 + $0x70] sm:$0xff]
        %v1344 = vld [vmem:[%s429 + $0x78] sm:$0xff]
        %v1345 = vld [vmem:[%s429 + $0x80] sm:$0xff]
        %v1346 = vld [vmem:[%s429 + $0x88] sm:$0xff]
        %v1347 = vld [vmem:[%s429 + $0x90] sm:$0xff]
        %v1348 = vld [vmem:[%s429 + $0x98] sm:$0xff]
        %v1349 = vld [vmem:[%s429 + $0xa0] sm:$0xff]
        %v1350 = vld [vmem:[%s429 + $0xa8] sm:$0xff]
        %v1351 = vld [vmem:[%s429 + $0xb0] sm:$0xff]
        %v1352 = vld [vmem:[%s429 + $0xb8] sm:$0xff]
        %v1353 = vld [vmem:[%s429 + $0xc0] sm:$0xff]
        %v1354 = vld [vmem:[%s429 + $0xc8] sm:$0xff]
        %v1355 = vld [vmem:[%s429 + $0xd0] sm:$0xff]
        %v1356 = vld [vmem:[%s429 + $0xd8] sm:$0xff]
        %v1357 = vld [vmem:[%s429 + $0xe0] sm:$0xff]
        %v1358 = vld [vmem:[%s429 + $0xe8] sm:$0xff]
        %v1359 = vld [vmem:[%s429 + $0xf0] sm:$0xff]
        %v1360 = vld [vmem:[%s429 + $0xf8] sm:$0xff]
        %1361 = vmatprep.subr.mxu0 0.0
        %1362 = vmatpush1.xpose.msra.mxu0 %v514
        %1363 = vmatprep.subr.mxu0 0.0
        %1364 = vmatpush1.xpose.msra.mxu0 %v513
        %1365 = vmatprep.subr.mxu0 0.0
        %1366 = vmatpush1.xpose.msra.mxu0 %v512
        %1367 = vmatprep.subr.mxu0 0.0
        %1368 = vmatpush1.xpose.msra.mxu0 %v511
        %1369 = vmatprep.subr.mxu0 0.0
        %1370 = vmatpush1.xpose.msra.mxu0 %v510
        %1371 = vmatprep.subr.mxu0 0.0
        %1372 = vmatpush1.xpose.msra.mxu0 %v509
        %1373 = vmatprep.subr.mxu0 0.0
        %1374 = vmatpush1.xpose.msra.mxu0 %v508
        %1375 = vmatprep.subr.mxu0 0.0
        %1376 = vmatpush1.xpose.msra.mxu0 %v507
        %1377 = vmatprep.subr.mxu0 0.0
        %1378 = vmatpush1.xpose.msra.mxu0 %v506
        %1379 = vmatprep.subr.mxu0 0.0
        %1380 = vmatpush1.xpose.msra.mxu0 %v505
        %1381 = vmatprep.subr.mxu0 0.0
        %1382 = vmatpush1.xpose.msra.mxu0 %v504
        %1383 = vmatprep.subr.mxu0 0.0
        %1384 = vmatpush1.xpose.msra.mxu0 %v503
        %1385 = vmatprep.subr.mxu0 0.0
        %1386 = vmatpush1.xpose.msra.mxu0 %v502
        %1387 = vmatprep.subr.mxu0 0.0
        %1388 = vmatpush1.xpose.msra.mxu0 %v501
        %1389 = vmatprep.subr.mxu0 0.0
        %1390 = vmatpush1.xpose.msra.mxu0 %v500
        %1391 = vmatprep.subr.mxu0 0.0
        %1392 = vmatpush1.xpose.msra.mxu0 %v499
        %1393 = vmatprep.subr.mxu0 0.0
        %1394 = vmatpush2.xpose.msra.mxu0 %v530
        %1395 = vmatprep.subr.mxu0 0.0
        %1396 = vmatpush2.xpose.msra.mxu0 %v529
        %1397 = vmatprep.subr.mxu0 0.0
        %1398 = vmatpush2.xpose.msra.mxu0 %v528
        %1399 = vmatprep.subr.mxu0 0.0
        %1400 = vmatpush2.xpose.msra.mxu0 %v527
        %1401 = vmatprep.subr.mxu0 0.0
        %1402 = vmatpush2.xpose.msra.mxu0 %v526
        %1403 = vmatprep.subr.mxu0 0.0
        %1404 = vmatpush2.xpose.msra.mxu0 %v525
        %1405 = vmatprep.subr.mxu0 0.0
        %1406 = vmatpush2.xpose.msra.mxu0 %v524
        %1407 = vmatprep.subr.mxu0 0.0
        %1408 = vmatpush2.xpose.msra.mxu0 %v523
        %1409 = vmatprep.subr.mxu0 0.0
        %1410 = vmatpush2.xpose.msra.mxu0 %v522
        %1411 = vmatprep.subr.mxu0 0.0
        %1412 = vmatpush2.xpose.msra.mxu0 %v521
        %1413 = vmatprep.subr.mxu0 0.0
        %1414 = vmatpush2.xpose.msra.mxu0 %v520
        %1415 = vmatprep.subr.mxu0 0.0
        %1416 = vmatpush2.xpose.msra.mxu0 %v519
        %1417 = vmatprep.subr.mxu0 0.0
        %1418 = vmatpush2.xpose.msra.mxu0 %v518
        %1419 = vmatprep.subr.mxu0 0.0
        %1420 = vmatpush2.xpose.msra.mxu0 %v517
        %1421 = vmatprep.subr.mxu0 0.0
        %1422 = vmatpush2.xpose.msra.mxu0 %v516
        %1423 = vmatprep.subr.mxu0 0.0
        %1424 = vmatpush2.xpose.msra.mxu0 %v515
        %1425 = vmatprep.mubr.f32.mxu0 0.0
        %1426 = vmatmul.mubr.f32.gmra.mxu0 %v646
        %v1427 = vpop.f32.mrf.mxu0
        %v1428 = vadd.f32 0.0, %v1427
        %v1429 = vpop.f32.mrf.mxu0
        %v1430 = vadd.f32 0.0, %v1429
        %1431 = vmatprep.mubr.f32.mxu0 0.0
        %1432 = vmatmul.mubr.f32.gmra.mxu0 %v647
        %v1433 = vpop.f32.mrf.mxu0
        %v1434 = vadd.f32 0.0, %v1433
        %v1435 = vpop.f32.mrf.mxu0
        %v1436 = vadd.f32 0.0, %v1435
        %1437 = vmatprep.mubr.f32.mxu0 0.0
        %1438 = vmatmul.mubr.f32.gmra.mxu0 %v648
        %v1439 = vpop.f32.mrf.mxu0
        %v1440 = vadd.f32 0.0, %v1439
        %v1441 = vpop.f32.mrf.mxu0
        %v1442 = vadd.f32 0.0, %v1441
        %1443 = vmatprep.mubr.f32.mxu0 0.0
        %1444 = vmatmul.mubr.f32.gmra.mxu0 %v649
        %v1445 = vpop.f32.mrf.mxu0
        %v1446 = vadd.f32 0.0, %v1445
        %v1447 = vpop.f32.mrf.mxu0
        %v1448 = vadd.f32 0.0, %v1447
        %1449 = vmatprep.mubr.f32.mxu0 0.0
        %1450 = vmatmul.mubr.f32.gmra.mxu0 %v650
        %v1451 = vpop.f32.mrf.mxu0
        %v1452 = vadd.f32 0.0, %v1451
        %v1453 = vpop.f32.mrf.mxu0
        %v1454 = vadd.f32 0.0, %v1453
        %1455 = vmatprep.mubr.f32.mxu0 0.0
        %1456 = vmatmul.mubr.f32.gmra.mxu0 %v651
        %v1457 = vpop.f32.mrf.mxu0
        %v1458 = vadd.f32 0.0, %v1457
        %v1459 = vpop.f32.mrf.mxu0
        %v1460 = vadd.f32 0.0, %v1459
        %1461 = vmatprep.mubr.f32.mxu0 0.0
        %1462 = vmatmul.mubr.f32.gmra.mxu0 %v652
        %v1463 = vpop.f32.mrf.mxu0
        %v1464 = vadd.f32 0.0, %v1463
        %v1465 = vpop.f32.mrf.mxu0
        %v1466 = vadd.f32 0.0, %v1465
        %1467 = vmatprep.mubr.f32.mxu0 0.0
        %1468 = vmatmul.mubr.f32.gmra.mxu0 %v653
        %v1469 = vpop.f32.mrf.mxu0
        %v1470 = vadd.f32 0.0, %v1469
        %v1471 = vpop.f32.mrf.mxu0
        %v1472 = vadd.f32 0.0, %v1471
        %1473 = vmatprep.mubr.f32.mxu0 0.0
        %1474 = vmatmul.mubr.f32.gmra.mxu0 %v654
        %v1475 = vpop.f32.mrf.mxu0
        %v1476 = vadd.f32 0.0, %v1475
        %v1477 = vpop.f32.mrf.mxu0
        %v1478 = vadd.f32 0.0, %v1477
        %1479 = vmatprep.mubr.f32.mxu0 0.0
        %1480 = vmatmul.mubr.f32.gmra.mxu0 %v655
        %v1481 = vpop.f32.mrf.mxu0
        %v1482 = vadd.f32 0.0, %v1481
        %v1483 = vpop.f32.mrf.mxu0
        %v1484 = vadd.f32 0.0, %v1483
        %1485 = vmatprep.mubr.f32.mxu0 0.0
        %1486 = vmatmul.mubr.f32.gmra.mxu0 %v656
        %v1487 = vpop.f32.mrf.mxu0
        %v1488 = vadd.f32 0.0, %v1487
        %v1489 = vpop.f32.mrf.mxu0
        %v1490 = vadd.f32 0.0, %v1489
        %1491 = vmatprep.mubr.f32.mxu0 0.0
        %1492 = vmatmul.mubr.f32.gmra.mxu0 %v657
        %v1493 = vpop.f32.mrf.mxu0
        %v1494 = vadd.f32 0.0, %v1493
        %v1495 = vpop.f32.mrf.mxu0
        %v1496 = vadd.f32 0.0, %v1495
        %1497 = vmatprep.mubr.f32.mxu0 0.0
        %1498 = vmatmul.mubr.f32.gmra.mxu0 %v658
        %v1499 = vpop.f32.mrf.mxu0
        %v1500 = vadd.f32 0.0, %v1499
        %v1501 = vpop.f32.mrf.mxu0
        %v1502 = vadd.f32 0.0, %v1501
        %1503 = vmatprep.mubr.f32.mxu0 0.0
        %1504 = vmatmul.mubr.f32.gmra.mxu0 %v659
        %v1505 = vpop.f32.mrf.mxu0
        %v1506 = vadd.f32 0.0, %v1505
        %v1507 = vpop.f32.mrf.mxu0
        %v1508 = vadd.f32 0.0, %v1507
        %1509 = vmatprep.mubr.f32.mxu0 0.0
        %1510 = vmatmul.mubr.f32.gmra.mxu0 %v660
        %v1511 = vpop.f32.mrf.mxu0
        %v1512 = vadd.f32 0.0, %v1511
        %v1513 = vpop.f32.mrf.mxu0
        %v1514 = vadd.f32 0.0, %v1513
        %1515 = vmatprep.mubr.f32.mxu0 0.0
        %1516 = vmatmul.mubr.f32.gmra.mxu0 %v661
        %v1517 = vpop.f32.mrf.mxu0
        %v1518 = vadd.f32 0.0, %v1517
        %v1519 = vpop.f32.mrf.mxu0
        %v1520 = vadd.f32 0.0, %v1519
        %1521 = vdwg.mxu0
        %v1522 = vmax.f32 %v1428, %v1430
        %1523 = vmax.xlane.f32.xlu0 %v1522
        %v1524 = vpop.xlane.xlu0 %1523
        %v1525 = vmax.f32 %v1434, %v1436
        %1526 = vmax.xlane.f32.xlu0 %v1525
        %v1527 = vpop.xlane.xlu0 %1526
        %v1528 = vmax.f32 %v1440, %v1442
        %1529 = vmax.xlane.f32.xlu0 %v1528
        %v1530 = vpop.xlane.xlu0 %1529
        %v1531 = vmax.f32 %v1446, %v1448
        %1532 = vmax.xlane.f32.xlu0 %v1531
        %v1533 = vpop.xlane.xlu0 %1532
        %v1534 = vmax.f32 %v1452, %v1454
        %1535 = vmax.xlane.f32.xlu0 %v1534
        %v1536 = vpop.xlane.xlu0 %1535
        %v1537 = vmax.f32 %v1458, %v1460
        %1538 = vmax.xlane.f32.xlu0 %v1537
        %v1539 = vpop.xlane.xlu0 %1538
        %v1540 = vmax.f32 %v1464, %v1466
        %1541 = vmax.xlane.f32.xlu0 %v1540
        %v1542 = vpop.xlane.xlu0 %1541
        %v1543 = vmax.f32 %v1470, %v1472
        %1544 = vmax.xlane.f32.xlu0 %v1543
        %v1545 = vpop.xlane.xlu0 %1544
        %v1546 = vmax.f32 %v1476, %v1478
        %1547 = vmax.xlane.f32.xlu0 %v1546
        %v1548 = vpop.xlane.xlu0 %1547
        %v1549 = vmax.f32 %v1482, %v1484
        %1550 = vmax.xlane.f32.xlu0 %v1549
        %v1551 = vpop.xlane.xlu0 %1550
        %v1552 = vmax.f32 %v1488, %v1490
        %1553 = vmax.xlane.f32.xlu0 %v1552
        %v1554 = vpop.xlane.xlu0 %1553
        %v1555 = vmax.f32 %v1494, %v1496
        %1556 = vmax.xlane.f32.xlu0 %v1555
        %v1557 = vpop.xlane.xlu0 %1556
        %v1558 = vmax.f32 %v1500, %v1502
        %1559 = vmax.xlane.f32.xlu0 %v1558
        %v1560 = vpop.xlane.xlu0 %1559
        %v1561 = vmax.f32 %v1506, %v1508
        %1562 = vmax.xlane.f32.xlu0 %v1561
        %v1563 = vpop.xlane.xlu0 %1562
        %v1564 = vmax.f32 %v1512, %v1514
        %1565 = vmax.xlane.f32.xlu0 %v1564
        %v1566 = vpop.xlane.xlu0 %1565
        %v1567 = vmax.f32 %v1518, %v1520
        %1568 = vmax.xlane.f32.xlu0 %v1567
        %v1569 = vpop.xlane.xlu0 %1568
        %v1570 = vsub.f32 %v1428, %v1524
        %v1571 = vsub.f32 %v1430, %v1524
        %v1572 = vsub.f32 %v1434, %v1527
        %v1573 = vsub.f32 %v1436, %v1527
        %v1574 = vsub.f32 %v1440, %v1530
        %v1575 = vsub.f32 %v1442, %v1530
        %v1576 = vsub.f32 %v1446, %v1533
        %v1577 = vsub.f32 %v1448, %v1533
        %v1578 = vsub.f32 %v1452, %v1536
        %v1579 = vsub.f32 %v1454, %v1536
        %v1580 = vsub.f32 %v1458, %v1539
        %v1581 = vsub.f32 %v1460, %v1539
        %v1582 = vsub.f32 %v1464, %v1542
        %v1583 = vsub.f32 %v1466, %v1542
        %v1584 = vsub.f32 %v1470, %v1545
        %v1585 = vsub.f32 %v1472, %v1545
        %v1586 = vsub.f32 %v1476, %v1548
        %v1587 = vsub.f32 %v1478, %v1548
        %v1588 = vsub.f32 %v1482, %v1551
        %v1589 = vsub.f32 %v1484, %v1551
        %v1590 = vsub.f32 %v1488, %v1554
        %v1591 = vsub.f32 %v1490, %v1554
        %v1592 = vsub.f32 %v1494, %v1557
        %v1593 = vsub.f32 %v1496, %v1557
        %v1594 = vsub.f32 %v1500, %v1560
        %v1595 = vsub.f32 %v1502, %v1560
        %v1596 = vsub.f32 %v1506, %v1563
        %v1597 = vsub.f32 %v1508, %v1563
        %v1598 = vsub.f32 %v1512, %v1566
        %v1599 = vsub.f32 %v1514, %v1566
        %v1600 = vsub.f32 %v1518, %v1569
        %v1601 = vsub.f32 %v1520, %v1569
        %v1602 = vmul.f32 %v1570, 1.442695
        %v1603 = vpow.pop %v1602
        %v1604 = vmul.f32 %v1571, 1.442695
        %v1605 = vpow.pop %v1604
        %v1606 = vmul.f32 %v1572, 1.442695
        %v1607 = vpow.pop %v1606
        %v1608 = vmul.f32 %v1573, 1.442695
        %v1609 = vpow.pop %v1608
        %v1610 = vmul.f32 %v1574, 1.442695
        %v1611 = vpow.pop %v1610
        %v1612 = vmul.f32 %v1575, 1.442695
        %v1613 = vpow.pop %v1612
        %v1614 = vmul.f32 %v1576, 1.442695
        %v1615 = vpow.pop %v1614
        %v1616 = vmul.f32 %v1577, 1.442695
        %v1617 = vpow.pop %v1616
        %v1618 = vmul.f32 %v1578, 1.442695
        %v1619 = vpow.pop %v1618
        %v1620 = vmul.f32 %v1579, 1.442695
        %v1621 = vpow.pop %v1620
        %v1622 = vmul.f32 %v1580, 1.442695
        %v1623 = vpow.pop %v1622
        %v1624 = vmul.f32 %v1581, 1.442695
        %v1625 = vpow.pop %v1624
        %v1626 = vmul.f32 %v1582, 1.442695
        %v1627 = vpow.pop %v1626
        %v1628 = vmul.f32 %v1583, 1.442695
        %v1629 = vpow.pop %v1628
        %v1630 = vmul.f32 %v1584, 1.442695
        %v1631 = vpow.pop %v1630
        %v1632 = vmul.f32 %v1585, 1.442695
        %v1633 = vpow.pop %v1632
        %v1634 = vmul.f32 %v1586, 1.442695
        %v1635 = vpow.pop %v1634
        %v1636 = vmul.f32 %v1587, 1.442695
        %v1637 = vpow.pop %v1636
        %v1638 = vmul.f32 %v1588, 1.442695
        %v1639 = vpow.pop %v1638
        %v1640 = vmul.f32 %v1589, 1.442695
        %v1641 = vpow.pop %v1640
        %v1642 = vmul.f32 %v1590, 1.442695
        %v1643 = vpow.pop %v1642
        %v1644 = vmul.f32 %v1591, 1.442695
        %v1645 = vpow.pop %v1644
        %v1646 = vmul.f32 %v1592, 1.442695
        %v1647 = vpow.pop %v1646
        %v1648 = vmul.f32 %v1593, 1.442695
        %v1649 = vpow.pop %v1648
        %v1650 = vmul.f32 %v1594, 1.442695
        %v1651 = vpow.pop %v1650
        %v1652 = vmul.f32 %v1595, 1.442695
        %v1653 = vpow.pop %v1652
        %v1654 = vmul.f32 %v1596, 1.442695
        %v1655 = vpow.pop %v1654
        %v1656 = vmul.f32 %v1597, 1.442695
        %v1657 = vpow.pop %v1656
        %v1658 = vmul.f32 %v1598, 1.442695
        %v1659 = vpow.pop %v1658
        %v1660 = vmul.f32 %v1599, 1.442695
        %v1661 = vpow.pop %v1660
        %v1662 = vmul.f32 %v1600, 1.442695
        %v1663 = vpow.pop %v1662
        %v1664 = vmul.f32 %v1601, 1.442695
        %v1665 = vpow.pop %v1664
        %v1666 = vadd.f32 %v1603, %v1605
        %1667 = vadd.xlane.f32.xlu0 %v1666
        %v1668 = vpop.xlane.xlu0 %1667
        %v1669 = vadd.f32 %v1607, %v1609
        %1670 = vadd.xlane.f32.xlu0 %v1669
        %v1671 = vpop.xlane.xlu0 %1670
        %v1672 = vadd.f32 %v1611, %v1613
        %1673 = vadd.xlane.f32.xlu0 %v1672
        %v1674 = vpop.xlane.xlu0 %1673
        %v1675 = vadd.f32 %v1615, %v1617
        %1676 = vadd.xlane.f32.xlu0 %v1675
        %v1677 = vpop.xlane.xlu0 %1676
        %v1678 = vadd.f32 %v1619, %v1621
        %1679 = vadd.xlane.f32.xlu0 %v1678
        %v1680 = vpop.xlane.xlu0 %1679
        %v1681 = vadd.f32 %v1623, %v1625
        %1682 = vadd.xlane.f32.xlu0 %v1681
        %v1683 = vpop.xlane.xlu0 %1682
        %v1684 = vadd.f32 %v1627, %v1629
        %1685 = vadd.xlane.f32.xlu0 %v1684
        %v1686 = vpop.xlane.xlu0 %1685
        %v1687 = vadd.f32 %v1631, %v1633
        %1688 = vadd.xlane.f32.xlu0 %v1687
        %v1689 = vpop.xlane.xlu0 %1688
        %v1690 = vadd.f32 %v1635, %v1637
        %1691 = vadd.xlane.f32.xlu0 %v1690
        %v1692 = vpop.xlane.xlu0 %1691
        %v1693 = vadd.f32 %v1639, %v1641
        %1694 = vadd.xlane.f32.xlu0 %v1693
        %v1695 = vpop.xlane.xlu0 %1694
        %v1696 = vadd.f32 %v1643, %v1645
        %1697 = vadd.xlane.f32.xlu0 %v1696
        %v1698 = vpop.xlane.xlu0 %1697
        %v1699 = vadd.f32 %v1647, %v1649
        %1700 = vadd.xlane.f32.xlu0 %v1699
        %v1701 = vpop.xlane.xlu0 %1700
        %v1702 = vadd.f32 %v1651, %v1653
        %1703 = vadd.xlane.f32.xlu0 %v1702
        %v1704 = vpop.xlane.xlu0 %1703
        %v1705 = vadd.f32 %v1655, %v1657
        %1706 = vadd.xlane.f32.xlu0 %v1705
        %v1707 = vpop.xlane.xlu0 %1706
        %v1708 = vadd.f32 %v1659, %v1661
        %1709 = vadd.xlane.f32.xlu0 %v1708
        %v1710 = vpop.xlane.xlu0 %1709
        %v1711 = vadd.f32 %v1663, %v1665
        %1712 = vadd.xlane.f32.xlu0 %v1711
        %v1713 = vpop.xlane.xlu0 %1712
        %v1714 = vrcp.pop %v1668
        %v1715 = vrcp.pop %v1671
        %v1716 = vrcp.pop %v1674
        %v1717 = vrcp.pop %v1677
        %v1718 = vrcp.pop %v1680
        %v1719 = vrcp.pop %v1683
        %v1720 = vrcp.pop %v1686
        %v1721 = vrcp.pop %v1689
        %v1722 = vrcp.pop %v1692
        %v1723 = vrcp.pop %v1695
        %v1724 = vrcp.pop %v1698
        %v1725 = vrcp.pop %v1701
        %v1726 = vrcp.pop %v1704
        %v1727 = vrcp.pop %v1707
        %v1728 = vrcp.pop %v1710
        %v1729 = vrcp.pop %v1713
        %v1730 = vmul.f32 %v1603, %v1714
        %v1731 = vmul.f32 %v1605, %v1714
        %v1732 = vmul.f32 %v1607, %v1715
        %v1733 = vmul.f32 %v1609, %v1715
        %v1734 = vmul.f32 %v1611, %v1716
        %v1735 = vmul.f32 %v1613, %v1716
        %v1736 = vmul.f32 %v1615, %v1717
        %v1737 = vmul.f32 %v1617, %v1717
        %v1738 = vmul.f32 %v1619, %v1718
        %v1739 = vmul.f32 %v1621, %v1718
        %v1740 = vmul.f32 %v1623, %v1719
        %v1741 = vmul.f32 %v1625, %v1719
        %v1742 = vmul.f32 %v1627, %v1720
        %v1743 = vmul.f32 %v1629, %v1720
        %v1744 = vmul.f32 %v1631, %v1721
        %v1745 = vmul.f32 %v1633, %v1721
        %v1746 = vmul.f32 %v1635, %v1722
        %v1747 = vmul.f32 %v1637, %v1722
        %v1748 = vmul.f32 %v1639, %v1723
        %v1749 = vmul.f32 %v1641, %v1723
        %v1750 = vmul.f32 %v1643, %v1724
        %v1751 = vmul.f32 %v1645, %v1724
        %v1752 = vmul.f32 %v1647, %v1725
        %v1753 = vmul.f32 %v1649, %v1725
        %v1754 = vmul.f32 %v1651, %v1726
        %v1755 = vmul.f32 %v1653, %v1726
        %v1756 = vmul.f32 %v1655, %v1727
        %v1757 = vmul.f32 %v1657, %v1727
        %v1758 = vmul.f32 %v1659, %v1728
        %v1759 = vmul.f32 %v1661, %v1728
        %v1760 = vmul.f32 %v1663, %v1729
        %v1761 = vmul.f32 %v1665, %v1729
        %v1762 = vsub.f32 0.0, %v1329
        %v1763 = vsub.f32 0.0, %v1330
        %v1764 = vsub.f32 0.0, %v1331
        %v1765 = vsub.f32 0.0, %v1332
        %v1766 = vsub.f32 0.0, %v1333
        %v1767 = vsub.f32 0.0, %v1334
        %v1768 = vsub.f32 0.0, %v1335
        %v1769 = vsub.f32 0.0, %v1336
        %v1770 = vsub.f32 0.0, %v1337
        %v1771 = vsub.f32 0.0, %v1338
        %v1772 = vsub.f32 0.0, %v1339
        %v1773 = vsub.f32 0.0, %v1340
        %v1774 = vsub.f32 0.0, %v1341
        %v1775 = vsub.f32 0.0, %v1342
        %v1776 = vsub.f32 0.0, %v1343
        %v1777 = vsub.f32 0.0, %v1344
        %v1778 = vsub.f32 0.0, %v1345
        %v1779 = vsub.f32 0.0, %v1346
        %v1780 = vsub.f32 0.0, %v1347
        %v1781 = vsub.f32 0.0, %v1348
        %v1782 = vsub.f32 0.0, %v1349
        %v1783 = vsub.f32 0.0, %v1350
        %v1784 = vsub.f32 0.0, %v1351
        %v1785 = vsub.f32 0.0, %v1352
        %v1786 = vsub.f32 0.0, %v1353
        %v1787 = vsub.f32 0.0, %v1354
        %v1788 = vsub.f32 0.0, %v1355
        %v1789 = vsub.f32 0.0, %v1356
        %v1790 = vsub.f32 0.0, %v1357
        %v1791 = vsub.f32 0.0, %v1358
        %v1792 = vsub.f32 0.0, %v1359
        %v1793 = vsub.f32 0.0, %v1360
        %v1794 = vadd.f32 %v1730, 0.0001
        %v1795 = vadd.f32 %v1731, 0.0001
        %v1796 = vadd.f32 %v1732, 0.0001
        %v1797 = vadd.f32 %v1733, 0.0001
        %v1798 = vadd.f32 %v1734, 0.0001
        %v1799 = vadd.f32 %v1735, 0.0001
        %v1800 = vadd.f32 %v1736, 0.0001
        %v1801 = vadd.f32 %v1737, 0.0001
        %v1802 = vadd.f32 %v1738, 0.0001
        %v1803 = vadd.f32 %v1739, 0.0001
        %v1804 = vadd.f32 %v1740, 0.0001
        %v1805 = vadd.f32 %v1741, 0.0001
        %v1806 = vadd.f32 %v1742, 0.0001
        %v1807 = vadd.f32 %v1743, 0.0001
        %v1808 = vadd.f32 %v1744, 0.0001
        %v1809 = vadd.f32 %v1745, 0.0001
        %v1810 = vadd.f32 %v1746, 0.0001
        %v1811 = vadd.f32 %v1747, 0.0001
        %v1812 = vadd.f32 %v1748, 0.0001
        %v1813 = vadd.f32 %v1749, 0.0001
        %v1814 = vadd.f32 %v1750, 0.0001
        %v1815 = vadd.f32 %v1751, 0.0001
        %v1816 = vadd.f32 %v1752, 0.0001
        %v1817 = vadd.f32 %v1753, 0.0001
        %v1818 = vadd.f32 %v1754, 0.0001
        %v1819 = vadd.f32 %v1755, 0.0001
        %v1820 = vadd.f32 %v1756, 0.0001
        %v1821 = vadd.f32 %v1757, 0.0001
        %v1822 = vadd.f32 %v1758, 0.0001
        %v1823 = vadd.f32 %v1759, 0.0001
        %v1824 = vadd.f32 %v1760, 0.0001
        %v1825 = vadd.f32 %v1761, 0.0001
        %v1826 = vlog2.pop %v1794
        %v1827 = vmul.f32 %v1826, 0.6931472
        %v1828 = vlog2.pop %v1795
        %v1829 = vmul.f32 %v1828, 0.6931472
        %v1830 = vlog2.pop %v1796
        %v1831 = vmul.f32 %v1830, 0.6931472
        %v1832 = vlog2.pop %v1797
        %v1833 = vmul.f32 %v1832, 0.6931472
        %v1834 = vlog2.pop %v1798
        %v1835 = vmul.f32 %v1834, 0.6931472
        %v1836 = vlog2.pop %v1799
        %v1837 = vmul.f32 %v1836, 0.6931472
        %v1838 = vlog2.pop %v1800
        %v1839 = vmul.f32 %v1838, 0.6931472
        %v1840 = vlog2.pop %v1801
        %v1841 = vmul.f32 %v1840, 0.6931472
        %v1842 = vlog2.pop %v1802
        %v1843 = vmul.f32 %v1842, 0.6931472
        %v1844 = vlog2.pop %v1803
        %v1845 = vmul.f32 %v1844, 0.6931472
        %v1846 = vlog2.pop %v1804
        %v1847 = vmul.f32 %v1846, 0.6931472
        %v1848 = vlog2.pop %v1805
        %v1849 = vmul.f32 %v1848, 0.6931472
        %v1850 = vlog2.pop %v1806
        %v1851 = vmul.f32 %v1850, 0.6931472
        %v1852 = vlog2.pop %v1807
        %v1853 = vmul.f32 %v1852, 0.6931472
        %v1854 = vlog2.pop %v1808
        %v1855 = vmul.f32 %v1854, 0.6931472
        %v1856 = vlog2.pop %v1809
        %v1857 = vmul.f32 %v1856, 0.6931472
        %v1858 = vlog2.pop %v1810
        %v1859 = vmul.f32 %v1858, 0.6931472
        %v1860 = vlog2.pop %v1811
        %v1861 = vmul.f32 %v1860, 0.6931472
        %v1862 = vlog2.pop %v1812
        %v1863 = vmul.f32 %v1862, 0.6931472
        %v1864 = vlog2.pop %v1813
        %v1865 = vmul.f32 %v1864, 0.6931472
        %v1866 = vlog2.pop %v1814
        %v1867 = vmul.f32 %v1866, 0.6931472
        %v1868 = vlog2.pop %v1815
        %v1869 = vmul.f32 %v1868, 0.6931472
        %v1870 = vlog2.pop %v1816
        %v1871 = vmul.f32 %v1870, 0.6931472
        %v1872 = vlog2.pop %v1817
        %v1873 = vmul.f32 %v1872, 0.6931472
        %v1874 = vlog2.pop %v1818
        %v1875 = vmul.f32 %v1874, 0.6931472
        %v1876 = vlog2.pop %v1819
        %v1877 = vmul.f32 %v1876, 0.6931472
        %v1878 = vlog2.pop %v1820
        %v1879 = vmul.f32 %v1878, 0.6931472
        %v1880 = vlog2.pop %v1821
        %v1881 = vmul.f32 %v1880, 0.6931472
        %v1882 = vlog2.pop %v1822
        %v1883 = vmul.f32 %v1882, 0.6931472
        %v1884 = vlog2.pop %v1823
        %v1885 = vmul.f32 %v1884, 0.6931472
        %v1886 = vlog2.pop %v1824
        %v1887 = vmul.f32 %v1886, 0.6931472
        %v1888 = vlog2.pop %v1825
        %v1889 = vmul.f32 %v1888, 0.6931472
        %v1890 = vmul.f32 %v1762, %v1827
        %v1891 = vmul.f32 %v1763, %v1829
        %v1892 = vmul.f32 %v1764, %v1831
        %v1893 = vmul.f32 %v1765, %v1833
        %v1894 = vmul.f32 %v1766, %v1835
        %v1895 = vmul.f32 %v1767, %v1837
        %v1896 = vmul.f32 %v1768, %v1839
        %v1897 = vmul.f32 %v1769, %v1841
        %v1898 = vmul.f32 %v1770, %v1843
        %v1899 = vmul.f32 %v1771, %v1845
        %v1900 = vmul.f32 %v1772, %v1847
        %v1901 = vmul.f32 %v1773, %v1849
        %v1902 = vmul.f32 %v1774, %v1851
        %v1903 = vmul.f32 %v1775, %v1853
        %v1904 = vmul.f32 %v1776, %v1855
        %v1905 = vmul.f32 %v1777, %v1857
        %v1906 = vmul.f32 %v1778, %v1859
        %v1907 = vmul.f32 %v1779, %v1861
        %v1908 = vmul.f32 %v1780, %v1863
        %v1909 = vmul.f32 %v1781, %v1865
        %v1910 = vmul.f32 %v1782, %v1867
        %v1911 = vmul.f32 %v1783, %v1869
        %v1912 = vmul.f32 %v1784, %v1871
        %v1913 = vmul.f32 %v1785, %v1873
        %v1914 = vmul.f32 %v1786, %v1875
        %v1915 = vmul.f32 %v1787, %v1877
        %v1916 = vmul.f32 %v1788, %v1879
        %v1917 = vmul.f32 %v1789, %v1881
        %v1918 = vmul.f32 %v1790, %v1883
        %v1919 = vmul.f32 %v1791, %v1885
        %v1920 = vmul.f32 %v1792, %v1887
        %v1921 = vmul.f32 %v1793, %v1889
        %v1922 = vadd.f32 %v1890, %v1891
        %v1923 = vadd.f32 %v1922, %v1892
        %v1924 = vadd.f32 %v1923, %v1893
        %v1925 = vadd.f32 %v1924, %v1894
        %v1926 = vadd.f32 %v1925, %v1895
        %v1927 = vadd.f32 %v1926, %v1896
        %v1928 = vadd.f32 %v1927, %v1897
        %v1929 = vadd.f32 %v1928, %v1898
        %v1930 = vadd.f32 %v1929, %v1899
        %v1931 = vadd.f32 %v1930, %v1900
        %v1932 = vadd.f32 %v1931, %v1901
        %v1933 = vadd.f32 %v1932, %v1902
        %v1934 = vadd.f32 %v1933, %v1903
        %v1935 = vadd.f32 %v1934, %v1904
        %v1936 = vadd.f32 %v1935, %v1905
        %v1937 = vadd.f32 %v1936, %v1906
        %v1938 = vadd.f32 %v1937, %v1907
        %v1939 = vadd.f32 %v1938, %v1908
        %v1940 = vadd.f32 %v1939, %v1909
        %v1941 = vadd.f32 %v1940, %v1910
        %v1942 = vadd.f32 %v1941, %v1911
        %v1943 = vadd.f32 %v1942, %v1912
        %v1944 = vadd.f32 %v1943, %v1913
        %v1945 = vadd.f32 %v1944, %v1914
        %v1946 = vadd.f32 %v1945, %v1915
        %v1947 = vadd.f32 %v1946, %v1916
        %v1948 = vadd.f32 %v1947, %v1917
        %v1949 = vadd.f32 %v1948, %v1918
        %v1950 = vadd.f32 %v1949, %v1919
        %v1951 = vadd.f32 %v1950, %v1920
        %v1952 = vadd.f32 %v1951, %v1921
        %1953 = vadd.xlane.f32.xlu0 %v1952
        %v1954 = vpop.xlane.xlu0 %1953
        %v1955 = vrot.slane %v1954, 4
        %v1956 = vadd.f32 %v1954, %v1955
        %v1957 = vrot.slane %v1956, 2
        %v1958 = vadd.f32 %v1956, %v1957
        %v1959 = vrot.slane %v1958, 1
        %v1960 = vadd.f32 %v1958, %v1959
        %s1961 = vtos %v1960
        %s1962 = sadd.f32 %s1328, %s1961
        %v1963 = vld [vmem:[%s438] sm:$0xff]
        %v1964 = vld [vmem:[%s438 + $0x8] sm:$0xff]
        %v1965 = vld [vmem:[%s438 + $0x10] sm:$0xff]
        %v1966 = vld [vmem:[%s438 + $0x18] sm:$0xff]
        %v1967 = vld [vmem:[%s438 + $0x20] sm:$0xff]
        %v1968 = vld [vmem:[%s438 + $0x28] sm:$0xff]
        %v1969 = vld [vmem:[%s438 + $0x30] sm:$0xff]
        %v1970 = vld [vmem:[%s438 + $0x38] sm:$0xff]
        %v1971 = vld [vmem:[%s438 + $0x40] sm:$0xff]
        %v1972 = vld [vmem:[%s438 + $0x48] sm:$0xff]
        %v1973 = vld [vmem:[%s438 + $0x50] sm:$0xff]
        %v1974 = vld [vmem:[%s438 + $0x58] sm:$0xff]
        %v1975 = vld [vmem:[%s438 + $0x60] sm:$0xff]
        %v1976 = vld [vmem:[%s438 + $0x68] sm:$0xff]
        %v1977 = vld [vmem:[%s438 + $0x70] sm:$0xff]
        %v1978 = vld [vmem:[%s438 + $0x78] sm:$0xff]
        %v1979 = vld [vmem:[%s438 + $0x80] sm:$0xff]
        %v1980 = vld [vmem:[%s438 + $0x88] sm:$0xff]
        %v1981 = vld [vmem:[%s438 + $0x90] sm:$0xff]
        %v1982 = vld [vmem:[%s438 + $0x98] sm:$0xff]
        %v1983 = vld [vmem:[%s438 + $0xa0] sm:$0xff]
        %v1984 = vld [vmem:[%s438 + $0xa8] sm:$0xff]
        %v1985 = vld [vmem:[%s438 + $0xb0] sm:$0xff]
        %v1986 = vld [vmem:[%s438 + $0xb8] sm:$0xff]
        %v1987 = vld [vmem:[%s438 + $0xc0] sm:$0xff]
        %v1988 = vld [vmem:[%s438 + $0xc8] sm:$0xff]
        %v1989 = vld [vmem:[%s438 + $0xd0] sm:$0xff]
        %v1990 = vld [vmem:[%s438 + $0xd8] sm:$0xff]
        %v1991 = vld [vmem:[%s438 + $0xe0] sm:$0xff]
        %v1992 = vld [vmem:[%s438 + $0xe8] sm:$0xff]
        %v1993 = vld [vmem:[%s438 + $0xf0] sm:$0xff]
        %v1994 = vld [vmem:[%s438 + $0xf8] sm:$0xff]
        %v1995 = vmul.f32 %v663, %v663
        %v1996 = vmul.f32 %v664, %v664
        %v1997 = vmul.f32 %v665, %v665
        %v1998 = vmul.f32 %v666, %v666
        %v1999 = vmul.f32 %v667, %v667
        %v2000 = vmul.f32 %v668, %v668
        %v2001 = vmul.f32 %v669, %v669
        %v2002 = vmul.f32 %v670, %v670
        %v2003 = vmul.f32 %v671, %v671
        %v2004 = vmul.f32 %v672, %v672
        %v2005 = vmul.f32 %v673, %v673
        %v2006 = vmul.f32 %v674, %v674
        %v2007 = vmul.f32 %v675, %v675
        %v2008 = vmul.f32 %v676, %v676
        %v2009 = vmul.f32 %v677, %v677
        %v2010 = vmul.f32 %v678, %v678
        %2011 = vadd.xlane.f32.xlu0 %v1995
        %v2012 = vpop.xlane.xlu0 %2011
        %2013 = vadd.xlane.f32.xlu0 %v1996
        %v2014 = vpop.xlane.xlu0 %2013
        %2015 = vadd.xlane.f32.xlu0 %v1997
        %v2016 = vpop.xlane.xlu0 %2015
        %2017 = vadd.xlane.f32.xlu0 %v1998
        %v2018 = vpop.xlane.xlu0 %2017
        %2019 = vadd.xlane.f32.xlu0 %v1999
        %v2020 = vpop.xlane.xlu0 %2019
        %2021 = vadd.xlane.f32.xlu0 %v2000
        %v2022 = vpop.xlane.xlu0 %2021
        %2023 = vadd.xlane.f32.xlu0 %v2001
        %v2024 = vpop.xlane.xlu0 %2023
        %2025 = vadd.xlane.f32.xlu0 %v2002
        %v2026 = vpop.xlane.xlu0 %2025
        %2027 = vadd.xlane.f32.xlu0 %v2003
        %v2028 = vpop.xlane.xlu0 %2027
        %2029 = vadd.xlane.f32.xlu0 %v2004
        %v2030 = vpop.xlane.xlu0 %2029
        %2031 = vadd.xlane.f32.xlu0 %v2005
        %v2032 = vpop.xlane.xlu0 %2031
        %2033 = vadd.xlane.f32.xlu0 %v2006
        %v2034 = vpop.xlane.xlu0 %2033
        %2035 = vadd.xlane.f32.xlu0 %v2007
        %v2036 = vpop.xlane.xlu0 %2035
        %2037 = vadd.xlane.f32.xlu0 %v2008
        %v2038 = vpop.xlane.xlu0 %2037
        %2039 = vadd.xlane.f32.xlu0 %v2009
        %v2040 = vpop.xlane.xlu0 %2039
        %2041 = vadd.xlane.f32.xlu0 %v2010
        %v2042 = vpop.xlane.xlu0 %2041
        %v2043 = vmax.f32 %v2012, 1e-16
        %v2044 = vmax.f32 %v2014, 1e-16
        %v2045 = vmax.f32 %v2016, 1e-16
        %v2046 = vmax.f32 %v2018, 1e-16
        %v2047 = vmax.f32 %v2020, 1e-16
        %v2048 = vmax.f32 %v2022, 1e-16
        %v2049 = vmax.f32 %v2024, 1e-16
        %v2050 = vmax.f32 %v2026, 1e-16
        %v2051 = vmax.f32 %v2028, 1e-16
        %v2052 = vmax.f32 %v2030, 1e-16
        %v2053 = vmax.f32 %v2032, 1e-16
        %v2054 = vmax.f32 %v2034, 1e-16
        %v2055 = vmax.f32 %v2036, 1e-16
        %v2056 = vmax.f32 %v2038, 1e-16
        %v2057 = vmax.f32 %v2040, 1e-16
        %v2058 = vmax.f32 %v2042, 1e-16
        %v2059 = vrsqrt.pop %v2043
        %v2060 = vrsqrt.pop %v2044
        %v2061 = vrsqrt.pop %v2045
        %v2062 = vrsqrt.pop %v2046
        %v2063 = vrsqrt.pop %v2047
        %v2064 = vrsqrt.pop %v2048
        %v2065 = vrsqrt.pop %v2049
        %v2066 = vrsqrt.pop %v2050
        %v2067 = vrsqrt.pop %v2051
        %v2068 = vrsqrt.pop %v2052
        %v2069 = vrsqrt.pop %v2053
        %v2070 = vrsqrt.pop %v2054
        %v2071 = vrsqrt.pop %v2055
        %v2072 = vrsqrt.pop %v2056
        %v2073 = vrsqrt.pop %v2057
        %v2074 = vrsqrt.pop %v2058
        %v2075 = vmul.f32 %v563, %v563
        %v2076 = vmul.f32 %v564, %v564
        %v2077 = vmul.f32 %v565, %v565
        %v2078 = vmul.f32 %v566, %v566
        %v2079 = vmul.f32 %v567, %v567
        %v2080 = vmul.f32 %v568, %v568
        %v2081 = vmul.f32 %v569, %v569
        %v2082 = vmul.f32 %v570, %v570
        %v2083 = vmul.f32 %v571, %v571
        %v2084 = vmul.f32 %v572, %v572
        %v2085 = vmul.f32 %v573, %v573
        %v2086 = vmul.f32 %v574, %v574
        %v2087 = vmul.f32 %v575, %v575
        %v2088 = vmul.f32 %v576, %v576
        %v2089 = vmul.f32 %v577, %v577
        %v2090 = vmul.f32 %v578, %v578
        %v2091 = vmul.f32 %v579, %v579
        %v2092 = vmul.f32 %v580, %v580
        %v2093 = vmul.f32 %v581, %v581
        %v2094 = vmul.f32 %v582, %v582
        %v2095 = vmul.f32 %v583, %v583
        %v2096 = vmul.f32 %v584, %v584
        %v2097 = vmul.f32 %v585, %v585
        %v2098 = vmul.f32 %v586, %v586
        %v2099 = vmul.f32 %v587, %v587
        %v2100 = vmul.f32 %v588, %v588
        %v2101 = vmul.f32 %v589, %v589
        %v2102 = vmul.f32 %v590, %v590
        %v2103 = vmul.f32 %v591, %v591
        %v2104 = vmul.f32 %v592, %v592
        %v2105 = vmul.f32 %v593, %v593
        %v2106 = vmul.f32 %v594, %v594
        %2107 = vadd.xlane.f32.xlu0 %v2075
        %v2108 = vpop.xlane.xlu0 %2107
        %2109 = vadd.xlane.f32.xlu0 %v2076
        %v2110 = vpop.xlane.xlu0 %2109
        %2111 = vadd.xlane.f32.xlu0 %v2077
        %v2112 = vpop.xlane.xlu0 %2111
        %2113 = vadd.xlane.f32.xlu0 %v2078
        %v2114 = vpop.xlane.xlu0 %2113
        %2115 = vadd.xlane.f32.xlu0 %v2079
        %v2116 = vpop.xlane.xlu0 %2115
        %2117 = vadd.xlane.f32.xlu0 %v2080
        %v2118 = vpop.xlane.xlu0 %2117
        %2119 = vadd.xlane.f32.xlu0 %v2081
        %v2120 = vpop.xlane.xlu0 %2119
        %2121 = vadd.xlane.f32.xlu0 %v2082
        %v2122 = vpop.xlane.xlu0 %2121
        %2123 = vadd.xlane.f32.xlu0 %v2083
        %v2124 = vpop.xlane.xlu0 %2123
        %2125 = vadd.xlane.f32.xlu0 %v2084
        %v2126 = vpop.xlane.xlu0 %2125
        %2127 = vadd.xlane.f32.xlu0 %v2085
        %v2128 = vpop.xlane.xlu0 %2127
        %2129 = vadd.xlane.f32.xlu0 %v2086
        %v2130 = vpop.xlane.xlu0 %2129
        %2131 = vadd.xlane.f32.xlu0 %v2087
        %v2132 = vpop.xlane.xlu0 %2131
        %2133 = vadd.xlane.f32.xlu0 %v2088
        %v2134 = vpop.xlane.xlu0 %2133
        %2135 = vadd.xlane.f32.xlu0 %v2089
        %v2136 = vpop.xlane.xlu0 %2135
        %2137 = vadd.xlane.f32.xlu0 %v2090
        %v2138 = vpop.xlane.xlu0 %2137
        %2139 = vadd.xlane.f32.xlu0 %v2091
        %v2140 = vpop.xlane.xlu0 %2139
        %2141 = vadd.xlane.f32.xlu0 %v2092
        %v2142 = vpop.xlane.xlu0 %2141
        %2143 = vadd.xlane.f32.xlu0 %v2093
        %v2144 = vpop.xlane.xlu0 %2143
        %2145 = vadd.xlane.f32.xlu0 %v2094
        %v2146 = vpop.xlane.xlu0 %2145
        %2147 = vadd.xlane.f32.xlu0 %v2095
        %v2148 = vpop.xlane.xlu0 %2147
        %2149 = vadd.xlane.f32.xlu0 %v2096
        %v2150 = vpop.xlane.xlu0 %2149
        %2151 = vadd.xlane.f32.xlu0 %v2097
        %v2152 = vpop.xlane.xlu0 %2151
        %2153 = vadd.xlane.f32.xlu0 %v2098
        %v2154 = vpop.xlane.xlu0 %2153
        %2155 = vadd.xlane.f32.xlu0 %v2099
        %v2156 = vpop.xlane.xlu0 %2155
        %2157 = vadd.xlane.f32.xlu0 %v2100
        %v2158 = vpop.xlane.xlu0 %2157
        %2159 = vadd.xlane.f32.xlu0 %v2101
        %v2160 = vpop.xlane.xlu0 %2159
        %2161 = vadd.xlane.f32.xlu0 %v2102
        %v2162 = vpop.xlane.xlu0 %2161
        %2163 = vadd.xlane.f32.xlu0 %v2103
        %v2164 = vpop.xlane.xlu0 %2163
        %2165 = vadd.xlane.f32.xlu0 %v2104
        %v2166 = vpop.xlane.xlu0 %2165
        %2167 = vadd.xlane.f32.xlu0 %v2105
        %v2168 = vpop.xlane.xlu0 %2167
        %2169 = vadd.xlane.f32.xlu0 %v2106
        %v2170 = vpop.xlane.xlu0 %2169
        %v2171 = vmax.f32 %v2108, 1e-16
        %v2172 = vmax.f32 %v2110, 1e-16
        %v2173 = vmax.f32 %v2112, 1e-16
        %v2174 = vmax.f32 %v2114, 1e-16
        %v2175 = vmax.f32 %v2116, 1e-16
        %v2176 = vmax.f32 %v2118, 1e-16
        %v2177 = vmax.f32 %v2120, 1e-16
        %v2178 = vmax.f32 %v2122, 1e-16
        %v2179 = vmax.f32 %v2124, 1e-16
        %v2180 = vmax.f32 %v2126, 1e-16
        %v2181 = vmax.f32 %v2128, 1e-16
        %v2182 = vmax.f32 %v2130, 1e-16
        %v2183 = vmax.f32 %v2132, 1e-16
        %v2184 = vmax.f32 %v2134, 1e-16
        %v2185 = vmax.f32 %v2136, 1e-16
        %v2186 = vmax.f32 %v2138, 1e-16
        %v2187 = vmax.f32 %v2140, 1e-16
        %v2188 = vmax.f32 %v2142, 1e-16
        %v2189 = vmax.f32 %v2144, 1e-16
        %v2190 = vmax.f32 %v2146, 1e-16
        %v2191 = vmax.f32 %v2148, 1e-16
        %v2192 = vmax.f32 %v2150, 1e-16
        %v2193 = vmax.f32 %v2152, 1e-16
        %v2194 = vmax.f32 %v2154, 1e-16
        %v2195 = vmax.f32 %v2156, 1e-16
        %v2196 = vmax.f32 %v2158, 1e-16
        %v2197 = vmax.f32 %v2160, 1e-16
        %v2198 = vmax.f32 %v2162, 1e-16
        %v2199 = vmax.f32 %v2164, 1e-16
        %v2200 = vmax.f32 %v2166, 1e-16
        %v2201 = vmax.f32 %v2168, 1e-16
        %v2202 = vmax.f32 %v2170, 1e-16
        %v2203 = vrsqrt.pop %v2171
        %v2204 = vrsqrt.pop %v2172
        %v2205 = vrsqrt.pop %v2173
        %v2206 = vrsqrt.pop %v2174
        %v2207 = vrsqrt.pop %v2175
        %v2208 = vrsqrt.pop %v2176
        %v2209 = vrsqrt.pop %v2177
        %v2210 = vrsqrt.pop %v2178
        %v2211 = vrsqrt.pop %v2179
        %v2212 = vrsqrt.pop %v2180
        %v2213 = vrsqrt.pop %v2181
        %v2214 = vrsqrt.pop %v2182
        %v2215 = vrsqrt.pop %v2183
        %v2216 = vrsqrt.pop %v2184
        %v2217 = vrsqrt.pop %v2185
        %v2218 = vrsqrt.pop %v2186
        %v2219 = vrsqrt.pop %v2187
        %v2220 = vrsqrt.pop %v2188
        %v2221 = vrsqrt.pop %v2189
        %v2222 = vrsqrt.pop %v2190
        %v2223 = vrsqrt.pop %v2191
        %v2224 = vrsqrt.pop %v2192
        %v2225 = vrsqrt.pop %v2193
        %v2226 = vrsqrt.pop %v2194
        %v2227 = vrsqrt.pop %v2195
        %v2228 = vrsqrt.pop %v2196
        %v2229 = vrsqrt.pop %v2197
        %v2230 = vrsqrt.pop %v2198
        %v2231 = vrsqrt.pop %v2199
        %v2232 = vrsqrt.pop %v2200
        %v2233 = vrsqrt.pop %v2201
        %v2234 = vrsqrt.pop %v2202
        %v2235 = vmul.f32 %v663, %v2059
        %v2236 = vmul.f32 %v664, %v2060
        %v2237 = vmul.f32 %v665, %v2061
        %v2238 = vmul.f32 %v666, %v2062
        %v2239 = vmul.f32 %v667, %v2063
        %v2240 = vmul.f32 %v668, %v2064
        %v2241 = vmul.f32 %v669, %v2065
        %v2242 = vmul.f32 %v670, %v2066
        %v2243 = vmul.f32 %v671, %v2067
        %v2244 = vmul.f32 %v672, %v2068
        %v2245 = vmul.f32 %v673, %v2069
        %v2246 = vmul.f32 %v674, %v2070
        %v2247 = vmul.f32 %v675, %v2071
        %v2248 = vmul.f32 %v676, %v2072
        %v2249 = vmul.f32 %v677, %v2073
        %v2250 = vmul.f32 %v678, %v2074
        %v2251 = vmul.f32 %v563, %v2203
        %v2252 = vmul.f32 %v564, %v2204
        %v2253 = vmul.f32 %v565, %v2205
        %v2254 = vmul.f32 %v566, %v2206
        %v2255 = vmul.f32 %v567, %v2207
        %v2256 = vmul.f32 %v568, %v2208
        %v2257 = vmul.f32 %v569, %v2209
        %v2258 = vmul.f32 %v570, %v2210
        %v2259 = vmul.f32 %v571, %v2211
        %v2260 = vmul.f32 %v572, %v2212
        %v2261 = vmul.f32 %v573, %v2213
        %v2262 = vmul.f32 %v574, %v2214
        %v2263 = vmul.f32 %v575, %v2215
        %v2264 = vmul.f32 %v576, %v2216
        %v2265 = vmul.f32 %v577, %v2217
        %v2266 = vmul.f32 %v578, %v2218
        %v2267 = vmul.f32 %v579, %v2219
        %v2268 = vmul.f32 %v580, %v2220
        %v2269 = vmul.f32 %v581, %v2221
        %v2270 = vmul.f32 %v582, %v2222
        %v2271 = vmul.f32 %v583, %v2223
        %v2272 = vmul.f32 %v584, %v2224
        %v2273 = vmul.f32 %v585, %v2225
        %v2274 = vmul.f32 %v586, %v2226
        %v2275 = vmul.f32 %v587, %v2227
        %v2276 = vmul.f32 %v588, %v2228
        %v2277 = vmul.f32 %v589, %v2229
        %v2278 = vmul.f32 %v590, %v2230
        %v2279 = vmul.f32 %v591, %v2231
        %v2280 = vmul.f32 %v592, %v2232
        %v2281 = vmul.f32 %v593, %v2233
        %v2282 = vmul.f32 %v594, %v2234
        %2283 = vmatprep.subr.mxu0 0.0
        %2284 = vmatpush1.xpose.msra.mxu0 %v2266
        %2285 = vmatprep.subr.mxu0 0.0
        %2286 = vmatpush1.xpose.msra.mxu0 %v2265
        %2287 = vmatprep.subr.mxu0 0.0
        %2288 = vmatpush1.xpose.msra.mxu0 %v2264
        %2289 = vmatprep.subr.mxu0 0.0
        %2290 = vmatpush1.xpose.msra.mxu0 %v2263
        %2291 = vmatprep.subr.mxu0 0.0
        %2292 = vmatpush1.xpose.msra.mxu0 %v2262
        %2293 = vmatprep.subr.mxu0 0.0
        %2294 = vmatpush1.xpose.msra.mxu0 %v2261
        %2295 = vmatprep.subr.mxu0 0.0
        %2296 = vmatpush1.xpose.msra.mxu0 %v2260
        %2297 = vmatprep.subr.mxu0 0.0
        %2298 = vmatpush1.xpose.msra.mxu0 %v2259
        %2299 = vmatprep.subr.mxu0 0.0
        %2300 = vmatpush1.xpose.msra.mxu0 %v2258
        %2301 = vmatprep.subr.mxu0 0.0
        %2302 = vmatpush1.xpose.msra.mxu0 %v2257
        %2303 = vmatprep.subr.mxu0 0.0
        %2304 = vmatpush1.xpose.msra.mxu0 %v2256
        %2305 = vmatprep.subr.mxu0 0.0
        %2306 = vmatpush1.xpose.msra.mxu0 %v2255
        %2307 = vmatprep.subr.mxu0 0.0
        %2308 = vmatpush1.xpose.msra.mxu0 %v2254
        %2309 = vmatprep.subr.mxu0 0.0
        %2310 = vmatpush1.xpose.msra.mxu0 %v2253
        %2311 = vmatprep.subr.mxu0 0.0
        %2312 = vmatpush1.xpose.msra.mxu0 %v2252
        %2313 = vmatprep.subr.mxu0 0.0
        %2314 = vmatpush1.xpose.msra.mxu0 %v2251
        %2315 = vmatprep.subr.mxu0 0.0
        %2316 = vmatpush2.xpose.msra.mxu0 %v2282
        %2317 = vmatprep.subr.mxu0 0.0
        %2318 = vmatpush2.xpose.msra.mxu0 %v2281
        %2319 = vmatprep.subr.mxu0 0.0
        %2320 = vmatpush2.xpose.msra.mxu0 %v2280
        %2321 = vmatprep.subr.mxu0 0.0
        %2322 = vmatpush2.xpose.msra.mxu0 %v2279
        %2323 = vmatprep.subr.mxu0 0.0
        %2324 = vmatpush2.xpose.msra.mxu0 %v2278
        %2325 = vmatprep.subr.mxu0 0.0
        %2326 = vmatpush2.xpose.msra.mxu0 %v2277
        %2327 = vmatprep.subr.mxu0 0.0
        %2328 = vmatpush2.xpose.msra.mxu0 %v2276
        %2329 = vmatprep.subr.mxu0 0.0
        %2330 = vmatpush2.xpose.msra.mxu0 %v2275
        %2331 = vmatprep.subr.mxu0 0.0
        %2332 = vmatpush2.xpose.msra.mxu0 %v2274
        %2333 = vmatprep.subr.mxu0 0.0
        %2334 = vmatpush2.xpose.msra.mxu0 %v2273
        %2335 = vmatprep.subr.mxu0 0.0
        %2336 = vmatpush2.xpose.msra.mxu0 %v2272
        %2337 = vmatprep.subr.mxu0 0.0
        %2338 = vmatpush2.xpose.msra.mxu0 %v2271
        %2339 = vmatprep.subr.mxu0 0.0
        %2340 = vmatpush2.xpose.msra.mxu0 %v2270
        %2341 = vmatprep.subr.mxu0 0.0
        %2342 = vmatpush2.xpose.msra.mxu0 %v2269
        %2343 = vmatprep.subr.mxu0 0.0
        %2344 = vmatpush2.xpose.msra.mxu0 %v2268
        %2345 = vmatprep.subr.mxu0 0.0
        %2346 = vmatpush2.xpose.msra.mxu0 %v2267
        %2347 = vmatprep.mubr.f32.mxu0 0.0
        %2348 = vmatmul.mubr.f32.gmra.mxu0 %v2235
        %v2349 = vpop.f32.mrf.mxu0
        %v2350 = vadd.f32 0.0, %v2349
        %v2351 = vpop.f32.mrf.mxu0
        %v2352 = vadd.f32 0.0, %v2351
        %2353 = vmatprep.mubr.f32.mxu0 0.0
        %2354 = vmatmul.mubr.f32.gmra.mxu0 %v2236
        %v2355 = vpop.f32.mrf.mxu0
        %v2356 = vadd.f32 0.0, %v2355
        %v2357 = vpop.f32.mrf.mxu0
        %v2358 = vadd.f32 0.0, %v2357
        %2359 = vmatprep.mubr.f32.mxu0 0.0
        %2360 = vmatmul.mubr.f32.gmra.mxu0 %v2237
        %v2361 = vpop.f32.mrf.mxu0
        %v2362 = vadd.f32 0.0, %v2361
        %v2363 = vpop.f32.mrf.mxu0
        %v2364 = vadd.f32 0.0, %v2363
        %2365 = vmatprep.mubr.f32.mxu0 0.0
        %2366 = vmatmul.mubr.f32.gmra.mxu0 %v2238
        %v2367 = vpop.f32.mrf.mxu0
        %v2368 = vadd.f32 0.0, %v2367
        %v2369 = vpop.f32.mrf.mxu0
        %v2370 = vadd.f32 0.0, %v2369
        %2371 = vmatprep.mubr.f32.mxu0 0.0
        %2372 = vmatmul.mubr.f32.gmra.mxu0 %v2239
        %v2373 = vpop.f32.mrf.mxu0
        %v2374 = vadd.f32 0.0, %v2373
        %v2375 = vpop.f32.mrf.mxu0
        %v2376 = vadd.f32 0.0, %v2375
        %2377 = vmatprep.mubr.f32.mxu0 0.0
        %2378 = vmatmul.mubr.f32.gmra.mxu0 %v2240
        %v2379 = vpop.f32.mrf.mxu0
        %v2380 = vadd.f32 0.0, %v2379
        %v2381 = vpop.f32.mrf.mxu0
        %v2382 = vadd.f32 0.0, %v2381
        %2383 = vmatprep.mubr.f32.mxu0 0.0
        %2384 = vmatmul.mubr.f32.gmra.mxu0 %v2241
        %v2385 = vpop.f32.mrf.mxu0
        %v2386 = vadd.f32 0.0, %v2385
        %v2387 = vpop.f32.mrf.mxu0
        %v2388 = vadd.f32 0.0, %v2387
        %2389 = vmatprep.mubr.f32.mxu0 0.0
        %2390 = vmatmul.mubr.f32.gmra.mxu0 %v2242
        %v2391 = vpop.f32.mrf.mxu0
        %v2392 = vadd.f32 0.0, %v2391
        %v2393 = vpop.f32.mrf.mxu0
        %v2394 = vadd.f32 0.0, %v2393
        %2395 = vmatprep.mubr.f32.mxu0 0.0
        %2396 = vmatmul.mubr.f32.gmra.mxu0 %v2243
        %v2397 = vpop.f32.mrf.mxu0
        %v2398 = vadd.f32 0.0, %v2397
        %v2399 = vpop.f32.mrf.mxu0
        %v2400 = vadd.f32 0.0, %v2399
        %2401 = vmatprep.mubr.f32.mxu0 0.0
        %2402 = vmatmul.mubr.f32.gmra.mxu0 %v2244
        %v2403 = vpop.f32.mrf.mxu0
        %v2404 = vadd.f32 0.0, %v2403
        %v2405 = vpop.f32.mrf.mxu0
        %v2406 = vadd.f32 0.0, %v2405
        %2407 = vmatprep.mubr.f32.mxu0 0.0
        %2408 = vmatmul.mubr.f32.gmra.mxu0 %v2245
        %v2409 = vpop.f32.mrf.mxu0
        %v2410 = vadd.f32 0.0, %v2409
        %v2411 = vpop.f32.mrf.mxu0
        %v2412 = vadd.f32 0.0, %v2411
        %2413 = vmatprep.mubr.f32.mxu0 0.0
        %2414 = vmatmul.mubr.f32.gmra.mxu0 %v2246
        %v2415 = vpop.f32.mrf.mxu0
        %v2416 = vadd.f32 0.0, %v2415
        %v2417 = vpop.f32.mrf.mxu0
        %v2418 = vadd.f32 0.0, %v2417
        %2419 = vmatprep.mubr.f32.mxu0 0.0
        %2420 = vmatmul.mubr.f32.gmra.mxu0 %v2247
        %v2421 = vpop.f32.mrf.mxu0
        %v2422 = vadd.f32 0.0, %v2421
        %v2423 = vpop.f32.mrf.mxu0
        %v2424 = vadd.f32 0.0, %v2423
        %2425 = vmatprep.mubr.f32.mxu0 0.0
        %2426 = vmatmul.mubr.f32.gmra.mxu0 %v2248
        %v2427 = vpop.f32.mrf.mxu0
        %v2428 = vadd.f32 0.0, %v2427
        %v2429 = vpop.f32.mrf.mxu0
        %v2430 = vadd.f32 0.0, %v2429
        %2431 = vmatprep.mubr.f32.mxu0 0.0
        %2432 = vmatmul.mubr.f32.gmra.mxu0 %v2249
        %v2433 = vpop.f32.mrf.mxu0
        %v2434 = vadd.f32 0.0, %v2433
        %v2435 = vpop.f32.mrf.mxu0
        %v2436 = vadd.f32 0.0, %v2435
        %2437 = vmatprep.mubr.f32.mxu0 0.0
        %2438 = vmatmul.mubr.f32.gmra.mxu0 %v2250
        %v2439 = vpop.f32.mrf.mxu0
        %v2440 = vadd.f32 0.0, %v2439
        %v2441 = vpop.f32.mrf.mxu0
        %v2442 = vadd.f32 0.0, %v2441
        %2443 = vdwg.mxu0
        %v2444 = vsub.f32 %v2350, %v1963
        %v2445 = vsub.f32 %v2352, %v1964
        %v2446 = vsub.f32 %v2356, %v1965
        %v2447 = vsub.f32 %v2358, %v1966
        %v2448 = vsub.f32 %v2362, %v1967
        %v2449 = vsub.f32 %v2364, %v1968
        %v2450 = vsub.f32 %v2368, %v1969
        %v2451 = vsub.f32 %v2370, %v1970
        %v2452 = vsub.f32 %v2374, %v1971
        %v2453 = vsub.f32 %v2376, %v1972
        %v2454 = vsub.f32 %v2380, %v1973
        %v2455 = vsub.f32 %v2382, %v1974
        %v2456 = vsub.f32 %v2386, %v1975
        %v2457 = vsub.f32 %v2388, %v1976
        %v2458 = vsub.f32 %v2392, %v1977
        %v2459 = vsub.f32 %v2394, %v1978
        %v2460 = vsub.f32 %v2398, %v1979
        %v2461 = vsub.f32 %v2400, %v1980
        %v2462 = vsub.f32 %v2404, %v1981
        %v2463 = vsub.f32 %v2406, %v1982
        %v2464 = vsub.f32 %v2410, %v1983
        %v2465 = vsub.f32 %v2412, %v1984
        %v2466 = vsub.f32 %v2416, %v1985
        %v2467 = vsub.f32 %v2418, %v1986
        %v2468 = vsub.f32 %v2422, %v1987
        %v2469 = vsub.f32 %v2424, %v1988
        %v2470 = vsub.f32 %v2428, %v1989
        %v2471 = vsub.f32 %v2430, %v1990
        %v2472 = vsub.f32 %v2434, %v1991
        %v2473 = vsub.f32 %v2436, %v1992
        %v2474 = vsub.f32 %v2440, %v1993
        %v2475 = vsub.f32 %v2442, %v1994
        %v2476 = vmul.f32 %v2444, %v2444
        %v2477 = vmul.f32 %v2445, %v2445
        %v2478 = vmul.f32 %v2446, %v2446
        %v2479 = vmul.f32 %v2447, %v2447
        %v2480 = vmul.f32 %v2448, %v2448
        %v2481 = vmul.f32 %v2449, %v2449
        %v2482 = vmul.f32 %v2450, %v2450
        %v2483 = vmul.f32 %v2451, %v2451
        %v2484 = vmul.f32 %v2452, %v2452
        %v2485 = vmul.f32 %v2453, %v2453
        %v2486 = vmul.f32 %v2454, %v2454
        %v2487 = vmul.f32 %v2455, %v2455
        %v2488 = vmul.f32 %v2456, %v2456
        %v2489 = vmul.f32 %v2457, %v2457
        %v2490 = vmul.f32 %v2458, %v2458
        %v2491 = vmul.f32 %v2459, %v2459
        %v2492 = vmul.f32 %v2460, %v2460
        %v2493 = vmul.f32 %v2461, %v2461
        %v2494 = vmul.f32 %v2462, %v2462
        %v2495 = vmul.f32 %v2463, %v2463
        %v2496 = vmul.f32 %v2464, %v2464
        %v2497 = vmul.f32 %v2465, %v2465
        %v2498 = vmul.f32 %v2466, %v2466
        %v2499 = vmul.f32 %v2467, %v2467
        %v2500 = vmul.f32 %v2468, %v2468
        %v2501 = vmul.f32 %v2469, %v2469
        %v2502 = vmul.f32 %v2470, %v2470
        %v2503 = vmul.f32 %v2471, %v2471
        %v2504 = vmul.f32 %v2472, %v2472
        %v2505 = vmul.f32 %v2473, %v2473
        %v2506 = vmul.f32 %v2474, %v2474
        %v2507 = vmul.f32 %v2475, %v2475
        %v2508 = vadd.f32 %v2476, %v2477
        %v2509 = vadd.f32 %v2508, %v2478
        %v2510 = vadd.f32 %v2509, %v2479
        %v2511 = vadd.f32 %v2510, %v2480
        %v2512 = vadd.f32 %v2511, %v2481
        %v2513 = vadd.f32 %v2512, %v2482
        %v2514 = vadd.f32 %v2513, %v2483
        %v2515 = vadd.f32 %v2514, %v2484
        %v2516 = vadd.f32 %v2515, %v2485
        %v2517 = vadd.f32 %v2516, %v2486
        %v2518 = vadd.f32 %v2517, %v2487
        %v2519 = vadd.f32 %v2518, %v2488
        %v2520 = vadd.f32 %v2519, %v2489
        %v2521 = vadd.f32 %v2520, %v2490
        %v2522 = vadd.f32 %v2521, %v2491
        %v2523 = vadd.f32 %v2522, %v2492
        %v2524 = vadd.f32 %v2523, %v2493
        %v2525 = vadd.f32 %v2524, %v2494
        %v2526 = vadd.f32 %v2525, %v2495
        %v2527 = vadd.f32 %v2526, %v2496
        %v2528 = vadd.f32 %v2527, %v2497
        %v2529 = vadd.f32 %v2528, %v2498
        %v2530 = vadd.f32 %v2529, %v2499
        %v2531 = vadd.f32 %v2530, %v2500
        %v2532 = vadd.f32 %v2531, %v2501
        %v2533 = vadd.f32 %v2532, %v2502
        %v2534 = vadd.f32 %v2533, %v2503
        %v2535 = vadd.f32 %v2534, %v2504
        %v2536 = vadd.f32 %v2535, %v2505
        %v2537 = vadd.f32 %v2536, %v2506
        %v2538 = vadd.f32 %v2537, %v2507
        %2539 = vadd.xlane.f32.xlu0 %v2538
        %v2540 = vpop.xlane.xlu0 %2539
        %v2541 = vrot.slane %v2540, 4
        %v2542 = vadd.f32 %v2540, %v2541
        %v2543 = vrot.slane %v2542, 2
        %v2544 = vadd.f32 %v2542, %v2543
        %v2545 = vrot.slane %v2544, 1
        %v2546 = vadd.f32 %v2544, %v2545
        %s2547 = vtos %v2546
        %s2548 = smul.f32 %s2547, 1.5258789e-05
        %s2549 = sadd.f32 %s1962, %s2548
        %v2550 = vld [vmem:[%s447] sm:$0xff]
        %v2551 = vld [vmem:[%s447 + $0x8] sm:$0xff]
        %v2552 = vld [vmem:[%s447 + $0x10] sm:$0xff]
        %v2553 = vld [vmem:[%s447 + $0x18] sm:$0xff]
        %v2554 = vld [vmem:[%s447 + $0x20] sm:$0xff]
        %v2555 = vld [vmem:[%s447 + $0x28] sm:$0xff]
        %v2556 = vld [vmem:[%s447 + $0x30] sm:$0xff]
        %v2557 = vld [vmem:[%s447 + $0x38] sm:$0xff]
        %v2558 = vld [vmem:[%s447 + $0x40] sm:$0xff]
        %v2559 = vld [vmem:[%s447 + $0x48] sm:$0xff]
        %v2560 = vld [vmem:[%s447 + $0x50] sm:$0xff]
        %v2561 = vld [vmem:[%s447 + $0x58] sm:$0xff]
        %v2562 = vld [vmem:[%s447 + $0x60] sm:$0xff]
        %v2563 = vld [vmem:[%s447 + $0x68] sm:$0xff]
        %v2564 = vld [vmem:[%s447 + $0x70] sm:$0xff]
        %v2565 = vld [vmem:[%s447 + $0x78] sm:$0xff]
        %v2566 = vld [vmem:[%s447 + $0x80] sm:$0xff]
        %v2567 = vld [vmem:[%s447 + $0x88] sm:$0xff]
        %v2568 = vld [vmem:[%s447 + $0x90] sm:$0xff]
        %v2569 = vld [vmem:[%s447 + $0x98] sm:$0xff]
        %v2570 = vld [vmem:[%s447 + $0xa0] sm:$0xff]
        %v2571 = vld [vmem:[%s447 + $0xa8] sm:$0xff]
        %v2572 = vld [vmem:[%s447 + $0xb0] sm:$0xff]
        %v2573 = vld [vmem:[%s447 + $0xb8] sm:$0xff]
        %v2574 = vld [vmem:[%s447 + $0xc0] sm:$0xff]
        %v2575 = vld [vmem:[%s447 + $0xc8] sm:$0xff]
        %v2576 = vld [vmem:[%s447 + $0xd0] sm:$0xff]
        %v2577 = vld [vmem:[%s447 + $0xd8] sm:$0xff]
        %v2578 = vld [vmem:[%s447 + $0xe0] sm:$0xff]
        %v2579 = vld [vmem:[%s447 + $0xe8] sm:$0xff]
        %v2580 = vld [vmem:[%s447 + $0xf0] sm:$0xff]
        %v2581 = vld [vmem:[%s447 + $0xf8] sm:$0xff]
        %v2582 = vmul.f32 %v680, %v680
        %v2583 = vmul.f32 %v681, %v681
        %v2584 = vmul.f32 %v682, %v682
        %v2585 = vmul.f32 %v683, %v683
        %v2586 = vmul.f32 %v684, %v684
        %v2587 = vmul.f32 %v685, %v685
        %v2588 = vmul.f32 %v686, %v686
        %v2589 = vmul.f32 %v687, %v687
        %v2590 = vmul.f32 %v688, %v688
        %v2591 = vmul.f32 %v689, %v689
        %v2592 = vmul.f32 %v690, %v690
        %v2593 = vmul.f32 %v691, %v691
        %v2594 = vmul.f32 %v692, %v692
        %v2595 = vmul.f32 %v693, %v693
        %v2596 = vmul.f32 %v694, %v694
        %v2597 = vmul.f32 %v695, %v695
        %2598 = vadd.xlane.f32.xlu0 %v2582
        %v2599 = vpop.xlane.xlu0 %2598
        %2600 = vadd.xlane.f32.xlu0 %v2583
        %v2601 = vpop.xlane.xlu0 %2600
        %2602 = vadd.xlane.f32.xlu0 %v2584
        %v2603 = vpop.xlane.xlu0 %2602
        %2604 = vadd.xlane.f32.xlu0 %v2585
        %v2605 = vpop.xlane.xlu0 %2604
        %2606 = vadd.xlane.f32.xlu0 %v2586
        %v2607 = vpop.xlane.xlu0 %2606
        %2608 = vadd.xlane.f32.xlu0 %v2587
        %v2609 = vpop.xlane.xlu0 %2608
        %2610 = vadd.xlane.f32.xlu0 %v2588
        %v2611 = vpop.xlane.xlu0 %2610
        %2612 = vadd.xlane.f32.xlu0 %v2589
        %v2613 = vpop.xlane.xlu0 %2612
        %2614 = vadd.xlane.f32.xlu0 %v2590
        %v2615 = vpop.xlane.xlu0 %2614
        %2616 = vadd.xlane.f32.xlu0 %v2591
        %v2617 = vpop.xlane.xlu0 %2616
        %2618 = vadd.xlane.f32.xlu0 %v2592
        %v2619 = vpop.xlane.xlu0 %2618
        %2620 = vadd.xlane.f32.xlu0 %v2593
        %v2621 = vpop.xlane.xlu0 %2620
        %2622 = vadd.xlane.f32.xlu0 %v2594
        %v2623 = vpop.xlane.xlu0 %2622
        %2624 = vadd.xlane.f32.xlu0 %v2595
        %v2625 = vpop.xlane.xlu0 %2624
        %2626 = vadd.xlane.f32.xlu0 %v2596
        %v2627 = vpop.xlane.xlu0 %2626
        %2628 = vadd.xlane.f32.xlu0 %v2597
        %v2629 = vpop.xlane.xlu0 %2628
        %v2630 = vmax.f32 %v2599, 1e-16
        %v2631 = vmax.f32 %v2601, 1e-16
        %v2632 = vmax.f32 %v2603, 1e-16
        %v2633 = vmax.f32 %v2605, 1e-16
        %v2634 = vmax.f32 %v2607, 1e-16
        %v2635 = vmax.f32 %v2609, 1e-16
        %v2636 = vmax.f32 %v2611, 1e-16
        %v2637 = vmax.f32 %v2613, 1e-16
        %v2638 = vmax.f32 %v2615, 1e-16
        %v2639 = vmax.f32 %v2617, 1e-16
        %v2640 = vmax.f32 %v2619, 1e-16
        %v2641 = vmax.f32 %v2621, 1e-16
        %v2642 = vmax.f32 %v2623, 1e-16
        %v2643 = vmax.f32 %v2625, 1e-16
        %v2644 = vmax.f32 %v2627, 1e-16
        %v2645 = vmax.f32 %v2629, 1e-16
        %v2646 = vrsqrt.pop %v2630
        %v2647 = vrsqrt.pop %v2631
        %v2648 = vrsqrt.pop %v2632
        %v2649 = vrsqrt.pop %v2633
        %v2650 = vrsqrt.pop %v2634
        %v2651 = vrsqrt.pop %v2635
        %v2652 = vrsqrt.pop %v2636
        %v2653 = vrsqrt.pop %v2637
        %v2654 = vrsqrt.pop %v2638
        %v2655 = vrsqrt.pop %v2639
        %v2656 = vrsqrt.pop %v2640
        %v2657 = vrsqrt.pop %v2641
        %v2658 = vrsqrt.pop %v2642
        %v2659 = vrsqrt.pop %v2643
        %v2660 = vrsqrt.pop %v2644
        %v2661 = vrsqrt.pop %v2645
        %v2662 = vmul.f32 %v595, %v595
        %v2663 = vmul.f32 %v596, %v596
        %v2664 = vmul.f32 %v597, %v597
        %v2665 = vmul.f32 %v598, %v598
        %v2666 = vmul.f32 %v599, %v599
        %v2667 = vmul.f32 %v600, %v600
        %v2668 = vmul.f32 %v601, %v601
        %v2669 = vmul.f32 %v602, %v602
        %v2670 = vmul.f32 %v603, %v603
        %v2671 = vmul.f32 %v604, %v604
        %v2672 = vmul.f32 %v605, %v605
        %v2673 = vmul.f32 %v606, %v606
        %v2674 = vmul.f32 %v607, %v607
        %v2675 = vmul.f32 %v608, %v608
        %v2676 = vmul.f32 %v609, %v609
        %v2677 = vmul.f32 %v610, %v610
        %v2678 = vmul.f32 %v611, %v611
        %v2679 = vmul.f32 %v612, %v612
        %v2680 = vmul.f32 %v613, %v613
        %v2681 = vmul.f32 %v614, %v614
        %v2682 = vmul.f32 %v615, %v615
        %v2683 = vmul.f32 %v616, %v616
        %v2684 = vmul.f32 %v617, %v617
        %v2685 = vmul.f32 %v618, %v618
        %v2686 = vmul.f32 %v619, %v619
        %v2687 = vmul.f32 %v620, %v620
        %v2688 = vmul.f32 %v621, %v621
        %v2689 = vmul.f32 %v622, %v622
        %v2690 = vmul.f32 %v623, %v623
        %v2691 = vmul.f32 %v624, %v624
        %v2692 = vmul.f32 %v625, %v625
        %v2693 = vmul.f32 %v626, %v626
        %2694 = vadd.xlane.f32.xlu0 %v2662
        %v2695 = vpop.xlane.xlu0 %2694
        %2696 = vadd.xlane.f32.xlu0 %v2663
        %v2697 = vpop.xlane.xlu0 %2696
        %2698 = vadd.xlane.f32.xlu0 %v2664
        %v2699 = vpop.xlane.xlu0 %2698
        %2700 = vadd.xlane.f32.xlu0 %v2665
        %v2701 = vpop.xlane.xlu0 %2700
        %2702 = vadd.xlane.f32.xlu0 %v2666
        %v2703 = vpop.xlane.xlu0 %2702
        %2704 = vadd.xlane.f32.xlu0 %v2667
        %v2705 = vpop.xlane.xlu0 %2704
        %2706 = vadd.xlane.f32.xlu0 %v2668
        %v2707 = vpop.xlane.xlu0 %2706
        %2708 = vadd.xlane.f32.xlu0 %v2669
        %v2709 = vpop.xlane.xlu0 %2708
        %2710 = vadd.xlane.f32.xlu0 %v2670
        %v2711 = vpop.xlane.xlu0 %2710
        %2712 = vadd.xlane.f32.xlu0 %v2671
        %v2713 = vpop.xlane.xlu0 %2712
        %2714 = vadd.xlane.f32.xlu0 %v2672
        %v2715 = vpop.xlane.xlu0 %2714
        %2716 = vadd.xlane.f32.xlu0 %v2673
        %v2717 = vpop.xlane.xlu0 %2716
        %2718 = vadd.xlane.f32.xlu0 %v2674
        %v2719 = vpop.xlane.xlu0 %2718
        %2720 = vadd.xlane.f32.xlu0 %v2675
        %v2721 = vpop.xlane.xlu0 %2720
        %2722 = vadd.xlane.f32.xlu0 %v2676
        %v2723 = vpop.xlane.xlu0 %2722
        %2724 = vadd.xlane.f32.xlu0 %v2677
        %v2725 = vpop.xlane.xlu0 %2724
        %2726 = vadd.xlane.f32.xlu0 %v2678
        %v2727 = vpop.xlane.xlu0 %2726
        %2728 = vadd.xlane.f32.xlu0 %v2679
        %v2729 = vpop.xlane.xlu0 %2728
        %2730 = vadd.xlane.f32.xlu0 %v2680
        %v2731 = vpop.xlane.xlu0 %2730
        %2732 = vadd.xlane.f32.xlu0 %v2681
        %v2733 = vpop.xlane.xlu0 %2732
        %2734 = vadd.xlane.f32.xlu0 %v2682
        %v2735 = vpop.xlane.xlu0 %2734
        %2736 = vadd.xlane.f32.xlu0 %v2683
        %v2737 = vpop.xlane.xlu0 %2736
        %2738 = vadd.xlane.f32.xlu0 %v2684
        %v2739 = vpop.xlane.xlu0 %2738
        %2740 = vadd.xlane.f32.xlu0 %v2685
        %v2741 = vpop.xlane.xlu0 %2740
        %2742 = vadd.xlane.f32.xlu0 %v2686
        %v2743 = vpop.xlane.xlu0 %2742
        %2744 = vadd.xlane.f32.xlu0 %v2687
        %v2745 = vpop.xlane.xlu0 %2744
        %2746 = vadd.xlane.f32.xlu0 %v2688
        %v2747 = vpop.xlane.xlu0 %2746
        %2748 = vadd.xlane.f32.xlu0 %v2689
        %v2749 = vpop.xlane.xlu0 %2748
        %2750 = vadd.xlane.f32.xlu0 %v2690
        %v2751 = vpop.xlane.xlu0 %2750
        %2752 = vadd.xlane.f32.xlu0 %v2691
        %v2753 = vpop.xlane.xlu0 %2752
        %2754 = vadd.xlane.f32.xlu0 %v2692
        %v2755 = vpop.xlane.xlu0 %2754
        %2756 = vadd.xlane.f32.xlu0 %v2693
        %v2757 = vpop.xlane.xlu0 %2756
        %v2758 = vmax.f32 %v2695, 1e-16
        %v2759 = vmax.f32 %v2697, 1e-16
        %v2760 = vmax.f32 %v2699, 1e-16
        %v2761 = vmax.f32 %v2701, 1e-16
        %v2762 = vmax.f32 %v2703, 1e-16
        %v2763 = vmax.f32 %v2705, 1e-16
        %v2764 = vmax.f32 %v2707, 1e-16
        %v2765 = vmax.f32 %v2709, 1e-16
        %v2766 = vmax.f32 %v2711, 1e-16
        %v2767 = vmax.f32 %v2713, 1e-16
        %v2768 = vmax.f32 %v2715, 1e-16
        %v2769 = vmax.f32 %v2717, 1e-16
        %v2770 = vmax.f32 %v2719, 1e-16
        %v2771 = vmax.f32 %v2721, 1e-16
        %v2772 = vmax.f32 %v2723, 1e-16
        %v2773 = vmax.f32 %v2725, 1e-16
        %v2774 = vmax.f32 %v2727, 1e-16
        %v2775 = vmax.f32 %v2729, 1e-16
        %v2776 = vmax.f32 %v2731, 1e-16
        %v2777 = vmax.f32 %v2733, 1e-16
        %v2778 = vmax.f32 %v2735, 1e-16
        %v2779 = vmax.f32 %v2737, 1e-16
        %v2780 = vmax.f32 %v2739, 1e-16
        %v2781 = vmax.f32 %v2741, 1e-16
        %v2782 = vmax.f32 %v2743, 1e-16
        %v2783 = vmax.f32 %v2745, 1e-16
        %v2784 = vmax.f32 %v2747, 1e-16
        %v2785 = vmax.f32 %v2749, 1e-16
        %v2786 = vmax.f32 %v2751, 1e-16
        %v2787 = vmax.f32 %v2753, 1e-16
        %v2788 = vmax.f32 %v2755, 1e-16
        %v2789 = vmax.f32 %v2757, 1e-16
        %v2790 = vrsqrt.pop %v2758
        %v2791 = vrsqrt.pop %v2759
        %v2792 = vrsqrt.pop %v2760
        %v2793 = vrsqrt.pop %v2761
        %v2794 = vrsqrt.pop %v2762
        %v2795 = vrsqrt.pop %v2763
        %v2796 = vrsqrt.pop %v2764
        %v2797 = vrsqrt.pop %v2765
        %v2798 = vrsqrt.pop %v2766
        %v2799 = vrsqrt.pop %v2767
        %v2800 = vrsqrt.pop %v2768
        %v2801 = vrsqrt.pop %v2769
        %v2802 = vrsqrt.pop %v2770
        %v2803 = vrsqrt.pop %v2771
        %v2804 = vrsqrt.pop %v2772
        %v2805 = vrsqrt.pop %v2773
        %v2806 = vrsqrt.pop %v2774
        %v2807 = vrsqrt.pop %v2775
        %v2808 = vrsqrt.pop %v2776
        %v2809 = vrsqrt.pop %v2777
        %v2810 = vrsqrt.pop %v2778
        %v2811 = vrsqrt.pop %v2779
        %v2812 = vrsqrt.pop %v2780
        %v2813 = vrsqrt.pop %v2781
        %v2814 = vrsqrt.pop %v2782
        %v2815 = vrsqrt.pop %v2783
        %v2816 = vrsqrt.pop %v2784
        %v2817 = vrsqrt.pop %v2785
        %v2818 = vrsqrt.pop %v2786
        %v2819 = vrsqrt.pop %v2787
        %v2820 = vrsqrt.pop %v2788
        %v2821 = vrsqrt.pop %v2789
        %v2822 = vmul.f32 %v680, %v2646
        %v2823 = vmul.f32 %v681, %v2647
        %v2824 = vmul.f32 %v682, %v2648
        %v2825 = vmul.f32 %v683, %v2649
        %v2826 = vmul.f32 %v684, %v2650
        %v2827 = vmul.f32 %v685, %v2651
        %v2828 = vmul.f32 %v686, %v2652
        %v2829 = vmul.f32 %v687, %v2653
        %v2830 = vmul.f32 %v688, %v2654
        %v2831 = vmul.f32 %v689, %v2655
        %v2832 = vmul.f32 %v690, %v2656
        %v2833 = vmul.f32 %v691, %v2657
        %v2834 = vmul.f32 %v692, %v2658
        %v2835 = vmul.f32 %v693, %v2659
        %v2836 = vmul.f32 %v694, %v2660
        %v2837 = vmul.f32 %v695, %v2661
        %v2838 = vmul.f32 %v595, %v2790
        %v2839 = vmul.f32 %v596, %v2791
        %v2840 = vmul.f32 %v597, %v2792
        %v2841 = vmul.f32 %v598, %v2793
        %v2842 = vmul.f32 %v599, %v2794
        %v2843 = vmul.f32 %v600, %v2795
        %v2844 = vmul.f32 %v601, %v2796
        %v2845 = vmul.f32 %v602, %v2797
        %v2846 = vmul.f32 %v603, %v2798
        %v2847 = vmul.f32 %v604, %v2799
        %v2848 = vmul.f32 %v605, %v2800
        %v2849 = vmul.f32 %v606, %v2801
        %v2850 = vmul.f32 %v607, %v2802
        %v2851 = vmul.f32 %v608, %v2803
        %v2852 = vmul.f32 %v609, %v2804
        %v2853 = vmul.f32 %v610, %v2805
        %v2854 = vmul.f32 %v611, %v2806
        %v2855 = vmul.f32 %v612, %v2807
        %v2856 = vmul.f32 %v613, %v2808
        %v2857 = vmul.f32 %v614, %v2809
        %v2858 = vmul.f32 %v615, %v2810
        %v2859 = vmul.f32 %v616, %v2811
        %v2860 = vmul.f32 %v617, %v2812
        %v2861 = vmul.f32 %v618, %v2813
        %v2862 = vmul.f32 %v619, %v2814
        %v2863 = vmul.f32 %v620, %v2815
        %v2864 = vmul.f32 %v621, %v2816
        %v2865 = vmul.f32 %v622, %v2817
        %v2866 = vmul.f32 %v623, %v2818
        %v2867 = vmul.f32 %v624, %v2819
        %v2868 = vmul.f32 %v625, %v2820
        %v2869 = vmul.f32 %v626, %v2821
        %2870 = vmatprep.subr.mxu0 0.0
        %2871 = vmatpush1.xpose.msra.mxu0 %v2853
        %2872 = vmatprep.subr.mxu0 0.0
        %2873 = vmatpush1.xpose.msra.mxu0 %v2852
        %2874 = vmatprep.subr.mxu0 0.0
        %2875 = vmatpush1.xpose.msra.mxu0 %v2851
        %2876 = vmatprep.subr.mxu0 0.0
        %2877 = vmatpush1.xpose.msra.mxu0 %v2850
        %2878 = vmatprep.subr.mxu0 0.0
        %2879 = vmatpush1.xpose.msra.mxu0 %v2849
        %2880 = vmatprep.subr.mxu0 0.0
        %2881 = vmatpush1.xpose.msra.mxu0 %v2848
        %2882 = vmatprep.subr.mxu0 0.0
        %2883 = vmatpush1.xpose.msra.mxu0 %v2847
        %2884 = vmatprep.subr.mxu0 0.0
        %2885 = vmatpush1.xpose.msra.mxu0 %v2846
        %2886 = vmatprep.subr.mxu0 0.0
        %2887 = vmatpush1.xpose.msra.mxu0 %v2845
        %2888 = vmatprep.subr.mxu0 0.0
        %2889 = vmatpush1.xpose.msra.mxu0 %v2844
        %2890 = vmatprep.subr.mxu0 0.0
        %2891 = vmatpush1.xpose.msra.mxu0 %v2843
        %2892 = vmatprep.subr.mxu0 0.0
        %2893 = vmatpush1.xpose.msra.mxu0 %v2842
        %2894 = vmatprep.subr.mxu0 0.0
        %2895 = vmatpush1.xpose.msra.mxu0 %v2841
        %2896 = vmatprep.subr.mxu0 0.0
        %2897 = vmatpush1.xpose.msra.mxu0 %v2840
        %2898 = vmatprep.subr.mxu0 0.0
        %2899 = vmatpush1.xpose.msra.mxu0 %v2839
        %2900 = vmatprep.subr.mxu0 0.0
        %2901 = vmatpush1.xpose.msra.mxu0 %v2838
        %2902 = vmatprep.subr.mxu0 0.0
        %2903 = vmatpush2.xpose.msra.mxu0 %v2869
        %2904 = vmatprep.subr.mxu0 0.0
        %2905 = vmatpush2.xpose.msra.mxu0 %v2868
        %2906 = vmatprep.subr.mxu0 0.0
        %2907 = vmatpush2.xpose.msra.mxu0 %v2867
        %2908 = vmatprep.subr.mxu0 0.0
        %2909 = vmatpush2.xpose.msra.mxu0 %v2866
        %2910 = vmatprep.subr.mxu0 0.0
        %2911 = vmatpush2.xpose.msra.mxu0 %v2865
        %2912 = vmatprep.subr.mxu0 0.0
        %2913 = vmatpush2.xpose.msra.mxu0 %v2864
        %2914 = vmatprep.subr.mxu0 0.0
        %2915 = vmatpush2.xpose.msra.mxu0 %v2863
        %2916 = vmatprep.subr.mxu0 0.0
        %2917 = vmatpush2.xpose.msra.mxu0 %v2862
        %2918 = vmatprep.subr.mxu0 0.0
        %2919 = vmatpush2.xpose.msra.mxu0 %v2861
        %2920 = vmatprep.subr.mxu0 0.0
        %2921 = vmatpush2.xpose.msra.mxu0 %v2860
        %2922 = vmatprep.subr.mxu0 0.0
        %2923 = vmatpush2.xpose.msra.mxu0 %v2859
        %2924 = vmatprep.subr.mxu0 0.0
        %2925 = vmatpush2.xpose.msra.mxu0 %v2858
        %2926 = vmatprep.subr.mxu0 0.0
        %2927 = vmatpush2.xpose.msra.mxu0 %v2857
        %2928 = vmatprep.subr.mxu0 0.0
        %2929 = vmatpush2.xpose.msra.mxu0 %v2856
        %2930 = vmatprep.subr.mxu0 0.0
        %2931 = vmatpush2.xpose.msra.mxu0 %v2855
        %2932 = vmatprep.subr.mxu0 0.0
        %2933 = vmatpush2.xpose.msra.mxu0 %v2854
        %2934 = vmatprep.mubr.f32.mxu0 0.0
        %2935 = vmatmul.mubr.f32.gmra.mxu0 %v2822
        %v2936 = vpop.f32.mrf.mxu0
        %v2937 = vadd.f32 0.0, %v2936
        %v2938 = vpop.f32.mrf.mxu0
        %v2939 = vadd.f32 0.0, %v2938
        %2940 = vmatprep.mubr.f32.mxu0 0.0
        %2941 = vmatmul.mubr.f32.gmra.mxu0 %v2823
        %v2942 = vpop.f32.mrf.mxu0
        %v2943 = vadd.f32 0.0, %v2942
        %v2944 = vpop.f32.mrf.mxu0
        %v2945 = vadd.f32 0.0, %v2944
        %2946 = vmatprep.mubr.f32.mxu0 0.0
        %2947 = vmatmul.mubr.f32.gmra.mxu0 %v2824
        %v2948 = vpop.f32.mrf.mxu0
        %v2949 = vadd.f32 0.0, %v2948
        %v2950 = vpop.f32.mrf.mxu0
        %v2951 = vadd.f32 0.0, %v2950
        %2952 = vmatprep.mubr.f32.mxu0 0.0
        %2953 = vmatmul.mubr.f32.gmra.mxu0 %v2825
        %v2954 = vpop.f32.mrf.mxu0
        %v2955 = vadd.f32 0.0, %v2954
        %v2956 = vpop.f32.mrf.mxu0
        %v2957 = vadd.f32 0.0, %v2956
        %2958 = vmatprep.mubr.f32.mxu0 0.0
        %2959 = vmatmul.mubr.f32.gmra.mxu0 %v2826
        %v2960 = vpop.f32.mrf.mxu0
        %v2961 = vadd.f32 0.0, %v2960
        %v2962 = vpop.f32.mrf.mxu0
        %v2963 = vadd.f32 0.0, %v2962
        %2964 = vmatprep.mubr.f32.mxu0 0.0
        %2965 = vmatmul.mubr.f32.gmra.mxu0 %v2827
        %v2966 = vpop.f32.mrf.mxu0
        %v2967 = vadd.f32 0.0, %v2966
        %v2968 = vpop.f32.mrf.mxu0
        %v2969 = vadd.f32 0.0, %v2968
        %2970 = vmatprep.mubr.f32.mxu0 0.0
        %2971 = vmatmul.mubr.f32.gmra.mxu0 %v2828
        %v2972 = vpop.f32.mrf.mxu0
        %v2973 = vadd.f32 0.0, %v2972
        %v2974 = vpop.f32.mrf.mxu0
        %v2975 = vadd.f32 0.0, %v2974
        %2976 = vmatprep.mubr.f32.mxu0 0.0
        %2977 = vmatmul.mubr.f32.gmra.mxu0 %v2829
        %v2978 = vpop.f32.mrf.mxu0
        %v2979 = vadd.f32 0.0, %v2978
        %v2980 = vpop.f32.mrf.mxu0
        %v2981 = vadd.f32 0.0, %v2980
        %2982 = vmatprep.mubr.f32.mxu0 0.0
        %2983 = vmatmul.mubr.f32.gmra.mxu0 %v2830
        %v2984 = vpop.f32.mrf.mxu0
        %v2985 = vadd.f32 0.0, %v2984
        %v2986 = vpop.f32.mrf.mxu0
        %v2987 = vadd.f32 0.0, %v2986
        %2988 = vmatprep.mubr.f32.mxu0 0.0
        %2989 = vmatmul.mubr.f32.gmra.mxu0 %v2831
        %v2990 = vpop.f32.mrf.mxu0
        %v2991 = vadd.f32 0.0, %v2990
        %v2992 = vpop.f32.mrf.mxu0
        %v2993 = vadd.f32 0.0, %v2992
        %2994 = vmatprep.mubr.f32.mxu0 0.0
        %2995 = vmatmul.mubr.f32.gmra.mxu0 %v2832
        %v2996 = vpop.f32.mrf.mxu0
        %v2997 = vadd.f32 0.0, %v2996
        %v2998 = vpop.f32.mrf.mxu0
        %v2999 = vadd.f32 0.0, %v2998
        %3000 = vmatprep.mubr.f32.mxu0 0.0
        %3001 = vmatmul.mubr.f32.gmra.mxu0 %v2833
        %v3002 = vpop.f32.mrf.mxu0
        %v3003 = vadd.f32 0.0, %v3002
        %v3004 = vpop.f32.mrf.mxu0
        %v3005 = vadd.f32 0.0, %v3004
        %3006 = vmatprep.mubr.f32.mxu0 0.0
        %3007 = vmatmul.mubr.f32.gmra.mxu0 %v2834
        %v3008 = vpop.f32.mrf.mxu0
        %v3009 = vadd.f32 0.0, %v3008
        %v3010 = vpop.f32.mrf.mxu0
        %v3011 = vadd.f32 0.0, %v3010
        %3012 = vmatprep.mubr.f32.mxu0 0.0
        %3013 = vmatmul.mubr.f32.gmra.mxu0 %v2835
        %v3014 = vpop.f32.mrf.mxu0
        %v3015 = vadd.f32 0.0, %v3014
        %v3016 = vpop.f32.mrf.mxu0
        %v3017 = vadd.f32 0.0, %v3016
        %3018 = vmatprep.mubr.f32.mxu0 0.0
        %3019 = vmatmul.mubr.f32.gmra.mxu0 %v2836
        %v3020 = vpop.f32.mrf.mxu0
        %v3021 = vadd.f32 0.0, %v3020
        %v3022 = vpop.f32.mrf.mxu0
        %v3023 = vadd.f32 0.0, %v3022
        %3024 = vmatprep.mubr.f32.mxu0 0.0
        %3025 = vmatmul.mubr.f32.gmra.mxu0 %v2837
        %v3026 = vpop.f32.mrf.mxu0
        %v3027 = vadd.f32 0.0, %v3026
        %v3028 = vpop.f32.mrf.mxu0
        %v3029 = vadd.f32 0.0, %v3028
        %3030 = vdwg.mxu0
        %v3031 = vsub.f32 %v2937, %v2550
        %v3032 = vsub.f32 %v2939, %v2551
        %v3033 = vsub.f32 %v2943, %v2552
        %v3034 = vsub.f32 %v2945, %v2553
        %v3035 = vsub.f32 %v2949, %v2554
        %v3036 = vsub.f32 %v2951, %v2555
        %v3037 = vsub.f32 %v2955, %v2556
        %v3038 = vsub.f32 %v2957, %v2557
        %v3039 = vsub.f32 %v2961, %v2558
        %v3040 = vsub.f32 %v2963, %v2559
        %v3041 = vsub.f32 %v2967, %v2560
        %v3042 = vsub.f32 %v2969, %v2561
        %v3043 = vsub.f32 %v2973, %v2562
        %v3044 = vsub.f32 %v2975, %v2563
        %v3045 = vsub.f32 %v2979, %v2564
        %v3046 = vsub.f32 %v2981, %v2565
        %v3047 = vsub.f32 %v2985, %v2566
        %v3048 = vsub.f32 %v2987, %v2567
        %v3049 = vsub.f32 %v2991, %v2568
        %v3050 = vsub.f32 %v2993, %v2569
        %v3051 = vsub.f32 %v2997, %v2570
        %v3052 = vsub.f32 %v2999, %v2571
        %v3053 = vsub.f32 %v3003, %v2572
        %v3054 = vsub.f32 %v3005, %v2573
        %v3055 = vsub.f32 %v3009, %v2574
        %v3056 = vsub.f32 %v3011, %v2575
        %v3057 = vsub.f32 %v3015, %v2576
        %v3058 = vsub.f32 %v3017, %v2577
        %v3059 = vsub.f32 %v3021, %v2578
        %v3060 = vsub.f32 %v3023, %v2579
        %v3061 = vsub.f32 %v3027, %v2580
        %v3062 = vsub.f32 %v3029, %v2581
        %v3063 = vmul.f32 %v3031, %v3031
        %v3064 = vmul.f32 %v3032, %v3032
        %v3065 = vmul.f32 %v3033, %v3033
        %v3066 = vmul.f32 %v3034, %v3034
        %v3067 = vmul.f32 %v3035, %v3035
        %v3068 = vmul.f32 %v3036, %v3036
        %v3069 = vmul.f32 %v3037, %v3037
        %v3070 = vmul.f32 %v3038, %v3038
        %v3071 = vmul.f32 %v3039, %v3039
        %v3072 = vmul.f32 %v3040, %v3040
        %v3073 = vmul.f32 %v3041, %v3041
        %v3074 = vmul.f32 %v3042, %v3042
        %v3075 = vmul.f32 %v3043, %v3043
        %v3076 = vmul.f32 %v3044, %v3044
        %v3077 = vmul.f32 %v3045, %v3045
        %v3078 = vmul.f32 %v3046, %v3046
        %v3079 = vmul.f32 %v3047, %v3047
        %v3080 = vmul.f32 %v3048, %v3048
        %v3081 = vmul.f32 %v3049, %v3049
        %v3082 = vmul.f32 %v3050, %v3050
        %v3083 = vmul.f32 %v3051, %v3051
        %v3084 = vmul.f32 %v3052, %v3052
        %v3085 = vmul.f32 %v3053, %v3053
        %v3086 = vmul.f32 %v3054, %v3054
        %v3087 = vmul.f32 %v3055, %v3055
        %v3088 = vmul.f32 %v3056, %v3056
        %v3089 = vmul.f32 %v3057, %v3057
        %v3090 = vmul.f32 %v3058, %v3058
        %v3091 = vmul.f32 %v3059, %v3059
        %v3092 = vmul.f32 %v3060, %v3060
        %v3093 = vmul.f32 %v3061, %v3061
        %v3094 = vmul.f32 %v3062, %v3062
        %v3095 = vadd.f32 %v3063, %v3064
        %v3096 = vadd.f32 %v3095, %v3065
        %v3097 = vadd.f32 %v3096, %v3066
        %v3098 = vadd.f32 %v3097, %v3067
        %v3099 = vadd.f32 %v3098, %v3068
        %v3100 = vadd.f32 %v3099, %v3069
        %v3101 = vadd.f32 %v3100, %v3070
        %v3102 = vadd.f32 %v3101, %v3071
        %v3103 = vadd.f32 %v3102, %v3072
        %v3104 = vadd.f32 %v3103, %v3073
        %v3105 = vadd.f32 %v3104, %v3074
        %v3106 = vadd.f32 %v3105, %v3075
        %v3107 = vadd.f32 %v3106, %v3076
        %v3108 = vadd.f32 %v3107, %v3077
        %v3109 = vadd.f32 %v3108, %v3078
        %v3110 = vadd.f32 %v3109, %v3079
        %v3111 = vadd.f32 %v3110, %v3080
        %v3112 = vadd.f32 %v3111, %v3081
        %v3113 = vadd.f32 %v3112, %v3082
        %v3114 = vadd.f32 %v3113, %v3083
        %v3115 = vadd.f32 %v3114, %v3084
        %v3116 = vadd.f32 %v3115, %v3085
        %v3117 = vadd.f32 %v3116, %v3086
        %v3118 = vadd.f32 %v3117, %v3087
        %v3119 = vadd.f32 %v3118, %v3088
        %v3120 = vadd.f32 %v3119, %v3089
        %v3121 = vadd.f32 %v3120, %v3090
        %v3122 = vadd.f32 %v3121, %v3091
        %v3123 = vadd.f32 %v3122, %v3092
        %v3124 = vadd.f32 %v3123, %v3093
        %v3125 = vadd.f32 %v3124, %v3094
        %3126 = vadd.xlane.f32.xlu0 %v3125
        %v3127 = vpop.xlane.xlu0 %3126
        %v3128 = vrot.slane %v3127, 4
        %v3129 = vadd.f32 %v3127, %v3128
        %v3130 = vrot.slane %v3129, 2
        %v3131 = vadd.f32 %v3129, %v3130
        %v3132 = vrot.slane %v3131, 1
        %v3133 = vadd.f32 %v3131, %v3132
        %s3134 = vtos %v3133
        %s3135 = smul.f32 %s3134, 1.5258789e-05
        %s3136 = sadd.f32 %s2549, %s3135
        %v3137 = vstv %s3136
        %3138 = vst [vmem:[%s494] sm:$0xff] %v3137
        %s3139 = sand.u32 %s221, 1
        %s3140 = scalar_lea.sflag [#allocation4], %s3139
        %s3141 = sand.u32 %s221, 1
        %s3142 = smul.addr %s3141, 8
        %s3143 = scalar_lea.vmem [#allocation14], %s3142
        // Predicated region
        $region85: #{tpu_custom_call.1} parent=51 // pred_check
          %p3144 = pneg %p231
        $region86: #{tpu_custom_call.1} parent=51 // pred_check_branch
          %3146 = sbr.rel (%p3144) target = $region88
        $region87: #{tpu_custom_call.1} parent=51 // pred_region
          %s3148 = ssub.s32 128, 128
          %3149 = vsyncadd %s3140, %s3148
          %s3150 = smul.addr %s25, 128
          %s3151 = scalar_lea.hbm %s8, %s3150
          %s3153 = sshll.u32 %s3143, 4
          %s3154 = int_to_ptr.vmem [resolvable:$true] %s3153
          %3156 = dma.vmem_to_hbm [thread:$0]  %s3154, 128, %s3151, %s3140
        $region88: #{tpu_custom_call.1} parent=51 // pred_fallthru
          _
      $region52: #{tpu_custom_call.1} parent=5 // pred_fallthru
        _
      %p3157 = scmp.le.s32.totalorder 2, %s20
      // Predicated region
      $region89: #{tpu_custom_call.1} parent=5 // pred_check
        %p3158 = pneg %p3157
      $region90: #{tpu_custom_call.1} parent=5 // pred_check_branch
        %3160 = sbr.rel (%p3158) target = $region92
      $region91: #{tpu_custom_call.1} parent=5 // pred_region
        %s3161 = ssub.s32 %s20, 2
        // Predicated region
        $region93: #{tpu_custom_call.1} parent=91 // pred_check
          %p3162 = pneg %p237
        $region94: #{tpu_custom_call.1} parent=91 // pred_check_branch
          %3164 = sbr.rel (%p3162) target = $region96
        $region95: #{tpu_custom_call.1} parent=91 // pred_region
          %s3165 = sand.u32 %s222, 1
          %s3166 = scalar_lea.sflag [#allocation4], %s3165
          %s3167 = sand.u32 %s222, 1
          %s3168 = smul.addr %s3167, 8
          %s3169 = scalar_lea.vmem [#allocation14], %s3168
          %3170 = dma.done %s3166, 128
        $region96: #{tpu_custom_call.1} parent=91 // pred_fallthru
          _
      $region92: #{tpu_custom_call.1} parent=5 // pred_fallthru
        _
    $region6: #{tpu_custom_call.1} parent=1 // loop_footer
      %s24 = sadd.s32 1, %s20
    $region7: #{tpu_custom_call.1} parent=1 // loop_footer_branch
      %19 = sbr.rel target = $region3
    $region8: #{tpu_custom_call.1} parent=1 // loop_exit
      _
    %3171 = vsyncpa [#allocation3], 1
    %s3172 = scalar_lea.sflag [#allocation3], 1
    %3173 = vsyncpa %s3172, 1
    %3174 = vsyncpa [#allocation6], 1
    %3175 = vsyncpa [#allocation9], 1
    %3176 = vsyncpa [#allocation4], 1
    %s3177 = scalar_lea.sflag [#allocation4], 1
    %3178 = vsyncpa %s3177, 1

</llo_original>
